<compile_context>
chip_gen: v5e
topology: v5e:2x2
jax: 0.10.0
libtpu: 0.0.40
codegen_flags: <defaults>
</compile_context>

<pallas_src>
import math

import jax
import jax.numpy as jnp
from jax import lax
from jax.experimental import pallas as pl
from jax.experimental.pallas import tpu as pltpu


def _make_mha_kernel(head_count: int, dim_per_head: int, hoist_kv_proj: bool):
    """Build the kernel body.

    hoist_kv_proj: when True, the K/V projections only run on the first q-tile
    of each batch element; kp/vp live in VMEM scratch that persists across
    grid steps, so later q-tiles of the same batch element reuse them.
    """

    def kernel(q_ref, k_ref, v_ref,
               wq_ref, wk_ref, wv_ref,
               bq_ref, bk_ref, bv_ref,
               wf_ref, bf_ref,
               o_ref,
               qp_ref, kp_ref, vp_ref, ctx_ref):
        f32 = jnp.float32
        bf16 = jnp.bfloat16

        def project_kv():
            # Inputs are already bf16 (cast once in the wrapper) -> bf16 MXU
            # operands with fp32 accumulation; results staged to bf16 scratch.
            kp_ref[...] = (jnp.dot(k_ref[0], wk_ref[...],
                                   preferred_element_type=f32)
                           + bk_ref[...]).astype(bf16)
            vp_ref[...] = (jnp.dot(v_ref[0], wv_ref[...],
                                   preferred_element_type=f32)
                           + bv_ref[...]).astype(bf16)

        if hoist_kv_proj:
            # K/V projection once per batch element (q-tile axis is the last,
            # sequential grid axis, so qi == 0 is hit first for every b).
            @pl.when(pl.program_id(1) == 0)
            def _():
                project_kv()
        else:
            project_kv()

        # Q projection; 1/sqrt(dph) is pre-folded into Wq / bq in the wrapper.
        qp_ref[...] = (jnp.dot(q_ref[0], wq_ref[...],
                               preferred_element_type=f32)
                       + bq_ref[...]).astype(bf16)

        # Per-head attention.  head_count is a compile-time constant; the
        # static loop unrolls, and every per-head temporary round-trips through
        # bf16 VMEM scratch so live ranges stay bounded.  Static column slices
        # are lane-aligned (zero-cost) when dim_per_head % 128 == 0.
        # TODO(synk): for dim_per_head % 128 != 0, lay qp/kp/vp/ctx out
        #             head-major (H, S, dph) so per-head stores stay lane-dense.
        for h in range(head_count):
            sl = slice(h * dim_per_head, (h + 1) * dim_per_head)
            qh = qp_ref[:, sl]          # (TQ, dph) bf16, already scaled
            kh = kp_ref[:, sl]          # (Sk, dph) bf16
            vh = vp_ref[:, sl]          # (Sk, dph) bf16

            # scores = qh @ kh^T, transpose folded into dot_general (no XLU
            # transpose / VMEM temp).
            scores = lax.dot_general(
                qh, kh, (((1,), (1,)), ((), ())),
                preferred_element_type=f32)          # (TQ, Sk) f32

            # Numerically-stable softmax over keys.  EUP approx reciprocal
            # instead of a VALU divide; the normalization multiply is fused
            # straight into the bf16 AV operand to keep the f32 live set small.
            m = jnp.max(scores, axis=-1, keepdims=True)
            e = jnp.exp(scores - m)
            inv_l = pl.reciprocal(jnp.sum(e, axis=-1, keepdims=True),
                                  approx=True)
            attn = (e * inv_l).astype(bf16)
            # dropout: identity (eval mode).

            ctx_ref[:, sl] = jnp.dot(attn, vh,
                                     preferred_element_type=f32).astype(bf16)

        # Merge-heads + final linear as ONE full contraction-D matmul.
        out = (jnp.dot(ctx_ref[...], wf_ref[...], preferred_element_type=f32)
               + bf_ref[...])
        o_ref[0] = out.astype(o_ref.dtype)

    return kernel


def _vmem_capacity_bytes() -> int:
    """Physical VMEM of the local TPU generation, with a safe fallback."""
    try:
        info = pltpu.get_tpu_info()
        for name in ("vmem_capacity_bytes", "vmem_size_bytes", "vmem_bytes"):
            val = getattr(info, name, None)
            if val:
                return int(val)
    except Exception:
        pass
    return 64 << 20   # conservative default: v7x per-core VMEM


def _select_tq_and_vmem(Sq, Sk, D, out_itemsize, single_buffer_weights):
    """Pick the largest q-tile that fits this generation's VMEM budget, and a
    matching vmem_limit_bytes.  The budget counts the f32 softmax temporaries
    and leaves >= 8 MiB headroom for compiler-internal scratch; v5e/v6e's
    128 MiB is NOT clamped down to v7x's 64 MiB."""
    capacity = _vmem_capacity_bytes()
    usable = capacity - max(8 << 20, capacity // 8)   # 64MiB->56, 128MiB->112

    def footprint(tq):
        bf2, f4 = 2, 4
        blocks = 2 * (tq * D * bf2                 # q block (bf16), 2-buffered
                      + tq * D * out_itemsize      # output block, 2-buffered
                      + 2 * Sk * D * bf2)          # k + v blocks (bf16), 2-buf
        wbuf = 1 if single_buffer_weights else 2
        weights = wbuf * (4 * D * D * bf2 + 4 * D * f4)
        scratch = (2 * tq * D + 2 * Sk * D) * bf2  # qp/ctx + kp/vp (bf16)
        softmax = 3 * tq * Sk * f4                 # scores / e / attn live set
        return blocks + weights + scratch + softmax

    cands = sorted({t for t in (1024, 512, 256, 128, 64, 32, 16, 8)
                    if Sq % t == 0} | {Sq}, reverse=True)
    tq = cands[-1]
    for t in cands:
        if footprint(t) + (4 << 20) <= usable:
            tq = t
            break
    # TODO(synk): if even the smallest tq does not fit (huge Sk*D on v7x),
    #             the key axis should be tiled flash-style instead.
    vmem_limit = int(min(usable, max(footprint(tq) + (8 << 20), 16 << 20)))
    return tq, vmem_limit


def multi_headed_attention(key, value, query, params, head_count):
    """key/value: [B, Sk, D], query: [B, Sq, D] -> output: [B, Sq, D]."""
    B, Sk, D = key.shape
    Sq = query.shape[1]
    assert D % head_count == 0
    dph = D // head_count
    out_dtype = query.dtype
    out_itemsize = jnp.dtype(out_dtype).itemsize

    # Parameter / input prep (one-time, outside the kernel):
    #  - fold 1/sqrt(dph) into Wq / bq,
    #  - weights AND q/k/v cast to bf16 (halves K/V block DMA + VMEM; the MXU
    #    operands are bf16 anyway); biases stay fp32 (added post-accumulation).
    scale = 1.0 / math.sqrt(dph)
    wq = (params["wq"] * scale).astype(jnp.bfloat16)
    wk = params["wk"].astype(jnp.bfloat16)
    wv = params["wv"].astype(jnp.bfloat16)
    wf = params["wf"].astype(jnp.bfloat16)
    bq = (params["bq"] * scale).astype(jnp.float32)
    bk = params["bk"].astype(jnp.float32)
    bv = params["bv"].astype(jnp.float32)
    bf = params["bf"].astype(jnp.float32)
    q_in = query.astype(jnp.bfloat16)
    k_in = key.astype(jnp.bfloat16)
    v_in = value.astype(jnp.bfloat16)

    def build(single_buffer_weights: bool):
        tq, vmem_limit = _select_tq_and_vmem(Sq, Sk, D, out_itemsize,
                                             single_buffer_weights)
        nq = Sq // tq

        # The K/V-projection hoist needs the q-tile axis to run sequentially
        # per batch element ("arbitrary").  B stays "parallel" so v7x's second
        # TensorCore is used.  If B == 1 and Sq is tiled, keep the q axis
        # parallel instead and accept redundant K/V projection (review item 7).
        hoist_kv = not (B == 1 and nq > 1)
        qi_sem = "arbitrary" if (hoist_kv and nq > 1) else "parallel"

        kernel = _make_mha_kernel(head_count, dph, hoist_kv)

        def const_spec(shape):
            # Weight/bias blocks never change block index; single-buffer them
            # so double-buffered copies don't waste VMEM.
            if single_buffer_weights:
                return pl.BlockSpec(shape, lambda b, qi: (0,) * len(shape),
                                    pipeline_mode=pl.Buffered(1))
            return pl.BlockSpec(shape, lambda b, qi: (0,) * len(shape))

        q_spec = pl.BlockSpec((1, tq, D), lambda b, qi: (b, qi, 0))
        kv_spec = pl.BlockSpec((1, Sk, D), lambda b, qi: (b, 0, 0))
        out_spec = pl.BlockSpec((1, tq, D), lambda b, qi: (b, qi, 0))
        mat_spec = const_spec((D, D))
        bias_spec = const_spec((1, D))

        grid_spec = pltpu.PrefetchScalarGridSpec(
            num_scalar_prefetch=0,
            grid=(B, nq),
            in_specs=[
                q_spec,                 # query (bf16)
                kv_spec,                # key   (bf16)
                kv_spec,                # value (bf16)
                mat_spec,               # Wq (bf16, pre-scaled)
                mat_spec,               # Wk (bf16)
                mat_spec,               # Wv (bf16)
                bias_spec,              # bq (f32, pre-scaled)
                bias_spec,              # bk
                bias_spec,              # bv
                mat_spec,               # Wf (bf16)
                bias_spec,              # bf
            ],
            out_specs=out_spec,
            scratch_shapes=[
                pltpu.VMEM((tq, D), jnp.bfloat16),   # qp
                pltpu.VMEM((Sk, D), jnp.bfloat16),   # kp (persists across q-tiles)
                pltpu.VMEM((Sk, D), jnp.bfloat16),   # vp (persists across q-tiles)
                pltpu.VMEM((tq, D), jnp.bfloat16),   # merged context
            ],
        )

        return pl.pallas_call(
            kernel,
            out_shape=jax.ShapeDtypeStruct((B, Sq, D), out_dtype),
            grid_spec=grid_spec,
            compiler_params=pltpu.CompilerParams(
                dimension_semantics=("parallel", qi_sem),
                vmem_limit_bytes=vmem_limit),
        )

    args = (q_in, k_in, v_in, wq, wk, wv, bq, bk, bv, wf, bf)
    try:
        return build(single_buffer_weights=True)(*args)
    except Exception:
        # pl.Buffered(1) single-buffering of the constant weight blocks may not
        # be supported on every jax/libtpu build; fall back to the default
        # double-buffered weight blocks (same semantics, slightly more VMEM).
        return build(single_buffer_weights=False)(*args)


def _reference_mha(key, value, query, params, head_count):
    """Pure-JAX fp32 reference mirroring the PyTorch forward (eval mode)."""
    B, Sk, D = key.shape
    dph = D // head_count
    q = query @ params["wq"] + params["bq"]
    k = key @ params["wk"] + params["bk"]
    v = value @ params["wv"] + params["bv"]

    def shape(x):
        return x.reshape(B, -1, head_count, dph).transpose(0, 2, 1, 3)

    q, k, v = shape(q), shape(k), shape(v)
    q = q / math.sqrt(dph)
    scores = q @ k.transpose(0, 1, 3, 2)
    attn = jax.nn.softmax(scores, axis=-1)
    ctx = (attn @ v).transpose(0, 2, 1, 3).reshape(B, -1, D)
    return ctx @ params["wf"] + params["bf"]


if __name__ == "__main__":
    batch = 2
    seq = 8
    model_dim = 256          # lane-aligned (multiple of 128)
    head_count = 2           # dim_per_head = 128 (lane-aligned head slices)

    root = jax.random.PRNGKey(0)
    keys = jax.random.split(root, 12)

    s = 1.0 / math.sqrt(model_dim)
    params = {
        "wq": jax.random.normal(keys[0], (model_dim, model_dim), jnp.float32) * s,
        "wk": jax.random.normal(keys[1], (model_dim, model_dim), jnp.float32) * s,
        "wv": jax.random.normal(keys[2], (model_dim, model_dim), jnp.float32) * s,
        "bq": jax.random.normal(keys[3], (1, model_dim), jnp.float32) * 0.1,
        "bk": jax.random.normal(keys[4], (1, model_dim), jnp.float32) * 0.1,
        "bv": jax.random.normal(keys[5], (1, model_dim), jnp.float32) * 0.1,
        "wf": jax.random.normal(keys[6], (model_dim, model_dim), jnp.float32) * s,
        "bf": jax.random.normal(keys[7], (1, model_dim), jnp.float32) * 0.1,
    }

    key_in = jax.random.normal(keys[8], (batch, seq, model_dim), jnp.float32)
    value_in = jax.random.normal(keys[9], (batch, seq, model_dim), jnp.float32)
    query_in = jax.random.normal(keys[10], (batch, seq, model_dim), jnp.float32)

    out = multi_headed_attention(key_in, value_in, query_in, params, head_count)
    out = jax.block_until_ready(out)

    ref = _reference_mha(key_in, value_in, query_in, params, head_count)
    assert out.shape == (batch, seq, model_dim)
    # bf16 MXU operands + approx reciprocal => looser tolerance vs fp32 ref.
    assert jnp.allclose(out, ref, atol=5e-2, rtol=5e-2), "mismatch vs reference"

    print("KERNEL_OK")
</pallas_src>

<mosaic_0001>
module attributes {stable_mosaic.version = 11 : i64} {
  func.func @kernel(%arg0: i32, %arg1: i32, %arg2: memref<1x8x256xbf16, #tpu.memory_space<vmem>>, %arg3: memref<1x8x256xbf16, #tpu.memory_space<vmem>>, %arg4: memref<1x8x256xbf16, #tpu.memory_space<vmem>>, %arg5: memref<256x256xbf16, #tpu.memory_space<vmem>>, %arg6: memref<256x256xbf16, #tpu.memory_space<vmem>>, %arg7: memref<256x256xbf16, #tpu.memory_space<vmem>>, %arg8: memref<1x256xf32, #tpu.memory_space<vmem>>, %arg9: memref<1x256xf32, #tpu.memory_space<vmem>>, %arg10: memref<1x256xf32, #tpu.memory_space<vmem>>, %arg11: memref<256x256xbf16, #tpu.memory_space<vmem>>, %arg12: memref<1x256xf32, #tpu.memory_space<vmem>>, %arg13: memref<1x8x256xf32, #tpu.memory_space<vmem>>, %arg14: memref<8x256xbf16, #tpu.memory_space<vmem>>, %arg15: memref<8x256xbf16, #tpu.memory_space<vmem>>, %arg16: memref<8x256xbf16, #tpu.memory_space<vmem>>, %arg17: memref<8x256xbf16, #tpu.memory_space<vmem>>) attributes {dimension_semantics = [#tpu.dimension_semantics<parallel>, #tpu.dimension_semantics<parallel>], iteration_bounds = array<i64: 2, 1>, scalar_prefetch = 0 : i64, scratch_operands = 4 : i64, tpu.core_type = #tpu.core_type<tc>, window_params = [{transform_indices = @transform_0, window_bounds = array<i64: 1, 8, 256>}, {transform_indices = @transform_1, window_bounds = array<i64: 1, 8, 256>}, {transform_indices = @transform_2, window_bounds = array<i64: 1, 8, 256>}, {pipeline_mode = #tpu.pipeline_mode<synchronous>, transform_indices = @transform_3, window_bounds = array<i64: 256, 256>}, {pipeline_mode = #tpu.pipeline_mode<synchronous>, transform_indices = @transform_4, window_bounds = array<i64: 256, 256>}, {pipeline_mode = #tpu.pipeline_mode<synchronous>, transform_indices = @transform_5, window_bounds = array<i64: 256, 256>}, {pipeline_mode = #tpu.pipeline_mode<synchronous>, transform_indices = @transform_6, window_bounds = array<i64: 1, 256>}, {pipeline_mode = #tpu.pipeline_mode<synchronous>, transform_indices = @transform_7, window_bounds = array<i64: 1, 256>}, {pipeline_mode = #tpu.pipeline_mode<synchronous>, transform_indices = @transform_8, window_bounds = array<i64: 1, 256>}, {pipeline_mode = #tpu.pipeline_mode<synchronous>, transform_indices = @transform_9, window_bounds = array<i64: 256, 256>}, {pipeline_mode = #tpu.pipeline_mode<synchronous>, transform_indices = @transform_10, window_bounds = array<i64: 1, 256>}, {transform_indices = @transform_11, window_bounds = array<i64: 1, 8, 256>}]} {
    %c0_i32 = arith.constant 0 : i32
    %0 = arith.cmpi eq, %arg1, %c0_i32 : i32
    %1 = arith.extui %0 : i1 to i32
    %c0_i32_0 = arith.constant 0 : i32
    %2 = arith.cmpi ne, %1, %c0_i32_0 : i32
    scf.if %2 {
      %c0_42 = arith.constant 0 : index
      %c0_43 = arith.constant 0 : index
      %c0_44 = arith.constant 0 : index
      %57 = vector.load %arg3[%c0_42, %c0_43, %c0_44] : memref<1x8x256xbf16, #tpu.memory_space<vmem>>, vector<1x8x256xbf16>
      %58 = vector.shape_cast %57 : vector<1x8x256xbf16> to vector<8x256xbf16>
      %c0_45 = arith.constant 0 : index
      %c0_46 = arith.constant 0 : index
      %59 = vector.load %arg6[%c0_45, %c0_46] : memref<256x256xbf16, #tpu.memory_space<vmem>>, vector<256x256xbf16>
      %cst_47 = arith.constant dense<0.000000e+00> : vector<8x256xf32>
      %60 = tpu.matmul %58, %59, %cst_47 {dimension_numbers = #tpu.dot_dimension_numbers<[1], [0], [0], [1], [0, 0, 1, 1], [], []>} : vector<8x256xbf16>, vector<256x256xbf16>, vector<8x256xf32> -> vector<8x256xf32>
      %c0_48 = arith.constant 0 : index
      %c0_49 = arith.constant 0 : index
      %61 = vector.load %arg9[%c0_48, %c0_49] : memref<1x256xf32, #tpu.memory_space<vmem>>, vector<1x256xf32>
      %62 = vector.broadcast %61 : vector<1x256xf32> to vector<8x256xf32>
      %63 = arith.addf %60, %62 : vector<8x256xf32>
      %64 = arith.truncf %63 : vector<8x256xf32> to vector<8x256xbf16>
      %c0_50 = arith.constant 0 : index
      %c0_51 = arith.constant 0 : index
      %65 = vector.load %arg15[%c0_50, %c0_51] : memref<8x256xbf16, #tpu.memory_space<vmem>>, vector<8x256xbf16>
      tpu.vector_store %arg15[%c0_50, %c0_51], %64 {strides = array<i32>} : memref<8x256xbf16, #tpu.memory_space<vmem>>, vector<8x256xbf16>,
      %c0_52 = arith.constant 0 : index
      %c0_53 = arith.constant 0 : index
      %c0_54 = arith.constant 0 : index
      %66 = vector.load %arg4[%c0_52, %c0_53, %c0_54] : memref<1x8x256xbf16, #tpu.memory_space<vmem>>, vector<1x8x256xbf16>
      %67 = vector.shape_cast %66 : vector<1x8x256xbf16> to vector<8x256xbf16>
      %c0_55 = arith.constant 0 : index
      %c0_56 = arith.constant 0 : index
      %68 = vector.load %arg7[%c0_55, %c0_56] : memref<256x256xbf16, #tpu.memory_space<vmem>>, vector<256x256xbf16>
      %cst_57 = arith.constant dense<0.000000e+00> : vector<8x256xf32>
      %69 = tpu.matmul %67, %68, %cst_57 {dimension_numbers = #tpu.dot_dimension_numbers<[1], [0], [0], [1], [0, 0, 1, 1], [], []>} : vector<8x256xbf16>, vector<256x256xbf16>, vector<8x256xf32> -> vector<8x256xf32>
      %c0_58 = arith.constant 0 : index
      %c0_59 = arith.constant 0 : index
      %70 = vector.load %arg10[%c0_58, %c0_59] : memref<1x256xf32, #tpu.memory_space<vmem>>, vector<1x256xf32>
      %71 = vector.broadcast %70 : vector<1x256xf32> to vector<8x256xf32>
      %72 = arith.addf %69, %71 : vector<8x256xf32>
      %73 = arith.truncf %72 : vector<8x256xf32> to vector<8x256xbf16>
      %c0_60 = arith.constant 0 : index
      %c0_61 = arith.constant 0 : index
      %74 = vector.load %arg16[%c0_60, %c0_61] : memref<8x256xbf16, #tpu.memory_space<vmem>>, vector<8x256xbf16>
      tpu.vector_store %arg16[%c0_60, %c0_61], %73 {strides = array<i32>} : memref<8x256xbf16, #tpu.memory_space<vmem>>, vector<8x256xbf16>,
    } else {
    }
    %c0 = arith.constant 0 : index
    %c0_1 = arith.constant 0 : index
    %c0_2 = arith.constant 0 : index
    %3 = vector.load %arg2[%c0, %c0_1, %c0_2] : memref<1x8x256xbf16, #tpu.memory_space<vmem>>, vector<1x8x256xbf16>
    %4 = vector.shape_cast %3 : vector<1x8x256xbf16> to vector<8x256xbf16>
    %c0_3 = arith.constant 0 : index
    %c0_4 = arith.constant 0 : index
    %5 = vector.load %arg5[%c0_3, %c0_4] : memref<256x256xbf16, #tpu.memory_space<vmem>>, vector<256x256xbf16>
    %cst = arith.constant dense<0.000000e+00> : vector<8x256xf32>
    %6 = tpu.matmul %4, %5, %cst {dimension_numbers = #tpu.dot_dimension_numbers<[1], [0], [0], [1], [0, 0, 1, 1], [], []>} : vector<8x256xbf16>, vector<256x256xbf16>, vector<8x256xf32> -> vector<8x256xf32>
    %c0_5 = arith.constant 0 : index
    %c0_6 = arith.constant 0 : index
    %7 = vector.load %arg8[%c0_5, %c0_6] : memref<1x256xf32, #tpu.memory_space<vmem>>, vector<1x256xf32>
    %8 = vector.broadcast %7 : vector<1x256xf32> to vector<8x256xf32>
    %9 = arith.addf %6, %8 : vector<8x256xf32>
    %10 = arith.truncf %9 : vector<8x256xf32> to vector<8x256xbf16>
    %c0_7 = arith.constant 0 : index
    %c0_8 = arith.constant 0 : index
    %11 = vector.load %arg14[%c0_7, %c0_8] : memref<8x256xbf16, #tpu.memory_space<vmem>>, vector<8x256xbf16>
    tpu.vector_store %arg14[%c0_7, %c0_8], %10 {strides = array<i32>} : memref<8x256xbf16, #tpu.memory_space<vmem>>, vector<8x256xbf16>,
    %c0_9 = arith.constant 0 : index
    %c0_10 = arith.constant 0 : index
    %12 = vector.load %arg14[%c0_9, %c0_10] : memref<8x256xbf16, #tpu.memory_space<vmem>>, vector<8x128xbf16>
    %c0_11 = arith.constant 0 : index
    %c0_12 = arith.constant 0 : index
    %13 = vector.load %arg15[%c0_11, %c0_12] : memref<8x256xbf16, #tpu.memory_space<vmem>>, vector<8x128xbf16>
    %c0_13 = arith.constant 0 : index
    %c0_14 = arith.constant 0 : index
    %14 = vector.load %arg16[%c0_13, %c0_14] : memref<8x256xbf16, #tpu.memory_space<vmem>>, vector<8x128xbf16>
    %cst_15 = arith.constant dense<0.000000e+00> : vector<8x8xf32>
    %15 = tpu.matmul %12, %13, %cst_15 {dimension_numbers = #tpu.dot_dimension_numbers<[1], [1], [0], [0], [0, 0, 1, 0], [], []>} : vector<8x128xbf16>, vector<8x128xbf16>, vector<8x8xf32> -> vector<8x8xf32>
    %cst_16 = arith.constant dense<0xFF800000> : vector<8xf32>
    %16 = vector.multi_reduction <maximumf>, %15, %cst_16 [1] : vector<8x8xf32> to vector<8xf32>
    %17 = vector.shape_cast %16 : vector<8xf32> to vector<8x1xf32>
    %18 = vector.broadcast %17 : vector<8x1xf32> to vector<8x8xf32>
    %19 = arith.subf %15, %18 : vector<8x8xf32>
    %20 = math.exp %19 : vector<8x8xf32>
    %cst_17 = arith.constant dense<0.000000e+00> : vector<8xf32>
    %21 = vector.multi_reduction <add>, %20, %cst_17 [1] : vector<8x8xf32> to vector<8xf32>
    %22 = vector.shape_cast %21 : vector<8xf32> to vector<8x1xf32>
    %23 = tpu.reciprocal %22 {approx = true} : vector<8x1xf32> -> vector<8x1xf32>
    %24 = vector.broadcast %23 : vector<8x1xf32> to vector<8x8xf32>
    %25 = arith.mulf %20, %24 : vector<8x8xf32>
    %26 = arith.truncf %25 : vector<8x8xf32> to vector<8x8xbf16>
    %cst_18 = arith.constant dense<0.000000e+00> : vector<8x128xf32>
    %27 = tpu.matmul %26, %14, %cst_18 {dimension_numbers = #tpu.dot_dimension_numbers<[1], [0], [0], [1], [0, 0, 1, 1], [], []>} : vector<8x8xbf16>, vector<8x128xbf16>, vector<8x128xf32> -> vector<8x128xf32>
    %28 = arith.truncf %27 : vector<8x128xf32> to vector<8x128xbf16>
    %c0_19 = arith.constant 0 : index
    %c0_20 = arith.constant 0 : index
    %29 = vector.load %arg17[%c0_19, %c0_20] : memref<8x256xbf16, #tpu.memory_space<vmem>>, vector<8x128xbf16>
    tpu.vector_store %arg17[%c0_19, %c0_20], %28 {strides = array<i32>} : memref<8x256xbf16, #tpu.memory_space<vmem>>, vector<8x128xbf16>,
    %c0_21 = arith.constant 0 : index
    %c128 = arith.constant 128 : index
    %30 = vector.load %arg14[%c0_21, %c128] : memref<8x256xbf16, #tpu.memory_space<vmem>>, vector<8x128xbf16>
    %c0_22 = arith.constant 0 : index
    %c128_23 = arith.constant 128 : index
    %31 = vector.load %arg15[%c0_22, %c128_23] : memref<8x256xbf16, #tpu.memory_space<vmem>>, vector<8x128xbf16>
    %c0_24 = arith.constant 0 : index
    %c128_25 = arith.constant 128 : index
    %32 = vector.load %arg16[%c0_24, %c128_25] : memref<8x256xbf16, #tpu.memory_space<vmem>>, vector<8x128xbf16>
    %cst_26 = arith.constant dense<0.000000e+00> : vector<8x8xf32>
    %33 = tpu.matmul %30, %31, %cst_26 {dimension_numbers = #tpu.dot_dimension_numbers<[1], [1], [0], [0], [0, 0, 1, 0], [], []>} : vector<8x128xbf16>, vector<8x128xbf16>, vector<8x8xf32> -> vector<8x8xf32>
    %cst_27 = arith.constant dense<0xFF800000> : vector<8xf32>
    %34 = vector.multi_reduction <maximumf>, %33, %cst_27 [1] : vector<8x8xf32> to vector<8xf32>
    %35 = vector.shape_cast %34 : vector<8xf32> to vector<8x1xf32>
    %36 = vector.broadcast %35 : vector<8x1xf32> to vector<8x8xf32>
    %37 = arith.subf %33, %36 : vector<8x8xf32>
    %38 = math.exp %37 : vector<8x8xf32>
    %cst_28 = arith.constant dense<0.000000e+00> : vector<8xf32>
    %39 = vector.multi_reduction <add>, %38, %cst_28 [1] : vector<8x8xf32> to vector<8xf32>
    %40 = vector.shape_cast %39 : vector<8xf32> to vector<8x1xf32>
    %41 = tpu.reciprocal %40 {approx = true} : vector<8x1xf32> -> vector<8x1xf32>
    %42 = vector.broadcast %41 : vector<8x1xf32> to vector<8x8xf32>
    %43 = arith.mulf %38, %42 : vector<8x8xf32>
    %44 = arith.truncf %43 : vector<8x8xf32> to vector<8x8xbf16>
    %cst_29 = arith.constant dense<0.000000e+00> : vector<8x128xf32>
    %45 = tpu.matmul %44, %32, %cst_29 {dimension_numbers = #tpu.dot_dimension_numbers<[1], [0], [0], [1], [0, 0, 1, 1], [], []>} : vector<8x8xbf16>, vector<8x128xbf16>, vector<8x128xf32> -> vector<8x128xf32>
    %46 = arith.truncf %45 : vector<8x128xf32> to vector<8x128xbf16>
    %c0_30 = arith.constant 0 : index
    %c128_31 = arith.constant 128 : index
    %47 = vector.load %arg17[%c0_30, %c128_31] : memref<8x256xbf16, #tpu.memory_space<vmem>>, vector<8x128xbf16>
    tpu.vector_store %arg17[%c0_30, %c128_31], %46 {strides = array<i32>} : memref<8x256xbf16, #tpu.memory_space<vmem>>, vector<8x128xbf16>,
    %c0_32 = arith.constant 0 : index
    %c0_33 = arith.constant 0 : index
    %48 = vector.load %arg17[%c0_32, %c0_33] : memref<8x256xbf16, #tpu.memory_space<vmem>>, vector<8x256xbf16>
    %c0_34 = arith.constant 0 : index
    %c0_35 = arith.constant 0 : index
    %49 = vector.load %arg11[%c0_34, %c0_35] : memref<256x256xbf16, #tpu.memory_space<vmem>>, vector<256x256xbf16>
    %cst_36 = arith.constant dense<0.000000e+00> : vector<8x256xf32>
    %50 = tpu.matmul %48, %49, %cst_36 {dimension_numbers = #tpu.dot_dimension_numbers<[1], [0], [0], [1], [0, 0, 1, 1], [], []>} : vector<8x256xbf16>, vector<256x256xbf16>, vector<8x256xf32> -> vector<8x256xf32>
    %c0_37 = arith.constant 0 : index
    %c0_38 = arith.constant 0 : index
    %51 = vector.load %arg12[%c0_37, %c0_38] : memref<1x256xf32, #tpu.memory_space<vmem>>, vector<1x256xf32>
    %52 = vector.broadcast %51 : vector<1x256xf32> to vector<8x256xf32>
    %53 = arith.addf %50, %52 : vector<8x256xf32>
    %c0_39 = arith.constant 0 : index
    %c0_40 = arith.constant 0 : index
    %c0_41 = arith.constant 0 : index
    %54 = vector.load %arg13[%c0_39, %c0_40, %c0_41] : memref<1x8x256xf32, #tpu.memory_space<vmem>>, vector<1x8x256xf32>
    %55 = vector.shape_cast %54 : vector<1x8x256xf32> to vector<8x256xf32>
    %56 = vector.shape_cast %53 : vector<8x256xf32> to vector<1x8x256xf32>
    tpu.vector_store %arg13[%c0_39, %c0_40, %c0_41], %56 {strides = array<i32>} : memref<1x8x256xf32, #tpu.memory_space<vmem>>, vector<1x8x256xf32>,
    return
  }
  func.func @transform_0(%arg0: i32, %arg1: i32) -> (i32, i32, i32) {
    %c0_i32 = arith.constant 0 : i32
    %c0_i32_0 = arith.constant 0 : i32
    return %arg0, %arg1, %c0_i32 : i32, i32, i32
  }
  func.func @transform_1(%arg0: i32, %arg1: i32) -> (i32, i32, i32) {
    %c0_i32 = arith.constant 0 : i32
    %c0_i32_0 = arith.constant 0 : i32
    %c0_i32_1 = arith.constant 0 : i32
    return %arg0, %c0_i32, %c0_i32_0 : i32, i32, i32
  }
  func.func @transform_2(%arg0: i32, %arg1: i32) -> (i32, i32, i32) {
    %c0_i32 = arith.constant 0 : i32
    %c0_i32_0 = arith.constant 0 : i32
    %c0_i32_1 = arith.constant 0 : i32
    return %arg0, %c0_i32, %c0_i32_0 : i32, i32, i32
  }
  func.func @transform_3(%arg0: i32, %arg1: i32) -> (i32, i32) {
    %c0_i32 = arith.constant 0 : i32
    %c0_i32_0 = arith.constant 0 : i32
    %c0_i32_1 = arith.constant 0 : i32
    return %c0_i32, %c0_i32_0 : i32, i32
  }
  func.func @transform_4(%arg0: i32, %arg1: i32) -> (i32, i32) {
    %c0_i32 = arith.constant 0 : i32
    %c0_i32_0 = arith.constant 0 : i32
    %c0_i32_1 = arith.constant 0 : i32
    return %c0_i32, %c0_i32_0 : i32, i32
  }
  func.func @transform_5(%arg0: i32, %arg1: i32) -> (i32, i32) {
    %c0_i32 = arith.constant 0 : i32
    %c0_i32_0 = arith.constant 0 : i32
    %c0_i32_1 = arith.constant 0 : i32
    return %c0_i32, %c0_i32_0 : i32, i32
  }
  func.func @transform_6(%arg0: i32, %arg1: i32) -> (i32, i32) {
    %c0_i32 = arith.constant 0 : i32
    %c0_i32_0 = arith.constant 0 : i32
    %c0_i32_1 = arith.constant 0 : i32
    return %c0_i32, %c0_i32_0 : i32, i32
  }
  func.func @transform_7(%arg0: i32, %arg1: i32) -> (i32, i32) {
    %c0_i32 = arith.constant 0 : i32
    %c0_i32_0 = arith.constant 0 : i32
    %c0_i32_1 = arith.constant 0 : i32
    return %c0_i32, %c0_i32_0 : i32, i32
  }
  func.func @transform_8(%arg0: i32, %arg1: i32) -> (i32, i32) {
    %c0_i32 = arith.constant 0 : i32
    %c0_i32_0 = arith.constant 0 : i32
    %c0_i32_1 = arith.constant 0 : i32
    return %c0_i32, %c0_i32_0 : i32, i32
  }
  func.func @transform_9(%arg0: i32, %arg1: i32) -> (i32, i32) {
    %c0_i32 = arith.constant 0 : i32
    %c0_i32_0 = arith.constant 0 : i32
    %c0_i32_1 = arith.constant 0 : i32
    return %c0_i32, %c0_i32_0 : i32, i32
  }
  func.func @transform_10(%arg0: i32, %arg1: i32) -> (i32, i32) {
    %c0_i32 = arith.constant 0 : i32
    %c0_i32_0 = arith.constant 0 : i32
    %c0_i32_1 = arith.constant 0 : i32
    return %c0_i32, %c0_i32_0 : i32, i32
  }
  func.func @transform_11(%arg0: i32, %arg1: i32) -> (i32, i32, i32) {
    %c0_i32 = arith.constant 0 : i32
    %c0_i32_0 = arith.constant 0 : i32
    return %arg0, %arg1, %c0_i32 : i32, i32, i32
  }
}

module attributes {stable_mosaic.version = 11 : i64} {
  func.func @kernel(%arg0: i32, %arg1: i32, %arg2: memref<1x8x256xbf16, #tpu.memory_space<vmem>>, %arg3: memref<1x8x256xbf16, #tpu.memory_space<vmem>>, %arg4: memref<1x8x256xbf16, #tpu.memory_space<vmem>>, %arg5: memref<256x256xbf16, #tpu.memory_space<vmem>>, %arg6: memref<256x256xbf16, #tpu.memory_space<vmem>>, %arg7: memref<256x256xbf16, #tpu.memory_space<vmem>>, %arg8: memref<1x256xf32, #tpu.memory_space<vmem>>, %arg9: memref<1x256xf32, #tpu.memory_space<vmem>>, %arg10: memref<1x256xf32, #tpu.memory_space<vmem>>, %arg11: memref<256x256xbf16, #tpu.memory_space<vmem>>, %arg12: memref<1x256xf32, #tpu.memory_space<vmem>>, %arg13: memref<1x8x256xf32, #tpu.memory_space<vmem>>, %arg14: memref<8x256xbf16, #tpu.memory_space<vmem>>, %arg15: memref<8x256xbf16, #tpu.memory_space<vmem>>, %arg16: memref<8x256xbf16, #tpu.memory_space<vmem>>, %arg17: memref<8x256xbf16, #tpu.memory_space<vmem>>) attributes {dimension_semantics = [#tpu.dimension_semantics<parallel>, #tpu.dimension_semantics<parallel>], iteration_bounds = array<i64: 2, 1>, scalar_prefetch = 0 : i64, scratch_operands = 4 : i64, tpu.core_type = #tpu.core_type<tc>, window_params = [{transform_indices = @transform_0, window_bounds = array<i64: 1, 8, 256>}, {transform_indices = @transform_1, window_bounds = array<i64: 1, 8, 256>}, {transform_indices = @transform_2, window_bounds = array<i64: 1, 8, 256>}, {pipeline_mode = #tpu.pipeline_mode<synchronous>, transform_indices = @transform_3, window_bounds = array<i64: 256, 256>}, {pipeline_mode = #tpu.pipeline_mode<synchronous>, transform_indices = @transform_4, window_bounds = array<i64: 256, 256>}, {pipeline_mode = #tpu.pipeline_mode<synchronous>, transform_indices = @transform_5, window_bounds = array<i64: 256, 256>}, {pipeline_mode = #tpu.pipeline_mode<synchronous>, transform_indices = @transform_6, window_bounds = array<i64: 1, 256>}, {pipeline_mode = #tpu.pipeline_mode<synchronous>, transform_indices = @transform_7, window_bounds = array<i64: 1, 256>}, {pipeline_mode = #tpu.pipeline_mode<synchronous>, transform_indices = @transform_8, window_bounds = array<i64: 1, 256>}, {pipeline_mode = #tpu.pipeline_mode<synchronous>, transform_indices = @transform_9, window_bounds = array<i64: 256, 256>}, {pipeline_mode = #tpu.pipeline_mode<synchronous>, transform_indices = @transform_10, window_bounds = array<i64: 1, 256>}, {transform_indices = @transform_11, window_bounds = array<i64: 1, 8, 256>}]} {
    %c0_i32 = arith.constant 0 : i32
    %0 = arith.cmpi eq, %arg1, %c0_i32 : i32
    %1 = arith.extui %0 : i1 to i32
    %c0_i32_0 = arith.constant 0 : i32
    %2 = arith.cmpi ne, %1, %c0_i32_0 : i32
    scf.if %2 {
      %c0_42 = arith.constant 0 : index
      %c0_43 = arith.constant 0 : index
      %c0_44 = arith.constant 0 : index
      %57 = vector.load %arg3[%c0_42, %c0_43, %c0_44] : memref<1x8x256xbf16, #tpu.memory_space<vmem>>, vector<1x8x256xbf16>
      %58 = vector.shape_cast %57 : vector<1x8x256xbf16> to vector<8x256xbf16>
      %c0_45 = arith.constant 0 : index
      %c0_46 = arith.constant 0 : index
      %59 = vector.load %arg6[%c0_45, %c0_46] : memref<256x256xbf16, #tpu.memory_space<vmem>>, vector<256x256xbf16>
      %cst_47 = arith.constant dense<0.000000e+00> : vector<8x256xf32>
      %60 = tpu.matmul %58, %59, %cst_47 {dimension_numbers = #tpu.dot_dimension_numbers<[1], [0], [0], [1], [0, 0, 1, 1], [], []>} : vector<8x256xbf16>, vector<256x256xbf16>, vector<8x256xf32> -> vector<8x256xf32>
      %c0_48 = arith.constant 0 : index
      %c0_49 = arith.constant 0 : index
      %61 = vector.load %arg9[%c0_48, %c0_49] : memref<1x256xf32, #tpu.memory_space<vmem>>, vector<1x256xf32>
      %62 = vector.broadcast %61 : vector<1x256xf32> to vector<8x256xf32>
      %63 = arith.addf %60, %62 : vector<8x256xf32>
      %64 = arith.truncf %63 : vector<8x256xf32> to vector<8x256xbf16>
      %c0_50 = arith.constant 0 : index
      %c0_51 = arith.constant 0 : index
      %65 = vector.load %arg15[%c0_50, %c0_51] : memref<8x256xbf16, #tpu.memory_space<vmem>>, vector<8x256xbf16>
      tpu.vector_store %arg15[%c0_50, %c0_51], %64 {strides = array<i32>} : memref<8x256xbf16, #tpu.memory_space<vmem>>, vector<8x256xbf16>,
      %c0_52 = arith.constant 0 : index
      %c0_53 = arith.constant 0 : index
      %c0_54 = arith.constant 0 : index
      %66 = vector.load %arg4[%c0_52, %c0_53, %c0_54] : memref<1x8x256xbf16, #tpu.memory_space<vmem>>, vector<1x8x256xbf16>
      %67 = vector.shape_cast %66 : vector<1x8x256xbf16> to vector<8x256xbf16>
      %c0_55 = arith.constant 0 : index
      %c0_56 = arith.constant 0 : index
      %68 = vector.load %arg7[%c0_55, %c0_56] : memref<256x256xbf16, #tpu.memory_space<vmem>>, vector<256x256xbf16>
      %cst_57 = arith.constant dense<0.000000e+00> : vector<8x256xf32>
      %69 = tpu.matmul %67, %68, %cst_57 {dimension_numbers = #tpu.dot_dimension_numbers<[1], [0], [0], [1], [0, 0, 1, 1], [], []>} : vector<8x256xbf16>, vector<256x256xbf16>, vector<8x256xf32> -> vector<8x256xf32>
      %c0_58 = arith.constant 0 : index
      %c0_59 = arith.constant 0 : index
      %70 = vector.load %arg10[%c0_58, %c0_59] : memref<1x256xf32, #tpu.memory_space<vmem>>, vector<1x256xf32>
      %71 = vector.broadcast %70 : vector<1x256xf32> to vector<8x256xf32>
      %72 = arith.addf %69, %71 : vector<8x256xf32>
      %73 = arith.truncf %72 : vector<8x256xf32> to vector<8x256xbf16>
      %c0_60 = arith.constant 0 : index
      %c0_61 = arith.constant 0 : index
      %74 = vector.load %arg16[%c0_60, %c0_61] : memref<8x256xbf16, #tpu.memory_space<vmem>>, vector<8x256xbf16>
      tpu.vector_store %arg16[%c0_60, %c0_61], %73 {strides = array<i32>} : memref<8x256xbf16, #tpu.memory_space<vmem>>, vector<8x256xbf16>,
    } else {
    }
    %c0 = arith.constant 0 : index
    %c0_1 = arith.constant 0 : index
    %c0_2 = arith.constant 0 : index
    %3 = vector.load %arg2[%c0, %c0_1, %c0_2] : memref<1x8x256xbf16, #tpu.memory_space<vmem>>, vector<1x8x256xbf16>
    %4 = vector.shape_cast %3 : vector<1x8x256xbf16> to vector<8x256xbf16>
    %c0_3 = arith.constant 0 : index
    %c0_4 = arith.constant 0 : index
    %5 = vector.load %arg5[%c0_3, %c0_4] : memref<256x256xbf16, #tpu.memory_space<vmem>>, vector<256x256xbf16>
    %cst = arith.constant dense<0.000000e+00> : vector<8x256xf32>
    %6 = tpu.matmul %4, %5, %cst {dimension_numbers = #tpu.dot_dimension_numbers<[1], [0], [0], [1], [0, 0, 1, 1], [], []>} : vector<8x256xbf16>, vector<256x256xbf16>, vector<8x256xf32> -> vector<8x256xf32>
    %c0_5 = arith.constant 0 : index
    %c0_6 = arith.constant 0 : index
    %7 = vector.load %arg8[%c0_5, %c0_6] : memref<1x256xf32, #tpu.memory_space<vmem>>, vector<1x256xf32>
    %8 = vector.broadcast %7 : vector<1x256xf32> to vector<8x256xf32>
    %9 = arith.addf %6, %8 : vector<8x256xf32>
    %10 = arith.truncf %9 : vector<8x256xf32> to vector<8x256xbf16>
    %c0_7 = arith.constant 0 : index
    %c0_8 = arith.constant 0 : index
    %11 = vector.load %arg14[%c0_7, %c0_8] : memref<8x256xbf16, #tpu.memory_space<vmem>>, vector<8x256xbf16>
    tpu.vector_store %arg14[%c0_7, %c0_8], %10 {strides = array<i32>} : memref<8x256xbf16, #tpu.memory_space<vmem>>, vector<8x256xbf16>,
    %c0_9 = arith.constant 0 : index
    %c0_10 = arith.constant 0 : index
    %12 = vector.load %arg14[%c0_9, %c0_10] : memref<8x256xbf16, #tpu.memory_space<vmem>>, vector<8x128xbf16>
    %c0_11 = arith.constant 0 : index
    %c0_12 = arith.constant 0 : index
    %13 = vector.load %arg15[%c0_11, %c0_12] : memref<8x256xbf16, #tpu.memory_space<vmem>>, vector<8x128xbf16>
    %c0_13 = arith.constant 0 : index
    %c0_14 = arith.constant 0 : index
    %14 = vector.load %arg16[%c0_13, %c0_14] : memref<8x256xbf16, #tpu.memory_space<vmem>>, vector<8x128xbf16>
    %cst_15 = arith.constant dense<0.000000e+00> : vector<8x8xf32>
    %15 = tpu.matmul %12, %13, %cst_15 {dimension_numbers = #tpu.dot_dimension_numbers<[1], [1], [0], [0], [0, 0, 1, 0], [], []>} : vector<8x128xbf16>, vector<8x128xbf16>, vector<8x8xf32> -> vector<8x8xf32>
    %cst_16 = arith.constant dense<0xFF800000> : vector<8xf32>
    %16 = vector.multi_reduction <maximumf>, %15, %cst_16 [1] : vector<8x8xf32> to vector<8xf32>
    %17 = vector.shape_cast %16 : vector<8xf32> to vector<8x1xf32>
    %18 = vector.broadcast %17 : vector<8x1xf32> to vector<8x8xf32>
    %19 = arith.subf %15, %18 : vector<8x8xf32>
    %20 = math.exp %19 : vector<8x8xf32>
    %cst_17 = arith.constant dense<0.000000e+00> : vector<8xf32>
    %21 = vector.multi_reduction <add>, %20, %cst_17 [1] : vector<8x8xf32> to vector<8xf32>
    %22 = vector.shape_cast %21 : vector<8xf32> to vector<8x1xf32>
    %23 = tpu.reciprocal %22 {approx = true} : vector<8x1xf32> -> vector<8x1xf32>
    %24 = vector.broadcast %23 : vector<8x1xf32> to vector<8x8xf32>
    %25 = arith.mulf %20, %24 : vector<8x8xf32>
    %26 = arith.truncf %25 : vector<8x8xf32> to vector<8x8xbf16>
    %cst_18 = arith.constant dense<0.000000e+00> : vector<8x128xf32>
    %27 = tpu.matmul %26, %14, %cst_18 {dimension_numbers = #tpu.dot_dimension_numbers<[1], [0], [0], [1], [0, 0, 1, 1], [], []>} : vector<8x8xbf16>, vector<8x128xbf16>, vector<8x128xf32> -> vector<8x128xf32>
    %28 = arith.truncf %27 : vector<8x128xf32> to vector<8x128xbf16>
    %c0_19 = arith.constant 0 : index
    %c0_20 = arith.constant 0 : index
    %29 = vector.load %arg17[%c0_19, %c0_20] : memref<8x256xbf16, #tpu.memory_space<vmem>>, vector<8x128xbf16>
    tpu.vector_store %arg17[%c0_19, %c0_20], %28 {strides = array<i32>} : memref<8x256xbf16, #tpu.memory_space<vmem>>, vector<8x128xbf16>,
    %c0_21 = arith.constant 0 : index
    %c128 = arith.constant 128 : index
    %30 = vector.load %arg14[%c0_21, %c128] : memref<8x256xbf16, #tpu.memory_space<vmem>>, vector<8x128xbf16>
    %c0_22 = arith.constant 0 : index
    %c128_23 = arith.constant 128 : index
    %31 = vector.load %arg15[%c0_22, %c128_23] : memref<8x256xbf16, #tpu.memory_space<vmem>>, vector<8x128xbf16>
    %c0_24 = arith.constant 0 : index
    %c128_25 = arith.constant 128 : index
    %32 = vector.load %arg16[%c0_24, %c128_25] : memref<8x256xbf16, #tpu.memory_space<vmem>>, vector<8x128xbf16>
    %cst_26 = arith.constant dense<0.000000e+00> : vector<8x8xf32>
    %33 = tpu.matmul %30, %31, %cst_26 {dimension_numbers = #tpu.dot_dimension_numbers<[1], [1], [0], [0], [0, 0, 1, 0], [], []>} : vector<8x128xbf16>, vector<8x128xbf16>, vector<8x8xf32> -> vector<8x8xf32>
    %cst_27 = arith.constant dense<0xFF800000> : vector<8xf32>
    %34 = vector.multi_reduction <maximumf>, %33, %cst_27 [1] : vector<8x8xf32> to vector<8xf32>
    %35 = vector.shape_cast %34 : vector<8xf32> to vector<8x1xf32>
    %36 = vector.broadcast %35 : vector<8x1xf32> to vector<8x8xf32>
    %37 = arith.subf %33, %36 : vector<8x8xf32>
    %38 = math.exp %37 : vector<8x8xf32>
    %cst_28 = arith.constant dense<0.000000e+00> : vector<8xf32>
    %39 = vector.multi_reduction <add>, %38, %cst_28 [1] : vector<8x8xf32> to vector<8xf32>
    %40 = vector.shape_cast %39 : vector<8xf32> to vector<8x1xf32>
    %41 = tpu.reciprocal %40 {approx = true} : vector<8x1xf32> -> vector<8x1xf32>
    %42 = vector.broadcast %41 : vector<8x1xf32> to vector<8x8xf32>
    %43 = arith.mulf %38, %42 : vector<8x8xf32>
    %44 = arith.truncf %43 : vector<8x8xf32> to vector<8x8xbf16>
    %cst_29 = arith.constant dense<0.000000e+00> : vector<8x128xf32>
    %45 = tpu.matmul %44, %32, %cst_29 {dimension_numbers = #tpu.dot_dimension_numbers<[1], [0], [0], [1], [0, 0, 1, 1], [], []>} : vector<8x8xbf16>, vector<8x128xbf16>, vector<8x128xf32> -> vector<8x128xf32>
    %46 = arith.truncf %45 : vector<8x128xf32> to vector<8x128xbf16>
    %c0_30 = arith.constant 0 : index
    %c128_31 = arith.constant 128 : index
    %47 = vector.load %arg17[%c0_30, %c128_31] : memref<8x256xbf16, #tpu.memory_space<vmem>>, vector<8x128xbf16>
    tpu.vector_store %arg17[%c0_30, %c128_31], %46 {strides = array<i32>} : memref<8x256xbf16, #tpu.memory_space<vmem>>, vector<8x128xbf16>,
    %c0_32 = arith.constant 0 : index
    %c0_33 = arith.constant 0 : index
    %48 = vector.load %arg17[%c0_32, %c0_33] : memref<8x256xbf16, #tpu.memory_space<vmem>>, vector<8x256xbf16>
    %c0_34 = arith.constant 0 : index
    %c0_35 = arith.constant 0 : index
    %49 = vector.load %arg11[%c0_34, %c0_35] : memref<256x256xbf16, #tpu.memory_space<vmem>>, vector<256x256xbf16>
    %cst_36 = arith.constant dense<0.000000e+00> : vector<8x256xf32>
    %50 = tpu.matmul %48, %49, %cst_36 {dimension_numbers = #tpu.dot_dimension_numbers<[1], [0], [0], [1], [0, 0, 1, 1], [], []>} : vector<8x256xbf16>, vector<256x256xbf16>, vector<8x256xf32> -> vector<8x256xf32>
    %c0_37 = arith.constant 0 : index
    %c0_38 = arith.constant 0 : index
    %51 = vector.load %arg12[%c0_37, %c0_38] : memref<1x256xf32, #tpu.memory_space<vmem>>, vector<1x256xf32>
    %52 = vector.broadcast %51 : vector<1x256xf32> to vector<8x256xf32>
    %53 = arith.addf %50, %52 : vector<8x256xf32>
    %c0_39 = arith.constant 0 : index
    %c0_40 = arith.constant 0 : index
    %c0_41 = arith.constant 0 : index
    %54 = vector.load %arg13[%c0_39, %c0_40, %c0_41] : memref<1x8x256xf32, #tpu.memory_space<vmem>>, vector<1x8x256xf32>
    %55 = vector.shape_cast %54 : vector<1x8x256xf32> to vector<8x256xf32>
    %56 = vector.shape_cast %53 : vector<8x256xf32> to vector<1x8x256xf32>
    tpu.vector_store %arg13[%c0_39, %c0_40, %c0_41], %56 {strides = array<i32>} : memref<1x8x256xf32, #tpu.memory_space<vmem>>, vector<1x8x256xf32>,
    return
  }
  func.func @transform_0(%arg0: i32, %arg1: i32) -> (i32, i32, i32) {
    %c0_i32 = arith.constant 0 : i32
    %c0_i32_0 = arith.constant 0 : i32
    return %arg0, %arg1, %c0_i32 : i32, i32, i32
  }
  func.func @transform_1(%arg0: i32, %arg1: i32) -> (i32, i32, i32) {
    %c0_i32 = arith.constant 0 : i32
    %c0_i32_0 = arith.constant 0 : i32
    %c0_i32_1 = arith.constant 0 : i32
    return %arg0, %c0_i32, %c0_i32_0 : i32, i32, i32
  }
  func.func @transform_2(%arg0: i32, %arg1: i32) -> (i32, i32, i32) {
    %c0_i32 = arith.constant 0 : i32
    %c0_i32_0 = arith.constant 0 : i32
    %c0_i32_1 = arith.constant 0 : i32
    return %arg0, %c0_i32, %c0_i32_0 : i32, i32, i32
  }
  func.func @transform_3(%arg0: i32, %arg1: i32) -> (i32, i32) {
    %c0_i32 = arith.constant 0 : i32
    %c0_i32_0 = arith.constant 0 : i32
    %c0_i32_1 = arith.constant 0 : i32
    return %c0_i32, %c0_i32_0 : i32, i32
  }
  func.func @transform_4(%arg0: i32, %arg1: i32) -> (i32, i32) {
    %c0_i32 = arith.constant 0 : i32
    %c0_i32_0 = arith.constant 0 : i32
    %c0_i32_1 = arith.constant 0 : i32
    return %c0_i32, %c0_i32_0 : i32, i32
  }
  func.func @transform_5(%arg0: i32, %arg1: i32) -> (i32, i32) {
    %c0_i32 = arith.constant 0 : i32
    %c0_i32_0 = arith.constant 0 : i32
    %c0_i32_1 = arith.constant 0 : i32
    return %c0_i32, %c0_i32_0 : i32, i32
  }
  func.func @transform_6(%arg0: i32, %arg1: i32) -> (i32, i32) {
    %c0_i32 = arith.constant 0 : i32
    %c0_i32_0 = arith.constant 0 : i32
    %c0_i32_1 = arith.constant 0 : i32
    return %c0_i32, %c0_i32_0 : i32, i32
  }
  func.func @transform_7(%arg0: i32, %arg1: i32) -> (i32, i32) {
    %c0_i32 = arith.constant 0 : i32
    %c0_i32_0 = arith.constant 0 : i32
    %c0_i32_1 = arith.constant 0 : i32
    return %c0_i32, %c0_i32_0 : i32, i32
  }
  func.func @transform_8(%arg0: i32, %arg1: i32) -> (i32, i32) {
    %c0_i32 = arith.constant 0 : i32
    %c0_i32_0 = arith.constant 0 : i32
    %c0_i32_1 = arith.constant 0 : i32
    return %c0_i32, %c0_i32_0 : i32, i32
  }
  func.func @transform_9(%arg0: i32, %arg1: i32) -> (i32, i32) {
    %c0_i32 = arith.constant 0 : i32
    %c0_i32_0 = arith.constant 0 : i32
    %c0_i32_1 = arith.constant 0 : i32
    return %c0_i32, %c0_i32_0 : i32, i32
  }
  func.func @transform_10(%arg0: i32, %arg1: i32) -> (i32, i32) {
    %c0_i32 = arith.constant 0 : i32
    %c0_i32_0 = arith.constant 0 : i32
    %c0_i32_1 = arith.constant 0 : i32
    return %c0_i32, %c0_i32_0 : i32, i32
  }
  func.func @transform_11(%arg0: i32, %arg1: i32) -> (i32, i32, i32) {
    %c0_i32 = arith.constant 0 : i32
    %c0_i32_0 = arith.constant 0 : i32
    return %arg0, %arg1, %c0_i32 : i32, i32, i32
  }
}

</mosaic_0001>

<llo_original>
// kernel: tpu_custom_call.1
$region0: #{tpu_custom_call.1}
  #allocation0 [shape = 'u32[]', space=smem, size = 0x4, offset = 0x4, fixed_abs, tag = 'smem constant byte address 0x4 - core index']
  #allocation1 [shape = 'u32[72,128]{1,0:T(1,128)}', space=vmem, size = 0x9000, scoped, tag = 'internal scratch']
  #allocation2 [shape = 'bf16[8,256]{1,0:T(8,128)(2,1)}', space=vmem, size = 0x1000, scoped, tag = 'scratch operand']
  #allocation3 [shape = 'bf16[8,256]{1,0:T(8,128)(2,1)}', space=vmem, size = 0x1000, scoped, tag = 'scratch operand']
  #allocation4 [shape = 'bf16[8,256]{1,0:T(8,128)(2,1)}', space=vmem, size = 0x1000, scoped, tag = 'scratch operand']
  #allocation5 [shape = 'bf16[8,256]{1,0:T(8,128)(2,1)}', space=vmem, size = 0x1000, scoped, tag = 'scratch operand']
  %s0 = inlined_call_operand.hbm [shape: bf16[2,8,256], index: 0, kind: input, shape index: {}]
  %s1 = inlined_call_operand.hbm [shape: bf16[2,8,256], index: 1, kind: input, shape index: {}]
  %s2 = inlined_call_operand.hbm [shape: bf16[2,8,256], index: 2, kind: input, shape index: {}]
  %s3 = inlined_call_operand.hbm [shape: bf16[256,256], index: 3, kind: input, shape index: {}]
  %s4 = inlined_call_operand.hbm [shape: bf16[256,256], index: 4, kind: input, shape index: {}]
  %s5 = inlined_call_operand.hbm [shape: bf16[256,256], index: 5, kind: input, shape index: {}]
  %s6 = inlined_call_operand.vmem [shape: f32[1,256], index: 6, kind: input, shape index: {}]
  %s7 = inlined_call_operand.vmem [shape: f32[1,256], index: 7, kind: input, shape index: {}]
  %s8 = inlined_call_operand.vmem [shape: f32[1,256], index: 8, kind: input, shape index: {}]
  %s9 = inlined_call_operand.hbm [shape: bf16[256,256], index: 9, kind: input, shape index: {}]
  %s10 = inlined_call_operand.vmem [shape: f32[1,256], index: 10, kind: input, shape index: {}]
  %s11 = inlined_call_operand.hbm [shape: f32[2,8,256], index: 11, kind: output, shape index: {}]
  %s12 = sld [smem:[#allocation0]]
  $region109: #{tpu_custom_call.1} parent=0
    _
  %s14 = ssub.s32 1, %s12
  %s15 = scalar_select 0, %s14, %s12
  $region1: #{tpu_custom_call.1} parent=0
    #allocation6 [shape = 'u8[8192]{0}', space=vmem, size = 0x2000, scoped, tag = 'input window, operand 0']
    #allocation7 [shape = 's32[2]{0}', space=sflag, size = 0x8, scoped, tag = 'scoped memory for tpu_custom_call.1']
    #allocation8 [shape = 's32[2]{0}', space=sflag, size = 0x8, scoped, tag = 'scoped memory for tpu_custom_call.1']
    #allocation9 [shape = 'u8[8192]{0}', space=vmem, size = 0x2000, scoped, tag = 'input window, operand 1']
    #allocation10 [shape = 's32[2]{0}', space=sflag, size = 0x8, scoped, tag = 'scoped memory for tpu_custom_call.1']
    #allocation11 [shape = 'u8[8192]{0}', space=vmem, size = 0x2000, scoped, tag = 'input window, operand 2']
    #allocation12 [shape = 'u8[131072]{0}', space=vmem, size = 0x20000, scoped, tag = 'input window, operand 3, single buffered']
    #allocation13 [shape = 's32[1]{0}', space=sflag, size = 0x4, scoped, tag = 'scoped memory for tpu_custom_call.1']
    #allocation14 [shape = 'u8[131072]{0}', space=vmem, size = 0x20000, scoped, tag = 'input window, operand 4, single buffered']
    #allocation15 [shape = 'u8[131072]{0}', space=vmem, size = 0x20000, scoped, tag = 'input window, operand 5, single buffered']
    #allocation16 [shape = 's32[1]{0}', space=sflag, size = 0x4, scoped, tag = 'scoped memory for tpu_custom_call.1']
    #allocation17 [shape = 'u8[131072]{0}', space=vmem, size = 0x20000, scoped, tag = 'input window, operand 9, single buffered']
    #allocation18 [shape = 'u8[16384]{0}', space=vmem, size = 0x4000, scoped, tag = 'output window, operand 0']
    %16 = vsyncpa [#allocation7], 0
    %s17 = scalar_lea.sflag [#allocation7], 1
    %18 = vsyncpa %s17, 0
    %19 = vsyncpa [#allocation10], 0
    %s20 = scalar_lea.sflag [#allocation10], 1
    %21 = vsyncpa %s20, 0
    %22 = vsyncpa [#allocation13], 0
    %23 = vsyncpa [#allocation16], 0
    %24 = vsyncpa [#allocation8], 0
    %s25 = scalar_lea.sflag [#allocation8], 1
    %26 = vsyncpa %s25, 0
    loop: start=0, step=1, limit=4
    $region2: #{tpu_custom_call.1} parent=1 // loop_pre_header
      _
    $region3: #{tpu_custom_call.1} parent=1 // loop_header
      %s28 = sphi 0, %s32
      %p29 = scmp.ge.s32.totalorder %s28, 4
      %s35 = sphi 0, %s47
      %s36 = sphi 0, %s43
      %s37 = sphi 0, %s35
      %s38 = sphi 0, %s36
      %s39 = sphi 0, %s37
      %s40 = sphi 0, %s38
      %s52 = sphi 0, %s54
      %s55 = sphi 0, %s52
      %s56 = sphi 0, %s55
      %s72 = sphi 0, %s56
      %s78 = sphi 0, %s80
      %s81 = sphi 0, %s78
      %s82 = sphi 0, %s81
      %s98 = sphi 0, %s82
      %s104 = sphi 0, %s106
      %s107 = sphi 0, %s104
      %s108 = sphi 0, %s107
      %s124 = sphi 0, %s108
      %s128 = sphi 0, %s128
      %s130 = sphi 0, %s128
      %s131 = sphi 0, %s130
      %s145 = sphi 0, %s131
      %s149 = sphi 0, %s149
      %s151 = sphi 0, %s149
      %s152 = sphi 0, %s151
      %s166 = sphi 0, %s152
      %s170 = sphi 0, %s170
      %s172 = sphi 0, %s170
      %s173 = sphi 0, %s172
      %s187 = sphi 0, %s173
      %s191 = sphi 0, %s191
      %s193 = sphi 0, %s191
      %s194 = sphi 0, %s193
      %s208 = sphi 0, %s194
      %s212 = sphi 0, %s212
      %s214 = sphi 0, %s212
      %s215 = sphi 0, %s214
      %s229 = sphi 0, %s215
      %s233 = sphi 0, %s233
      %s235 = sphi 0, %s233
      %s236 = sphi 0, %s235
      %s250 = sphi 0, %s236
      %s254 = sphi 0, %s254
      %s256 = sphi 0, %s254
      %s257 = sphi 0, %s256
      %s271 = sphi 0, %s257
      %s275 = sphi 0, %s275
      %s277 = sphi 0, %s275
      %s278 = sphi 0, %s277
      %s292 = sphi 0, %s278
      %s300 = sphi 0, %s302
      %s303 = sphi 0, %s300
      %s304 = sphi 0, %s303
      %s320 = sphi 0, %s304
    $region4: #{tpu_custom_call.1} parent=1 // loop_header_branch
      %31 = sbr.rel (%p29) target = $region8
    $region5: #{tpu_custom_call.1} parent=1 // loop_body
      %s33 = ssub.s32 %s28, 1
      %s34 = ssub.s32 %s28, 2
      %s41 = sadd.s32 1, %s36
      %p42 = scmp.ge.s32.totalorder %s41, 1
      %s43 = scalar_select %p42, 0, %s41
      %s44 = sadd.s32 1, %s35
      %s45 = scalar_select %p42, %s44, %s35
      %p46 = scmp.ge.s32.totalorder %s45, 2
      %s47 = scalar_select %p46, 0, %s45
      %s48 = ssub.s32 %s35, %s47
      %s49 = ssub.s32 %s36, %s43
      %s50 = sor.u32 %s48, %s49
      %p51 = scmp.eq.s32.totalorder %s50, 0
      %s53 = sadd.s32 %s52, 1
      %s54 = scalar_select %p51, %s52, %s53
      %p57 = pneg %p51
      %p58 = scmp.eq.s32.totalorder %s28, 1
      %p59 = por %p57, %p58
      %p60 = scmp.ne.s32.totalorder %s52, %s55
      %p61 = scmp.eq.s32.totalorder %s28, 0
      %p62 = por %p60, %p61
      %p63 = scmp.ne.s32.totalorder %s52, %s55
      %p64 = scmp.eq.s32.totalorder %s33, 1
      %p65 = por %p63, %p64
      %p66 = scmp.ne.s32.totalorder %s55, %s56
      %p67 = scmp.eq.s32.totalorder %s33, 0
      %p68 = por %p66, %p67
      %p69 = scmp.ne.s32.totalorder %s55, %s56
      %p70 = scmp.eq.s32.totalorder %s34, 1
      %p71 = por %p69, %p70
      %p73 = scmp.ne.s32.totalorder %s56, %s72
      %p74 = scmp.eq.s32.totalorder %s34, 0
      %p75 = por %p73, %p74
      %s76 = ssub.s32 %s35, %s47
      %p77 = scmp.eq.s32.totalorder %s76, 0
      %s79 = sadd.s32 %s78, 1
      %s80 = scalar_select %p77, %s78, %s79
      %p83 = pneg %p77
      %p84 = scmp.eq.s32.totalorder %s28, 1
      %p85 = por %p83, %p84
      %p86 = scmp.ne.s32.totalorder %s78, %s81
      %p87 = scmp.eq.s32.totalorder %s28, 0
      %p88 = por %p86, %p87
      %p89 = scmp.ne.s32.totalorder %s78, %s81
      %p90 = scmp.eq.s32.totalorder %s33, 1
      %p91 = por %p89, %p90
      %p92 = scmp.ne.s32.totalorder %s81, %s82
      %p93 = scmp.eq.s32.totalorder %s33, 0
      %p94 = por %p92, %p93
      %p95 = scmp.ne.s32.totalorder %s81, %s82
      %p96 = scmp.eq.s32.totalorder %s34, 1
      %p97 = por %p95, %p96
      %p99 = scmp.ne.s32.totalorder %s82, %s98
      %p100 = scmp.eq.s32.totalorder %s34, 0
      %p101 = por %p99, %p100
      %s102 = ssub.s32 %s35, %s47
      %p103 = scmp.eq.s32.totalorder %s102, 0
      %s105 = sadd.s32 %s104, 1
      %s106 = scalar_select %p103, %s104, %s105
      %p109 = pneg %p103
      %p110 = scmp.eq.s32.totalorder %s28, 1
      %p111 = por %p109, %p110
      %p112 = scmp.ne.s32.totalorder %s104, %s107
      %p113 = scmp.eq.s32.totalorder %s28, 0
      %p114 = por %p112, %p113
      %p115 = scmp.ne.s32.totalorder %s104, %s107
      %p116 = scmp.eq.s32.totalorder %s33, 1
      %p117 = por %p115, %p116
      %p118 = scmp.ne.s32.totalorder %s107, %s108
      %p119 = scmp.eq.s32.totalorder %s33, 0
      %p120 = por %p118, %p119
      %p121 = scmp.ne.s32.totalorder %s107, %s108
      %p122 = scmp.eq.s32.totalorder %s34, 1
      %p123 = por %p121, %p122
      %p125 = scmp.ne.s32.totalorder %s108, %s124
      %p126 = scmp.eq.s32.totalorder %s34, 0
      %p127 = por %p125, %p126
      %s129 = sadd.s32 %s128, 1
      %p132 = scmp.eq.s32.totalorder %s28, 1
      %p133 = scmp.ne.s32.totalorder %s128, %s130
      %p134 = scmp.eq.s32.totalorder %s28, 0
      %p135 = por %p133, %p134
      %p136 = scmp.ne.s32.totalorder %s128, %s130
      %p137 = scmp.eq.s32.totalorder %s33, 1
      %p138 = por %p136, %p137
      %p139 = scmp.ne.s32.totalorder %s130, %s131
      %p140 = scmp.eq.s32.totalorder %s33, 0
      %p141 = por %p139, %p140
      %p142 = scmp.ne.s32.totalorder %s130, %s131
      %p143 = scmp.eq.s32.totalorder %s34, 1
      %p144 = por %p142, %p143
      %p146 = scmp.ne.s32.totalorder %s131, %s145
      %p147 = scmp.eq.s32.totalorder %s34, 0
      %p148 = por %p146, %p147
      %s150 = sadd.s32 %s149, 1
      %p153 = scmp.eq.s32.totalorder %s28, 1
      %p154 = scmp.ne.s32.totalorder %s149, %s151
      %p155 = scmp.eq.s32.totalorder %s28, 0
      %p156 = por %p154, %p155
      %p157 = scmp.ne.s32.totalorder %s149, %s151
      %p158 = scmp.eq.s32.totalorder %s33, 1
      %p159 = por %p157, %p158
      %p160 = scmp.ne.s32.totalorder %s151, %s152
      %p161 = scmp.eq.s32.totalorder %s33, 0
      %p162 = por %p160, %p161
      %p163 = scmp.ne.s32.totalorder %s151, %s152
      %p164 = scmp.eq.s32.totalorder %s34, 1
      %p165 = por %p163, %p164
      %p167 = scmp.ne.s32.totalorder %s152, %s166
      %p168 = scmp.eq.s32.totalorder %s34, 0
      %p169 = por %p167, %p168
      %s171 = sadd.s32 %s170, 1
      %p174 = scmp.eq.s32.totalorder %s28, 1
      %p175 = scmp.ne.s32.totalorder %s170, %s172
      %p176 = scmp.eq.s32.totalorder %s28, 0
      %p177 = por %p175, %p176
      %p178 = scmp.ne.s32.totalorder %s170, %s172
      %p179 = scmp.eq.s32.totalorder %s33, 1
      %p180 = por %p178, %p179
      %p181 = scmp.ne.s32.totalorder %s172, %s173
      %p182 = scmp.eq.s32.totalorder %s33, 0
      %p183 = por %p181, %p182
      %p184 = scmp.ne.s32.totalorder %s172, %s173
      %p185 = scmp.eq.s32.totalorder %s34, 1
      %p186 = por %p184, %p185
      %p188 = scmp.ne.s32.totalorder %s173, %s187
      %p189 = scmp.eq.s32.totalorder %s34, 0
      %p190 = por %p188, %p189
      %s192 = sadd.s32 %s191, 1
      %p195 = scmp.eq.s32.totalorder %s28, 1
      %p196 = scmp.ne.s32.totalorder %s191, %s193
      %p197 = scmp.eq.s32.totalorder %s28, 0
      %p198 = por %p196, %p197
      %p199 = scmp.ne.s32.totalorder %s191, %s193
      %p200 = scmp.eq.s32.totalorder %s33, 1
      %p201 = por %p199, %p200
      %p202 = scmp.ne.s32.totalorder %s193, %s194
      %p203 = scmp.eq.s32.totalorder %s33, 0
      %p204 = por %p202, %p203
      %p205 = scmp.ne.s32.totalorder %s193, %s194
      %p206 = scmp.eq.s32.totalorder %s34, 1
      %p207 = por %p205, %p206
      %p209 = scmp.ne.s32.totalorder %s194, %s208
      %p210 = scmp.eq.s32.totalorder %s34, 0
      %p211 = por %p209, %p210
      %s213 = sadd.s32 %s212, 1
      %p216 = scmp.eq.s32.totalorder %s28, 1
      %p217 = scmp.ne.s32.totalorder %s212, %s214
      %p218 = scmp.eq.s32.totalorder %s28, 0
      %p219 = por %p217, %p218
      %p220 = scmp.ne.s32.totalorder %s212, %s214
      %p221 = scmp.eq.s32.totalorder %s33, 1
      %p222 = por %p220, %p221
      %p223 = scmp.ne.s32.totalorder %s214, %s215
      %p224 = scmp.eq.s32.totalorder %s33, 0
      %p225 = por %p223, %p224
      %p226 = scmp.ne.s32.totalorder %s214, %s215
      %p227 = scmp.eq.s32.totalorder %s34, 1
      %p228 = por %p226, %p227
      %p230 = scmp.ne.s32.totalorder %s215, %s229
      %p231 = scmp.eq.s32.totalorder %s34, 0
      %p232 = por %p230, %p231
      %s234 = sadd.s32 %s233, 1
      %p237 = scmp.eq.s32.totalorder %s28, 1
      %p238 = scmp.ne.s32.totalorder %s233, %s235
      %p239 = scmp.eq.s32.totalorder %s28, 0
      %p240 = por %p238, %p239
      %p241 = scmp.ne.s32.totalorder %s233, %s235
      %p242 = scmp.eq.s32.totalorder %s33, 1
      %p243 = por %p241, %p242
      %p244 = scmp.ne.s32.totalorder %s235, %s236
      %p245 = scmp.eq.s32.totalorder %s33, 0
      %p246 = por %p244, %p245
      %p247 = scmp.ne.s32.totalorder %s235, %s236
      %p248 = scmp.eq.s32.totalorder %s34, 1
      %p249 = por %p247, %p248
      %p251 = scmp.ne.s32.totalorder %s236, %s250
      %p252 = scmp.eq.s32.totalorder %s34, 0
      %p253 = por %p251, %p252
      %s255 = sadd.s32 %s254, 1
      %p258 = scmp.eq.s32.totalorder %s28, 1
      %p259 = scmp.ne.s32.totalorder %s254, %s256
      %p260 = scmp.eq.s32.totalorder %s28, 0
      %p261 = por %p259, %p260
      %p262 = scmp.ne.s32.totalorder %s254, %s256
      %p263 = scmp.eq.s32.totalorder %s33, 1
      %p264 = por %p262, %p263
      %p265 = scmp.ne.s32.totalorder %s256, %s257
      %p266 = scmp.eq.s32.totalorder %s33, 0
      %p267 = por %p265, %p266
      %p268 = scmp.ne.s32.totalorder %s256, %s257
      %p269 = scmp.eq.s32.totalorder %s34, 1
      %p270 = por %p268, %p269
      %p272 = scmp.ne.s32.totalorder %s257, %s271
      %p273 = scmp.eq.s32.totalorder %s34, 0
      %p274 = por %p272, %p273
      %s276 = sadd.s32 %s275, 1
      %p279 = scmp.eq.s32.totalorder %s28, 1
      %p280 = scmp.ne.s32.totalorder %s275, %s277
      %p281 = scmp.eq.s32.totalorder %s28, 0
      %p282 = por %p280, %p281
      %p283 = scmp.ne.s32.totalorder %s275, %s277
      %p284 = scmp.eq.s32.totalorder %s33, 1
      %p285 = por %p283, %p284
      %p286 = scmp.ne.s32.totalorder %s277, %s278
      %p287 = scmp.eq.s32.totalorder %s33, 0
      %p288 = por %p286, %p287
      %p289 = scmp.ne.s32.totalorder %s277, %s278
      %p290 = scmp.eq.s32.totalorder %s34, 1
      %p291 = por %p289, %p290
      %p293 = scmp.ne.s32.totalorder %s278, %s292
      %p294 = scmp.eq.s32.totalorder %s34, 0
      %p295 = por %p293, %p294
      %s296 = ssub.s32 %s35, %s47
      %s297 = ssub.s32 %s36, %s43
      %s298 = sor.u32 %s296, %s297
      %p299 = scmp.eq.s32.totalorder %s298, 0
      %s301 = sadd.s32 %s300, 1
      %s302 = scalar_select %p299, %s300, %s301
      %p305 = pneg %p299
      %p306 = scmp.eq.s32.totalorder %s28, 1
      %p307 = por %p305, %p306
      %p308 = scmp.ne.s32.totalorder %s300, %s303
      %p309 = scmp.eq.s32.totalorder %s28, 0
      %p310 = por %p308, %p309
      %p311 = scmp.ne.s32.totalorder %s300, %s303
      %p312 = scmp.eq.s32.totalorder %s33, 1
      %p313 = por %p311, %p312
      %p314 = scmp.ne.s32.totalorder %s303, %s304
      %p315 = scmp.eq.s32.totalorder %s33, 0
      %p316 = por %p314, %p315
      %p317 = scmp.ne.s32.totalorder %s303, %s304
      %p318 = scmp.eq.s32.totalorder %s34, 1
      %p319 = por %p317, %p318
      %p321 = scmp.ne.s32.totalorder %s304, %s320
      %p322 = scmp.eq.s32.totalorder %s34, 0
      %p323 = por %p321, %p322
      %p324 = scmp.le.s32.totalorder 1, %s28
      %p325 = scmp.lt.s32.totalorder %s28, 3
      %p326 = pnand %p324, %p325
      %p327 = pneg %p326
      // Predicated region
      $region9: #{tpu_custom_call.1} parent=5 // pred_check
        _
      $region10: #{tpu_custom_call.1} parent=5 // pred_check_branch
        %329 = sbr.rel (%p326) target = $region12
      $region11: #{tpu_custom_call.1} parent=5 // pred_region
        %s330 = ssub.s32 %s28, 1
        // Predicated region
        $region13: #{tpu_custom_call.1} parent=11 // pred_check
          %p331 = pneg %p141
        $region14: #{tpu_custom_call.1} parent=11 // pred_check_branch
          %333 = sbr.rel (%p331) target = $region16
        $region15: #{tpu_custom_call.1} parent=11 // pred_region
          %335 = vsyncadd [#allocation13], 0
          %s336 = sshll.u32 %s3, 4
          %s337 = int_to_ptr.hbm [resolvable:$true] %s336
          %s338 = sshll.u32 [#allocation12], 4
          %s339 = int_to_ptr.vmem [resolvable:$true] %s338
          %344 = dma.hbm_to_vmem [thread:$0]  %s337, 4096, %s339, [#allocation13], 128, 128, 8
        $region16: #{tpu_custom_call.1} parent=11 // pred_fallthru
          _
        // Predicated region
        $region17: #{tpu_custom_call.1} parent=11 // pred_check
          %p345 = pneg %p162
        $region18: #{tpu_custom_call.1} parent=11 // pred_check_branch
          %347 = sbr.rel (%p345) target = $region20
        $region19: #{tpu_custom_call.1} parent=11 // pred_region
          %349 = vsyncadd [#allocation13], 0
          %s350 = sshll.u32 %s4, 4
          %s351 = int_to_ptr.hbm [resolvable:$true] %s350
          %s352 = sshll.u32 [#allocation14], 4
          %s353 = int_to_ptr.vmem [resolvable:$true] %s352
          %358 = dma.hbm_to_vmem [thread:$0]  %s351, 4096, %s353, [#allocation13], 128, 128, 8
        $region20: #{tpu_custom_call.1} parent=11 // pred_fallthru
          _
        // Predicated region
        $region21: #{tpu_custom_call.1} parent=11 // pred_check
          %p359 = pneg %p183
        $region22: #{tpu_custom_call.1} parent=11 // pred_check_branch
          %361 = sbr.rel (%p359) target = $region24
        $region23: #{tpu_custom_call.1} parent=11 // pred_region
          %363 = vsyncadd [#allocation16], 0
          %s364 = sshll.u32 %s5, 4
          %s365 = int_to_ptr.hbm [resolvable:$true] %s364
          %s366 = sshll.u32 [#allocation15], 4
          %s367 = int_to_ptr.vmem [resolvable:$true] %s366
          %372 = dma.hbm_to_vmem [thread:$0]  %s365, 4096, %s367, [#allocation16], 128, 128, 8
        $region24: #{tpu_custom_call.1} parent=11 // pred_fallthru
          _
        // Predicated region
        $region25: #{tpu_custom_call.1} parent=11 // pred_check
          %p373 = pneg %p204
        $region26: #{tpu_custom_call.1} parent=11 // pred_check_branch
          %375 = sbr.rel (%p373) target = $region28
        $region27: #{tpu_custom_call.1} parent=11 // pred_region
          _
        $region28: #{tpu_custom_call.1} parent=11 // pred_fallthru
          _
        // Predicated region
        $region29: #{tpu_custom_call.1} parent=11 // pred_check
          %p376 = pneg %p225
        $region30: #{tpu_custom_call.1} parent=11 // pred_check_branch
          %378 = sbr.rel (%p376) target = $region32
        $region31: #{tpu_custom_call.1} parent=11 // pred_region
          _
        $region32: #{tpu_custom_call.1} parent=11 // pred_fallthru
          _
        // Predicated region
        $region33: #{tpu_custom_call.1} parent=11 // pred_check
          %p379 = pneg %p246
        $region34: #{tpu_custom_call.1} parent=11 // pred_check_branch
          %381 = sbr.rel (%p379) target = $region36
        $region35: #{tpu_custom_call.1} parent=11 // pred_region
          _
        $region36: #{tpu_custom_call.1} parent=11 // pred_fallthru
          _
        // Predicated region
        $region37: #{tpu_custom_call.1} parent=11 // pred_check
          %p382 = pneg %p267
        $region38: #{tpu_custom_call.1} parent=11 // pred_check_branch
          %384 = sbr.rel (%p382) target = $region40
        $region39: #{tpu_custom_call.1} parent=11 // pred_region
          %386 = vsyncadd [#allocation16], 0
          %s387 = sshll.u32 %s9, 4
          %s388 = int_to_ptr.hbm [resolvable:$true] %s387
          %s389 = sshll.u32 [#allocation17], 4
          %s390 = int_to_ptr.vmem [resolvable:$true] %s389
          %395 = dma.hbm_to_vmem [thread:$0]  %s388, 4096, %s390, [#allocation16], 128, 128, 8
        $region40: #{tpu_custom_call.1} parent=11 // pred_fallthru
          _
        // Predicated region
        $region41: #{tpu_custom_call.1} parent=11 // pred_check
          %p396 = pneg %p288
        $region42: #{tpu_custom_call.1} parent=11 // pred_check_branch
          %398 = sbr.rel (%p396) target = $region44
        $region43: #{tpu_custom_call.1} parent=11 // pred_region
          _
        $region44: #{tpu_custom_call.1} parent=11 // pred_fallthru
          _
      $region12: #{tpu_custom_call.1} parent=5 // pred_fallthru
        _
      %p399 = scmp.lt.s32.totalorder %s28, 2
      // Predicated region
      $region45: #{tpu_custom_call.1} parent=5 // pred_check
        %p400 = pneg %p399
      $region46: #{tpu_custom_call.1} parent=5 // pred_check_branch
        %402 = sbr.rel (%p400) target = $region48
      $region47: #{tpu_custom_call.1} parent=5 // pred_region
        // Predicated region
        $region49: #{tpu_custom_call.1} parent=47 // pred_check
          %p403 = pneg %p62
        $region50: #{tpu_custom_call.1} parent=47 // pred_check_branch
          %405 = sbr.rel (%p403) target = $region52
        $region51: #{tpu_custom_call.1} parent=47 // pred_region
          %s406 = sand.u32 %s52, 1
          %s407 = scalar_lea.sflag [#allocation7], %s406
          %s408 = sand.u32 %s52, 1
          %s409 = smul.addr %s408, 8
          %s410 = scalar_lea.vmem [#allocation6], %s409
          %412 = vsyncadd %s407, 0
          %s413 = smul.addr %s36, 2
          %s414 = smul.addr %s35, 2
          %s415 = sadd.s32 %s413, %s414
          %s416 = smul.addr %s415, 4
          %s417 = scalar_lea.hbm %s0, %s416
          %s419 = sshll.u32 %s417, 4
          %s420 = int_to_ptr.hbm [resolvable:$true] %s419
          %s421 = sshll.u32 %s410, 4
          %s422 = int_to_ptr.vmem [resolvable:$true] %s421
          %424 = dma.hbm_to_vmem [thread:$0]  %s420, 128, %s422, %s407
        $region52: #{tpu_custom_call.1} parent=47 // pred_fallthru
          _
        // Predicated region
        $region53: #{tpu_custom_call.1} parent=47 // pred_check
          %p425 = pneg %p88
        $region54: #{tpu_custom_call.1} parent=47 // pred_check_branch
          %427 = sbr.rel (%p425) target = $region56
        $region55: #{tpu_custom_call.1} parent=47 // pred_region
          %s428 = sand.u32 %s28, 1
          %s429 = scalar_lea.sflag [#allocation10], %s428
          %s430 = sand.u32 %s78, 1
          %s431 = smul.addr %s430, 8
          %s432 = scalar_lea.vmem [#allocation9], %s431
          %434 = vsyncadd %s429, 0
          %s435 = smul.addr %s35, 2
          %s436 = smul.addr %s435, 4
          %s437 = scalar_lea.hbm %s1, %s436
          %s439 = sshll.u32 %s437, 4
          %s440 = int_to_ptr.hbm [resolvable:$true] %s439
          %s441 = sshll.u32 %s432, 4
          %s442 = int_to_ptr.vmem [resolvable:$true] %s441
          %444 = dma.hbm_to_vmem [thread:$0]  %s440, 128, %s442, %s429
        $region56: #{tpu_custom_call.1} parent=47 // pred_fallthru
          _
        // Predicated region
        $region57: #{tpu_custom_call.1} parent=47 // pred_check
          %p445 = pneg %p114
        $region58: #{tpu_custom_call.1} parent=47 // pred_check_branch
          %447 = sbr.rel (%p445) target = $region60
        $region59: #{tpu_custom_call.1} parent=47 // pred_region
          %s448 = sand.u32 %s28, 1
          %s449 = scalar_lea.sflag [#allocation10], %s448
          %s450 = sand.u32 %s104, 1
          %s451 = smul.addr %s450, 8
          %s452 = scalar_lea.vmem [#allocation11], %s451
          %454 = vsyncadd %s449, 0
          %s455 = smul.addr %s35, 2
          %s456 = smul.addr %s455, 4
          %s457 = scalar_lea.hbm %s2, %s456
          %s459 = sshll.u32 %s457, 4
          %s460 = int_to_ptr.hbm [resolvable:$true] %s459
          %s461 = sshll.u32 %s452, 4
          %s462 = int_to_ptr.vmem [resolvable:$true] %s461
          %464 = dma.hbm_to_vmem [thread:$0]  %s460, 128, %s462, %s449
        $region60: #{tpu_custom_call.1} parent=47 // pred_fallthru
          _
      $region48: #{tpu_custom_call.1} parent=5 // pred_fallthru
        _
      %p465 = scmp.le.s32.totalorder 1, %s28
      %p466 = scmp.lt.s32.totalorder %s28, 3
      %p467 = pnand %p465, %p466
      %p468 = pneg %p467
      // Predicated region
      $region61: #{tpu_custom_call.1} parent=5 // pred_check
        _
      $region62: #{tpu_custom_call.1} parent=5 // pred_check_branch
        %470 = sbr.rel (%p467) target = $region64
      $region63: #{tpu_custom_call.1} parent=5 // pred_region
        %s471 = ssub.s32 %s28, 1
        %s472 = sand.u32 %s55, 1
        %s473 = scalar_lea.sflag [#allocation7], %s472
        %s474 = sand.u32 %s55, 1
        %s475 = smul.addr %s474, 8
        %s476 = scalar_lea.vmem [#allocation6], %s475
        // Predicated region
        $region65: #{tpu_custom_call.1} parent=63 // pred_check
          %p477 = pneg %p68
        $region66: #{tpu_custom_call.1} parent=63 // pred_check_branch
          %479 = sbr.rel (%p477) target = $region68
        $region67: #{tpu_custom_call.1} parent=63 // pred_region
          %481 = dma.done %s473, 128
        $region68: #{tpu_custom_call.1} parent=63 // pred_fallthru
          _
        %s482 = sand.u32 %s33, 1
        %s483 = scalar_lea.sflag [#allocation10], %s482
        %s484 = sand.u32 %s81, 1
        %s485 = smul.addr %s484, 8
        %s486 = scalar_lea.vmem [#allocation9], %s485
        // Predicated region
        $region69: #{tpu_custom_call.1} parent=63 // pred_check
          %p487 = pneg %p94
        $region70: #{tpu_custom_call.1} parent=63 // pred_check_branch
          %489 = sbr.rel (%p487) target = $region72
        $region71: #{tpu_custom_call.1} parent=63 // pred_region
          %491 = dma.done %s483, 128
        $region72: #{tpu_custom_call.1} parent=63 // pred_fallthru
          _
        %s492 = sand.u32 %s33, 1
        %s493 = scalar_lea.sflag [#allocation10], %s492
        %s494 = sand.u32 %s107, 1
        %s495 = smul.addr %s494, 8
        %s496 = scalar_lea.vmem [#allocation11], %s495
        // Predicated region
        $region73: #{tpu_custom_call.1} parent=63 // pred_check
          %p497 = pneg %p120
        $region74: #{tpu_custom_call.1} parent=63 // pred_check_branch
          %499 = sbr.rel (%p497) target = $region76
        $region75: #{tpu_custom_call.1} parent=63 // pred_region
          %501 = dma.done %s493, 128
        $region76: #{tpu_custom_call.1} parent=63 // pred_fallthru
          _
        // Predicated region
        $region77: #{tpu_custom_call.1} parent=63 // pred_check
          %p502 = pneg %p141
        $region78: #{tpu_custom_call.1} parent=63 // pred_check_branch
          %504 = sbr.rel (%p502) target = $region80
        $region79: #{tpu_custom_call.1} parent=63 // pred_region
          %506 = dma.done [#allocation13], 4096
        $region80: #{tpu_custom_call.1} parent=63 // pred_fallthru
          _
        // Predicated region
        $region81: #{tpu_custom_call.1} parent=63 // pred_check
          %p507 = pneg %p162
        $region82: #{tpu_custom_call.1} parent=63 // pred_check_branch
          %509 = sbr.rel (%p507) target = $region84
        $region83: #{tpu_custom_call.1} parent=63 // pred_region
          %511 = dma.done [#allocation13], 4096
        $region84: #{tpu_custom_call.1} parent=63 // pred_fallthru
          _
        // Predicated region
        $region85: #{tpu_custom_call.1} parent=63 // pred_check
          %p512 = pneg %p183
        $region86: #{tpu_custom_call.1} parent=63 // pred_check_branch
          %514 = sbr.rel (%p512) target = $region88
        $region87: #{tpu_custom_call.1} parent=63 // pred_region
          %516 = dma.done [#allocation16], 4096
        $region88: #{tpu_custom_call.1} parent=63 // pred_fallthru
          _
        // Predicated region
        $region89: #{tpu_custom_call.1} parent=63 // pred_check
          %p517 = pneg %p267
        $region90: #{tpu_custom_call.1} parent=63 // pred_check_branch
          %519 = sbr.rel (%p517) target = $region92
        $region91: #{tpu_custom_call.1} parent=63 // pred_region
          %521 = dma.done [#allocation16], 4096
        $region92: #{tpu_custom_call.1} parent=63 // pred_fallthru
          _
        %s522 = sand.u32 %s55, 1
        %s523 = scalar_lea.sflag [#allocation7], %s522
        %s524 = sand.u32 %s55, 1
        %s525 = smul.addr %s524, 8
        %s526 = scalar_lea.vmem [#allocation6], %s525
        %p527 = pneg %p68
        %p528 = pneg %p65
        %s529 = sand.u32 %s33, 1
        %s530 = scalar_lea.sflag [#allocation10], %s529
        %s531 = sand.u32 %s81, 1
        %s532 = smul.addr %s531, 8
        %s533 = scalar_lea.vmem [#allocation9], %s532
        %p534 = pneg %p94
        %p535 = pneg %p91
        %s536 = sand.u32 %s33, 1
        %s537 = scalar_lea.sflag [#allocation10], %s536
        %s538 = sand.u32 %s107, 1
        %s539 = smul.addr %s538, 8
        %s540 = scalar_lea.vmem [#allocation11], %s539
        %p541 = pneg %p120
        %p542 = pneg %p117
        %p543 = pneg %p141
        %p544 = pneg %p138
        %p545 = pneg %p162
        %p546 = pneg %p159
        %p547 = pneg %p183
        %p548 = pneg %p180
        %p549 = pneg %p204
        %p550 = pneg %p201
        %p551 = pneg %p225
        %p552 = pneg %p222
        %p553 = pneg %p246
        %p554 = pneg %p243
        %p555 = pneg %p267
        %p556 = pneg %p264
        %p557 = pneg %p288
        %p558 = pneg %p285
        %p559 = pneg %p316
        %p560 = pneg %p313
        %s561 = sand.u32 %s303, 1
        %s562 = scalar_lea.sflag [#allocation8], %s561
        %s563 = sand.u32 %s303, 1
        %s564 = smul.addr %s563, 16
        %s565 = scalar_lea.vmem [#allocation18], %s564
        %p567 = scmp.eq.s32.totalorder %s38, 0
        // Predicated region
        $region93: #{tpu_custom_call.1} parent=63 // pred_check
          %p568 = pneg %p567
        $region94: #{tpu_custom_call.1} parent=63 // pred_check_branch
          %570 = sbr.rel (%p568) target = $region96
        $region95: #{tpu_custom_call.1} parent=63 // pred_region
          %v571 = vld [vmem:[%s486] sm:$0xff]
          %v572 = vld [vmem:[#allocation14] sm:$0xff]
          %v573 = vld [vmem:[#allocation14 + $0x8] sm:$0xff]
          %v574 = vld [vmem:[#allocation14 + $0x10] sm:$0xff]
          %v575 = vld [vmem:[#allocation14 + $0x18] sm:$0xff]
          %v576 = vld [vmem:[#allocation14 + $0x20] sm:$0xff]
          %v577 = vld [vmem:[#allocation14 + $0x28] sm:$0xff]
          %v578 = vld [vmem:[#allocation14 + $0x30] sm:$0xff]
          %v579 = vld [vmem:[#allocation14 + $0x38] sm:$0xff]
          %v580 = vld [vmem:[#allocation14 + $0x40] sm:$0xff]
          %v581 = vld [vmem:[#allocation14 + $0x48] sm:$0xff]
          %v582 = vld [vmem:[#allocation14 + $0x50] sm:$0xff]
          %v583 = vld [vmem:[#allocation14 + $0x58] sm:$0xff]
          %v584 = vld [vmem:[#allocation14 + $0x60] sm:$0xff]
          %v585 = vld [vmem:[#allocation14 + $0x68] sm:$0xff]
          %v586 = vld [vmem:[#allocation14 + $0x70] sm:$0xff]
          %v587 = vld [vmem:[#allocation14 + $0x78] sm:$0xff]
          %v588 = vld [vmem:[#allocation14 + $0x80] sm:$0xff]
          %v589 = vld [vmem:[#allocation14 + $0x88] sm:$0xff]
          %v590 = vld [vmem:[#allocation14 + $0x90] sm:$0xff]
          %v591 = vld [vmem:[#allocation14 + $0x98] sm:$0xff]
          %v592 = vld [vmem:[#allocation14 + $0xa0] sm:$0xff]
          %v593 = vld [vmem:[#allocation14 + $0xa8] sm:$0xff]
          %v594 = vld [vmem:[#allocation14 + $0xb0] sm:$0xff]
          %v595 = vld [vmem:[#allocation14 + $0xb8] sm:$0xff]
          %v596 = vld [vmem:[#allocation14 + $0xc0] sm:$0xff]
          %v597 = vld [vmem:[#allocation14 + $0xc8] sm:$0xff]
          %v598 = vld [vmem:[#allocation14 + $0xd0] sm:$0xff]
          %v599 = vld [vmem:[#allocation14 + $0xd8] sm:$0xff]
          %v600 = vld [vmem:[#allocation14 + $0xe0] sm:$0xff]
          %v601 = vld [vmem:[#allocation14 + $0xe8] sm:$0xff]
          %v602 = vld [vmem:[#allocation14 + $0xf0] sm:$0xff]
          %v603 = vld [vmem:[#allocation14 + $0xf8] sm:$0xff]
          %v604 = vld [vmem:[%s7] sm:$0x3]
          %v606 = vperm.slane %v604, 0
          %v607 = vperm.slane %v604, 1
          %v611 = vunpack.c.l.b16 %v571
          %v612 = vunpack.c.h.b16 %v571
          %v613 = vpack.c.b16 %v611, %v611
          %v614 = vpack.c.b16 %v612, %v612
          %v649 = vunpack.c.l.b16 %v572
          %v650 = vunpack.c.h.b16 %v572
          %v651 = vunpack.c.l.b16 %v573
          %v652 = vunpack.c.h.b16 %v573
          %v653 = vunpack.c.l.b16 %v574
          %v654 = vunpack.c.h.b16 %v574
          %v655 = vunpack.c.l.b16 %v575
          %v656 = vunpack.c.h.b16 %v575
          %v657 = vunpack.c.l.b16 %v576
          %v658 = vunpack.c.h.b16 %v576
          %v659 = vunpack.c.l.b16 %v577
          %v660 = vunpack.c.h.b16 %v577
          %v661 = vunpack.c.l.b16 %v578
          %v662 = vunpack.c.h.b16 %v578
          %v663 = vunpack.c.l.b16 %v579
          %v664 = vunpack.c.h.b16 %v579
          %v665 = vunpack.c.l.b16 %v580
          %v666 = vunpack.c.h.b16 %v580
          %v667 = vunpack.c.l.b16 %v581
          %v668 = vunpack.c.h.b16 %v581
          %v669 = vunpack.c.l.b16 %v582
          %v670 = vunpack.c.h.b16 %v582
          %v671 = vunpack.c.l.b16 %v583
          %v672 = vunpack.c.h.b16 %v583
          %v673 = vunpack.c.l.b16 %v584
          %v674 = vunpack.c.h.b16 %v584
          %v675 = vunpack.c.l.b16 %v585
          %v676 = vunpack.c.h.b16 %v585
          %v677 = vunpack.c.l.b16 %v586
          %v678 = vunpack.c.h.b16 %v586
          %v679 = vunpack.c.l.b16 %v587
          %v680 = vunpack.c.h.b16 %v587
          %v681 = vunpack.c.l.b16 %v588
          %v682 = vunpack.c.h.b16 %v588
          %v683 = vunpack.c.l.b16 %v589
          %v684 = vunpack.c.h.b16 %v589
          %v685 = vunpack.c.l.b16 %v590
          %v686 = vunpack.c.h.b16 %v590
          %v687 = vunpack.c.l.b16 %v591
          %v688 = vunpack.c.h.b16 %v591
          %v689 = vunpack.c.l.b16 %v592
          %v690 = vunpack.c.h.b16 %v592
          %v691 = vunpack.c.l.b16 %v593
          %v692 = vunpack.c.h.b16 %v593
          %v693 = vunpack.c.l.b16 %v594
          %v694 = vunpack.c.h.b16 %v594
          %v695 = vunpack.c.l.b16 %v595
          %v696 = vunpack.c.h.b16 %v595
          %v697 = vunpack.c.l.b16 %v596
          %v698 = vunpack.c.h.b16 %v596
          %v699 = vunpack.c.l.b16 %v597
          %v700 = vunpack.c.h.b16 %v597
          %v701 = vunpack.c.l.b16 %v598
          %v702 = vunpack.c.h.b16 %v598
          %v703 = vunpack.c.l.b16 %v599
          %v704 = vunpack.c.h.b16 %v599
          %v705 = vunpack.c.l.b16 %v600
          %v706 = vunpack.c.h.b16 %v600
          %v707 = vunpack.c.l.b16 %v601
          %v708 = vunpack.c.h.b16 %v601
          %v709 = vunpack.c.l.b16 %v602
          %v710 = vunpack.c.h.b16 %v602
          %v711 = vunpack.c.l.b16 %v603
          %v712 = vunpack.c.h.b16 %v603
          %v713 = vpack.c.b16 %v651, %v649
          %v714 = vpack.c.b16 %v652, %v650
          %v715 = vpack.c.b16 %v655, %v653
          %v716 = vpack.c.b16 %v656, %v654
          %v717 = vpack.c.b16 %v659, %v657
          %v718 = vpack.c.b16 %v660, %v658
          %v719 = vpack.c.b16 %v663, %v661
          %v720 = vpack.c.b16 %v664, %v662
          %v721 = vpack.c.b16 %v667, %v665
          %v722 = vpack.c.b16 %v668, %v666
          %v723 = vpack.c.b16 %v671, %v669
          %v724 = vpack.c.b16 %v672, %v670
          %v725 = vpack.c.b16 %v675, %v673
          %v726 = vpack.c.b16 %v676, %v674
          %v727 = vpack.c.b16 %v679, %v677
          %v728 = vpack.c.b16 %v680, %v678
          %v729 = vpack.c.b16 %v683, %v681
          %v730 = vpack.c.b16 %v684, %v682
          %v731 = vpack.c.b16 %v687, %v685
          %v732 = vpack.c.b16 %v688, %v686
          %v733 = vpack.c.b16 %v691, %v689
          %v734 = vpack.c.b16 %v692, %v690
          %v735 = vpack.c.b16 %v695, %v693
          %v736 = vpack.c.b16 %v696, %v694
          %v737 = vpack.c.b16 %v699, %v697
          %v738 = vpack.c.b16 %v700, %v698
          %v739 = vpack.c.b16 %v703, %v701
          %v740 = vpack.c.b16 %v704, %v702
          %v741 = vpack.c.b16 %v707, %v705
          %v742 = vpack.c.b16 %v708, %v706
          %v743 = vpack.c.b16 %v711, %v709
          %v744 = vpack.c.b16 %v712, %v710
          %777 = vmatpush.bf16.msra.mxu0 %v727
          %778 = vmatpush.bf16.msra.mxu0 %v725
          %779 = vmatpush.bf16.msra.mxu0 %v723
          %780 = vmatpush.bf16.msra.mxu0 %v721
          %781 = vmatpush.bf16.msra.mxu0 %v719
          %782 = vmatpush.bf16.msra.mxu0 %v717
          %783 = vmatpush.bf16.msra.mxu0 %v715
          %784 = vmatpush.bf16.msra.mxu0 %v713
          %785 = vmatmul.bf16.gmra.mxu0 %v613
          %v786 = vpop.f32.mrf.mxu0
          %v787 = vadd.f32 %v606, %v786
          %v788 = vpop.f32.mrf.mxu0
          %789 = vdwg.mxu0
          %790 = vmatpush.bf16.msra.mxu0 %v743
          %791 = vmatpush.bf16.msra.mxu0 %v741
          %792 = vmatpush.bf16.msra.mxu0 %v739
          %793 = vmatpush.bf16.msra.mxu0 %v737
          %794 = vmatpush.bf16.msra.mxu0 %v735
          %795 = vmatpush.bf16.msra.mxu0 %v733
          %796 = vmatpush.bf16.msra.mxu0 %v731
          %797 = vmatpush.bf16.msra.mxu0 %v729
          %798 = vmatmul.bf16.gmra.mxu0 %v614
          %v799 = vpop.f32.mrf.mxu0
          %v800 = vadd.f32 %v787, %v799
          %v801 = vpop.f32.mrf.mxu0
          %802 = vdwg.mxu0
          %803 = vmatpush.bf16.msra.mxu0 %v728
          %804 = vmatpush.bf16.msra.mxu0 %v726
          %805 = vmatpush.bf16.msra.mxu0 %v724
          %806 = vmatpush.bf16.msra.mxu0 %v722
          %807 = vmatpush.bf16.msra.mxu0 %v720
          %808 = vmatpush.bf16.msra.mxu0 %v718
          %809 = vmatpush.bf16.msra.mxu0 %v716
          %810 = vmatpush.bf16.msra.mxu0 %v714
          %811 = vmatmul.bf16.gmra.mxu0 %v613
          %v812 = vpop.f32.mrf.mxu0
          %v813 = vadd.f32 %v607, %v812
          %v814 = vpop.f32.mrf.mxu0
          %815 = vdwg.mxu0
          %816 = vmatpush.bf16.msra.mxu0 %v744
          %817 = vmatpush.bf16.msra.mxu0 %v742
          %818 = vmatpush.bf16.msra.mxu0 %v740
          %819 = vmatpush.bf16.msra.mxu0 %v738
          %820 = vmatpush.bf16.msra.mxu0 %v736
          %821 = vmatpush.bf16.msra.mxu0 %v734
          %822 = vmatpush.bf16.msra.mxu0 %v732
          %823 = vmatpush.bf16.msra.mxu0 %v730
          %824 = vmatmul.bf16.gmra.mxu0 %v614
          %v825 = vpop.f32.mrf.mxu0
          %v826 = vadd.f32 %v813, %v825
          %v827 = vpop.f32.mrf.mxu0
          %828 = vdwg.mxu0
          %v829 = vpack.c.bf16 %v826, %v800
          %830 = vst [vmem:[#allocation3] sm:$0xff] %v829
          %v831 = vld [vmem:[%s496] sm:$0xff]
          %v832 = vld [vmem:[#allocation15] sm:$0xff]
          %v833 = vld [vmem:[#allocation15 + $0x8] sm:$0xff]
          %v834 = vld [vmem:[#allocation15 + $0x10] sm:$0xff]
          %v835 = vld [vmem:[#allocation15 + $0x18] sm:$0xff]
          %v836 = vld [vmem:[#allocation15 + $0x20] sm:$0xff]
          %v837 = vld [vmem:[#allocation15 + $0x28] sm:$0xff]
          %v838 = vld [vmem:[#allocation15 + $0x30] sm:$0xff]
          %v839 = vld [vmem:[#allocation15 + $0x38] sm:$0xff]
          %v840 = vld [vmem:[#allocation15 + $0x40] sm:$0xff]
          %v841 = vld [vmem:[#allocation15 + $0x48] sm:$0xff]
          %v842 = vld [vmem:[#allocation15 + $0x50] sm:$0xff]
          %v843 = vld [vmem:[#allocation15 + $0x58] sm:$0xff]
          %v844 = vld [vmem:[#allocation15 + $0x60] sm:$0xff]
          %v845 = vld [vmem:[#allocation15 + $0x68] sm:$0xff]
          %v846 = vld [vmem:[#allocation15 + $0x70] sm:$0xff]
          %v847 = vld [vmem:[#allocation15 + $0x78] sm:$0xff]
          %v848 = vld [vmem:[#allocation15 + $0x80] sm:$0xff]
          %v849 = vld [vmem:[#allocation15 + $0x88] sm:$0xff]
          %v850 = vld [vmem:[#allocation15 + $0x90] sm:$0xff]
          %v851 = vld [vmem:[#allocation15 + $0x98] sm:$0xff]
          %v852 = vld [vmem:[#allocation15 + $0xa0] sm:$0xff]
          %v853 = vld [vmem:[#allocation15 + $0xa8] sm:$0xff]
          %v854 = vld [vmem:[#allocation15 + $0xb0] sm:$0xff]
          %v855 = vld [vmem:[#allocation15 + $0xb8] sm:$0xff]
          %v856 = vld [vmem:[#allocation15 + $0xc0] sm:$0xff]
          %v857 = vld [vmem:[#allocation15 + $0xc8] sm:$0xff]
          %v858 = vld [vmem:[#allocation15 + $0xd0] sm:$0xff]
          %v859 = vld [vmem:[#allocation15 + $0xd8] sm:$0xff]
          %v860 = vld [vmem:[#allocation15 + $0xe0] sm:$0xff]
          %v861 = vld [vmem:[#allocation15 + $0xe8] sm:$0xff]
          %v862 = vld [vmem:[#allocation15 + $0xf0] sm:$0xff]
          %v863 = vld [vmem:[#allocation15 + $0xf8] sm:$0xff]
          %v864 = vld [vmem:[%s8] sm:$0x3]
          %v866 = vperm.slane %v864, 0
          %v867 = vperm.slane %v864, 1
          %v871 = vunpack.c.l.b16 %v831
          %v872 = vunpack.c.h.b16 %v831
          %v873 = vpack.c.b16 %v871, %v871
          %v874 = vpack.c.b16 %v872, %v872
          %v909 = vunpack.c.l.b16 %v832
          %v910 = vunpack.c.h.b16 %v832
          %v911 = vunpack.c.l.b16 %v833
          %v912 = vunpack.c.h.b16 %v833
          %v913 = vunpack.c.l.b16 %v834
          %v914 = vunpack.c.h.b16 %v834
          %v915 = vunpack.c.l.b16 %v835
          %v916 = vunpack.c.h.b16 %v835
          %v917 = vunpack.c.l.b16 %v836
          %v918 = vunpack.c.h.b16 %v836
          %v919 = vunpack.c.l.b16 %v837
          %v920 = vunpack.c.h.b16 %v837
          %v921 = vunpack.c.l.b16 %v838
          %v922 = vunpack.c.h.b16 %v838
          %v923 = vunpack.c.l.b16 %v839
          %v924 = vunpack.c.h.b16 %v839
          %v925 = vunpack.c.l.b16 %v840
          %v926 = vunpack.c.h.b16 %v840
          %v927 = vunpack.c.l.b16 %v841
          %v928 = vunpack.c.h.b16 %v841
          %v929 = vunpack.c.l.b16 %v842
          %v930 = vunpack.c.h.b16 %v842
          %v931 = vunpack.c.l.b16 %v843
          %v932 = vunpack.c.h.b16 %v843
          %v933 = vunpack.c.l.b16 %v844
          %v934 = vunpack.c.h.b16 %v844
          %v935 = vunpack.c.l.b16 %v845
          %v936 = vunpack.c.h.b16 %v845
          %v937 = vunpack.c.l.b16 %v846
          %v938 = vunpack.c.h.b16 %v846
          %v939 = vunpack.c.l.b16 %v847
          %v940 = vunpack.c.h.b16 %v847
          %v941 = vunpack.c.l.b16 %v848
          %v942 = vunpack.c.h.b16 %v848
          %v943 = vunpack.c.l.b16 %v849
          %v944 = vunpack.c.h.b16 %v849
          %v945 = vunpack.c.l.b16 %v850
          %v946 = vunpack.c.h.b16 %v850
          %v947 = vunpack.c.l.b16 %v851
          %v948 = vunpack.c.h.b16 %v851
          %v949 = vunpack.c.l.b16 %v852
          %v950 = vunpack.c.h.b16 %v852
          %v951 = vunpack.c.l.b16 %v853
          %v952 = vunpack.c.h.b16 %v853
          %v953 = vunpack.c.l.b16 %v854
          %v954 = vunpack.c.h.b16 %v854
          %v955 = vunpack.c.l.b16 %v855
          %v956 = vunpack.c.h.b16 %v855
          %v957 = vunpack.c.l.b16 %v856
          %v958 = vunpack.c.h.b16 %v856
          %v959 = vunpack.c.l.b16 %v857
          %v960 = vunpack.c.h.b16 %v857
          %v961 = vunpack.c.l.b16 %v858
          %v962 = vunpack.c.h.b16 %v858
          %v963 = vunpack.c.l.b16 %v859
          %v964 = vunpack.c.h.b16 %v859
          %v965 = vunpack.c.l.b16 %v860
          %v966 = vunpack.c.h.b16 %v860
          %v967 = vunpack.c.l.b16 %v861
          %v968 = vunpack.c.h.b16 %v861
          %v969 = vunpack.c.l.b16 %v862
          %v970 = vunpack.c.h.b16 %v862
          %v971 = vunpack.c.l.b16 %v863
          %v972 = vunpack.c.h.b16 %v863
          %v973 = vpack.c.b16 %v911, %v909
          %v974 = vpack.c.b16 %v912, %v910
          %v975 = vpack.c.b16 %v915, %v913
          %v976 = vpack.c.b16 %v916, %v914
          %v977 = vpack.c.b16 %v919, %v917
          %v978 = vpack.c.b16 %v920, %v918
          %v979 = vpack.c.b16 %v923, %v921
          %v980 = vpack.c.b16 %v924, %v922
          %v981 = vpack.c.b16 %v927, %v925
          %v982 = vpack.c.b16 %v928, %v926
          %v983 = vpack.c.b16 %v931, %v929
          %v984 = vpack.c.b16 %v932, %v930
          %v985 = vpack.c.b16 %v935, %v933
          %v986 = vpack.c.b16 %v936, %v934
          %v987 = vpack.c.b16 %v939, %v937
          %v988 = vpack.c.b16 %v940, %v938
          %v989 = vpack.c.b16 %v943, %v941
          %v990 = vpack.c.b16 %v944, %v942
          %v991 = vpack.c.b16 %v947, %v945
          %v992 = vpack.c.b16 %v948, %v946
          %v993 = vpack.c.b16 %v951, %v949
          %v994 = vpack.c.b16 %v952, %v950
          %v995 = vpack.c.b16 %v955, %v953
          %v996 = vpack.c.b16 %v956, %v954
          %v997 = vpack.c.b16 %v959, %v957
          %v998 = vpack.c.b16 %v960, %v958
          %v999 = vpack.c.b16 %v963, %v961
          %v1000 = vpack.c.b16 %v964, %v962
          %v1001 = vpack.c.b16 %v967, %v965
          %v1002 = vpack.c.b16 %v968, %v966
          %v1003 = vpack.c.b16 %v971, %v969
          %v1004 = vpack.c.b16 %v972, %v970
          %1037 = vmatpush.bf16.msra.mxu0 %v987
          %1038 = vmatpush.bf16.msra.mxu0 %v985
          %1039 = vmatpush.bf16.msra.mxu0 %v983
          %1040 = vmatpush.bf16.msra.mxu0 %v981
          %1041 = vmatpush.bf16.msra.mxu0 %v979
          %1042 = vmatpush.bf16.msra.mxu0 %v977
          %1043 = vmatpush.bf16.msra.mxu0 %v975
          %1044 = vmatpush.bf16.msra.mxu0 %v973
          %1045 = vmatmul.bf16.gmra.mxu0 %v873
          %v1046 = vpop.f32.mrf.mxu0
          %v1047 = vadd.f32 %v866, %v1046
          %v1048 = vpop.f32.mrf.mxu0
          %1049 = vdwg.mxu0
          %1050 = vmatpush.bf16.msra.mxu0 %v1003
          %1051 = vmatpush.bf16.msra.mxu0 %v1001
          %1052 = vmatpush.bf16.msra.mxu0 %v999
          %1053 = vmatpush.bf16.msra.mxu0 %v997
          %1054 = vmatpush.bf16.msra.mxu0 %v995
          %1055 = vmatpush.bf16.msra.mxu0 %v993
          %1056 = vmatpush.bf16.msra.mxu0 %v991
          %1057 = vmatpush.bf16.msra.mxu0 %v989
          %1058 = vmatmul.bf16.gmra.mxu0 %v874
          %v1059 = vpop.f32.mrf.mxu0
          %v1060 = vadd.f32 %v1047, %v1059
          %v1061 = vpop.f32.mrf.mxu0
          %1062 = vdwg.mxu0
          %1063 = vmatpush.bf16.msra.mxu0 %v988
          %1064 = vmatpush.bf16.msra.mxu0 %v986
          %1065 = vmatpush.bf16.msra.mxu0 %v984
          %1066 = vmatpush.bf16.msra.mxu0 %v982
          %1067 = vmatpush.bf16.msra.mxu0 %v980
          %1068 = vmatpush.bf16.msra.mxu0 %v978
          %1069 = vmatpush.bf16.msra.mxu0 %v976
          %1070 = vmatpush.bf16.msra.mxu0 %v974
          %1071 = vmatmul.bf16.gmra.mxu0 %v873
          %v1072 = vpop.f32.mrf.mxu0
          %v1073 = vadd.f32 %v867, %v1072
          %v1074 = vpop.f32.mrf.mxu0
          %1075 = vdwg.mxu0
          %1076 = vmatpush.bf16.msra.mxu0 %v1004
          %1077 = vmatpush.bf16.msra.mxu0 %v1002
          %1078 = vmatpush.bf16.msra.mxu0 %v1000
          %1079 = vmatpush.bf16.msra.mxu0 %v998
          %1080 = vmatpush.bf16.msra.mxu0 %v996
          %1081 = vmatpush.bf16.msra.mxu0 %v994
          %1082 = vmatpush.bf16.msra.mxu0 %v992
          %1083 = vmatpush.bf16.msra.mxu0 %v990
          %1084 = vmatmul.bf16.gmra.mxu0 %v874
          %v1085 = vpop.f32.mrf.mxu0
          %v1086 = vadd.f32 %v1073, %v1085
          %v1087 = vpop.f32.mrf.mxu0
          %1088 = vdwg.mxu0
          %v1089 = vpack.c.bf16 %v1086, %v1060
          %1090 = vst [vmem:[#allocation4] sm:$0xff] %v1089
        $region96: #{tpu_custom_call.1} parent=63 // pred_fallthru
          _
        %v1091 = vld [vmem:[%s476] sm:$0xff]
        %v1092 = vld [vmem:[#allocation12] sm:$0xff]
        %v1093 = vld [vmem:[#allocation12 + $0x8] sm:$0xff]
        %v1094 = vld [vmem:[#allocation12 + $0x10] sm:$0xff]
        %v1095 = vld [vmem:[#allocation12 + $0x18] sm:$0xff]
        %v1096 = vld [vmem:[#allocation12 + $0x20] sm:$0xff]
        %v1097 = vld [vmem:[#allocation12 + $0x28] sm:$0xff]
        %v1098 = vld [vmem:[#allocation12 + $0x30] sm:$0xff]
        %v1099 = vld [vmem:[#allocation12 + $0x38] sm:$0xff]
        %v1100 = vld [vmem:[#allocation12 + $0x40] sm:$0xff]
        %v1101 = vld [vmem:[#allocation12 + $0x48] sm:$0xff]
        %v1102 = vld [vmem:[#allocation12 + $0x50] sm:$0xff]
        %v1103 = vld [vmem:[#allocation12 + $0x58] sm:$0xff]
        %v1104 = vld [vmem:[#allocation12 + $0x60] sm:$0xff]
        %v1105 = vld [vmem:[#allocation12 + $0x68] sm:$0xff]
        %v1106 = vld [vmem:[#allocation12 + $0x70] sm:$0xff]
        %v1107 = vld [vmem:[#allocation12 + $0x78] sm:$0xff]
        %v1108 = vld [vmem:[#allocation12 + $0x80] sm:$0xff]
        %v1109 = vld [vmem:[#allocation12 + $0x88] sm:$0xff]
        %v1110 = vld [vmem:[#allocation12 + $0x90] sm:$0xff]
        %v1111 = vld [vmem:[#allocation12 + $0x98] sm:$0xff]
        %v1112 = vld [vmem:[#allocation12 + $0xa0] sm:$0xff]
        %v1113 = vld [vmem:[#allocation12 + $0xa8] sm:$0xff]
        %v1114 = vld [vmem:[#allocation12 + $0xb0] sm:$0xff]
        %v1115 = vld [vmem:[#allocation12 + $0xb8] sm:$0xff]
        %v1116 = vld [vmem:[#allocation12 + $0xc0] sm:$0xff]
        %v1117 = vld [vmem:[#allocation12 + $0xc8] sm:$0xff]
        %v1118 = vld [vmem:[#allocation12 + $0xd0] sm:$0xff]
        %v1119 = vld [vmem:[#allocation12 + $0xd8] sm:$0xff]
        %v1120 = vld [vmem:[#allocation12 + $0xe0] sm:$0xff]
        %v1121 = vld [vmem:[#allocation12 + $0xe8] sm:$0xff]
        %v1122 = vld [vmem:[#allocation12 + $0xf0] sm:$0xff]
        %v1123 = vld [vmem:[#allocation12 + $0xf8] sm:$0xff]
        %v1124 = vld [vmem:[%s6] sm:$0x3]
        %v1126 = vperm.slane %v1124, 0
        %v1127 = vperm.slane %v1124, 1
        %v1131 = vunpack.c.l.b16 %v1091
        %v1132 = vunpack.c.h.b16 %v1091
        %v1133 = vpack.c.b16 %v1131, %v1131
        %v1134 = vpack.c.b16 %v1132, %v1132
        %v1169 = vunpack.c.l.b16 %v1092
        %v1170 = vunpack.c.h.b16 %v1092
        %v1171 = vunpack.c.l.b16 %v1093
        %v1172 = vunpack.c.h.b16 %v1093
        %v1173 = vunpack.c.l.b16 %v1094
        %v1174 = vunpack.c.h.b16 %v1094
        %v1175 = vunpack.c.l.b16 %v1095
        %v1176 = vunpack.c.h.b16 %v1095
        %v1177 = vunpack.c.l.b16 %v1096
        %v1178 = vunpack.c.h.b16 %v1096
        %v1179 = vunpack.c.l.b16 %v1097
        %v1180 = vunpack.c.h.b16 %v1097
        %v1181 = vunpack.c.l.b16 %v1098
        %v1182 = vunpack.c.h.b16 %v1098
        %v1183 = vunpack.c.l.b16 %v1099
        %v1184 = vunpack.c.h.b16 %v1099
        %v1185 = vunpack.c.l.b16 %v1100
        %v1186 = vunpack.c.h.b16 %v1100
        %v1187 = vunpack.c.l.b16 %v1101
        %v1188 = vunpack.c.h.b16 %v1101
        %v1189 = vunpack.c.l.b16 %v1102
        %v1190 = vunpack.c.h.b16 %v1102
        %v1191 = vunpack.c.l.b16 %v1103
        %v1192 = vunpack.c.h.b16 %v1103
        %v1193 = vunpack.c.l.b16 %v1104
        %v1194 = vunpack.c.h.b16 %v1104
        %v1195 = vunpack.c.l.b16 %v1105
        %v1196 = vunpack.c.h.b16 %v1105
        %v1197 = vunpack.c.l.b16 %v1106
        %v1198 = vunpack.c.h.b16 %v1106
        %v1199 = vunpack.c.l.b16 %v1107
        %v1200 = vunpack.c.h.b16 %v1107
        %v1201 = vunpack.c.l.b16 %v1108
        %v1202 = vunpack.c.h.b16 %v1108
        %v1203 = vunpack.c.l.b16 %v1109
        %v1204 = vunpack.c.h.b16 %v1109
        %v1205 = vunpack.c.l.b16 %v1110
        %v1206 = vunpack.c.h.b16 %v1110
        %v1207 = vunpack.c.l.b16 %v1111
        %v1208 = vunpack.c.h.b16 %v1111
        %v1209 = vunpack.c.l.b16 %v1112
        %v1210 = vunpack.c.h.b16 %v1112
        %v1211 = vunpack.c.l.b16 %v1113
        %v1212 = vunpack.c.h.b16 %v1113
        %v1213 = vunpack.c.l.b16 %v1114
        %v1214 = vunpack.c.h.b16 %v1114
        %v1215 = vunpack.c.l.b16 %v1115
        %v1216 = vunpack.c.h.b16 %v1115
        %v1217 = vunpack.c.l.b16 %v1116
        %v1218 = vunpack.c.h.b16 %v1116
        %v1219 = vunpack.c.l.b16 %v1117
        %v1220 = vunpack.c.h.b16 %v1117
        %v1221 = vunpack.c.l.b16 %v1118
        %v1222 = vunpack.c.h.b16 %v1118
        %v1223 = vunpack.c.l.b16 %v1119
        %v1224 = vunpack.c.h.b16 %v1119
        %v1225 = vunpack.c.l.b16 %v1120
        %v1226 = vunpack.c.h.b16 %v1120
        %v1227 = vunpack.c.l.b16 %v1121
        %v1228 = vunpack.c.h.b16 %v1121
        %v1229 = vunpack.c.l.b16 %v1122
        %v1230 = vunpack.c.h.b16 %v1122
        %v1231 = vunpack.c.l.b16 %v1123
        %v1232 = vunpack.c.h.b16 %v1123
        %v1233 = vpack.c.b16 %v1171, %v1169
        %v1234 = vpack.c.b16 %v1172, %v1170
        %v1235 = vpack.c.b16 %v1175, %v1173
        %v1236 = vpack.c.b16 %v1176, %v1174
        %v1237 = vpack.c.b16 %v1179, %v1177
        %v1238 = vpack.c.b16 %v1180, %v1178
        %v1239 = vpack.c.b16 %v1183, %v1181
        %v1240 = vpack.c.b16 %v1184, %v1182
        %v1241 = vpack.c.b16 %v1187, %v1185
        %v1242 = vpack.c.b16 %v1188, %v1186
        %v1243 = vpack.c.b16 %v1191, %v1189
        %v1244 = vpack.c.b16 %v1192, %v1190
        %v1245 = vpack.c.b16 %v1195, %v1193
        %v1246 = vpack.c.b16 %v1196, %v1194
        %v1247 = vpack.c.b16 %v1199, %v1197
        %v1248 = vpack.c.b16 %v1200, %v1198
        %v1249 = vpack.c.b16 %v1203, %v1201
        %v1250 = vpack.c.b16 %v1204, %v1202
        %v1251 = vpack.c.b16 %v1207, %v1205
        %v1252 = vpack.c.b16 %v1208, %v1206
        %v1253 = vpack.c.b16 %v1211, %v1209
        %v1254 = vpack.c.b16 %v1212, %v1210
        %v1255 = vpack.c.b16 %v1215, %v1213
        %v1256 = vpack.c.b16 %v1216, %v1214
        %v1257 = vpack.c.b16 %v1219, %v1217
        %v1258 = vpack.c.b16 %v1220, %v1218
        %v1259 = vpack.c.b16 %v1223, %v1221
        %v1260 = vpack.c.b16 %v1224, %v1222
        %v1261 = vpack.c.b16 %v1227, %v1225
        %v1262 = vpack.c.b16 %v1228, %v1226
        %v1263 = vpack.c.b16 %v1231, %v1229
        %v1264 = vpack.c.b16 %v1232, %v1230
        %1297 = vmatpush.bf16.msra.mxu0 %v1247
        %1298 = vmatpush.bf16.msra.mxu0 %v1245
        %1299 = vmatpush.bf16.msra.mxu0 %v1243
        %1300 = vmatpush.bf16.msra.mxu0 %v1241
        %1301 = vmatpush.bf16.msra.mxu0 %v1239
        %1302 = vmatpush.bf16.msra.mxu0 %v1237
        %1303 = vmatpush.bf16.msra.mxu0 %v1235
        %1304 = vmatpush.bf16.msra.mxu0 %v1233
        %1305 = vmatmul.bf16.gmra.mxu0 %v1133
        %v1306 = vpop.f32.mrf.mxu0
        %v1307 = vadd.f32 %v1126, %v1306
        %v1308 = vpop.f32.mrf.mxu0
        %1309 = vdwg.mxu0
        %1310 = vmatpush.bf16.msra.mxu0 %v1263
        %1311 = vmatpush.bf16.msra.mxu0 %v1261
        %1312 = vmatpush.bf16.msra.mxu0 %v1259
        %1313 = vmatpush.bf16.msra.mxu0 %v1257
        %1314 = vmatpush.bf16.msra.mxu0 %v1255
        %1315 = vmatpush.bf16.msra.mxu0 %v1253
        %1316 = vmatpush.bf16.msra.mxu0 %v1251
        %1317 = vmatpush.bf16.msra.mxu0 %v1249
        %1318 = vmatmul.bf16.gmra.mxu0 %v1134
        %v1319 = vpop.f32.mrf.mxu0
        %v1320 = vadd.f32 %v1307, %v1319
        %v1321 = vpop.f32.mrf.mxu0
        %1322 = vdwg.mxu0
        %1323 = vmatpush.bf16.msra.mxu0 %v1248
        %1324 = vmatpush.bf16.msra.mxu0 %v1246
        %1325 = vmatpush.bf16.msra.mxu0 %v1244
        %1326 = vmatpush.bf16.msra.mxu0 %v1242
        %1327 = vmatpush.bf16.msra.mxu0 %v1240
        %1328 = vmatpush.bf16.msra.mxu0 %v1238
        %1329 = vmatpush.bf16.msra.mxu0 %v1236
        %1330 = vmatpush.bf16.msra.mxu0 %v1234
        %1331 = vmatmul.bf16.gmra.mxu0 %v1133
        %v1332 = vpop.f32.mrf.mxu0
        %v1333 = vadd.f32 %v1127, %v1332
        %v1334 = vpop.f32.mrf.mxu0
        %1335 = vdwg.mxu0
        %1336 = vmatpush.bf16.msra.mxu0 %v1264
        %1337 = vmatpush.bf16.msra.mxu0 %v1262
        %1338 = vmatpush.bf16.msra.mxu0 %v1260
        %1339 = vmatpush.bf16.msra.mxu0 %v1258
        %1340 = vmatpush.bf16.msra.mxu0 %v1256
        %1341 = vmatpush.bf16.msra.mxu0 %v1254
        %1342 = vmatpush.bf16.msra.mxu0 %v1252
        %1343 = vmatpush.bf16.msra.mxu0 %v1250
        %1344 = vmatmul.bf16.gmra.mxu0 %v1134
        %v1345 = vpop.f32.mrf.mxu0
        %v1346 = vadd.f32 %v1333, %v1345
        %v1347 = vpop.f32.mrf.mxu0
        %1348 = vdwg.mxu0
        %v1349 = vpack.c.bf16 %v1346, %v1320
        %1350 = vst [vmem:[#allocation2] sm:$0xff] %v1349
        %v1351 = vld [vmem:[#allocation2] sm:$0xf]
        %v1352 = vld [vmem:[#allocation3] sm:$0xf]
        %v1353 = vld [vmem:[#allocation4] sm:$0xf]
        %1354 = vmatpush.bf16.xpose.msra.mxu0 0
        %1355 = vmatpush.bf16.xpose.msra.mxu0 0
        %1356 = vmatpush.bf16.xpose.msra.mxu0 0
        %1357 = vmatpush.bf16.xpose.msra.mxu0 0
        %1358 = vmatpush.bf16.xpose.msra.mxu0 0
        %1359 = vmatpush.bf16.xpose.msra.mxu0 0
        %1360 = vmatpush.bf16.xpose.msra.mxu0 0
        %1361 = vmatpush.bf16.xpose.msra.mxu0 %v1352
        %1362 = vmatmul.bf16.gmra.mxu0 %v1351
        %v1363 = vpop.f32.mrf.mxu0
        %v1364 = vadd.f32 0.0, %v1363
        %v1365 = vpop.f32.mrf.mxu0
        %1366 = vdwg.mxu0
        %vm1367 = vcmask 64512
        %v1368 = vsel %vm1367, %v1364, -inf
        %1369 = vmax.xlane.f32.xlu0 %v1368
        %v1370 = vpop.xlane.xlu0 %1369
        %v1371 = vsub.f32 %v1364, %v1370
        %v1372 = vmul.f32 %v1371, 1.442695
        %v1373 = vpow.pop %v1372
        %v1374 = vsel %vm1367, %v1373, 0.0
        %1375 = vadd.xlane.f32.xlu0 %v1374
        %v1376 = vpop.xlane.xlu0 %1375
        %v1377 = vrcp.pop %v1376
        %v1378 = vmul.f32 %v1373, %v1377
        %v1379 = vpack.c.bf16 %v1378, %v1378
        %v1381 = vsel %vm1367, %v1379, 0
        %vm1383 = vcmask 1043456
        %v1385 = vsel %vm1383, %v1353, 0
        %1387 = vmatpush.bf16.msra.mxu0 0
        %1388 = vmatpush.bf16.msra.mxu0 0
        %1389 = vmatpush.bf16.msra.mxu0 0
        %1390 = vmatpush.bf16.msra.mxu0 0
        %1391 = vmatpush.bf16.msra.mxu0 0
        %1392 = vmatpush.bf16.msra.mxu0 0
        %1393 = vmatpush.bf16.msra.mxu0 0
        %1394 = vmatpush.bf16.msra.mxu0 %v1385
        %1395 = vmatmul.bf16.gmra.mxu0 %v1381
        %v1396 = vpop.f32.mrf.mxu0
        %v1397 = vadd.f32 0.0, %v1396
        %v1398 = vpop.f32.mrf.mxu0
        %1399 = vdwg.mxu0
        %v1400 = vpack.c.bf16 %v1397, %v1397
        %1401 = vst [vmem:[#allocation5] sm:$0xf] %v1400
        %v1402 = vld [vmem:[#allocation2 + $0x4] sm:$0xf]
        %v1403 = vld [vmem:[#allocation3 + $0x4] sm:$0xf]
        %v1404 = vld [vmem:[#allocation4 + $0x4] sm:$0xf]
        %1405 = vmatpush.bf16.xpose.msra.mxu0 0
        %1406 = vmatpush.bf16.xpose.msra.mxu0 0
        %1407 = vmatpush.bf16.xpose.msra.mxu0 0
        %1408 = vmatpush.bf16.xpose.msra.mxu0 0
        %1409 = vmatpush.bf16.xpose.msra.mxu0 0
        %1410 = vmatpush.bf16.xpose.msra.mxu0 0
        %1411 = vmatpush.bf16.xpose.msra.mxu0 0
        %1412 = vmatpush.bf16.xpose.msra.mxu0 %v1403
        %1413 = vmatmul.bf16.gmra.mxu0 %v1402
        %v1414 = vpop.f32.mrf.mxu0
        %v1415 = vadd.f32 0.0, %v1414
        %v1416 = vpop.f32.mrf.mxu0
        %1417 = vdwg.mxu0
        %v1418 = vsel %vm1367, %v1415, -inf
        %1419 = vmax.xlane.f32.xlu0 %v1418
        %v1420 = vpop.xlane.xlu0 %1419
        %v1421 = vsub.f32 %v1415, %v1420
        %v1422 = vmul.f32 %v1421, 1.442695
        %v1423 = vpow.pop %v1422
        %v1424 = vsel %vm1367, %v1423, 0.0
        %1425 = vadd.xlane.f32.xlu0 %v1424
        %v1426 = vpop.xlane.xlu0 %1425
        %v1427 = vrcp.pop %v1426
        %v1428 = vmul.f32 %v1423, %v1427
        %v1429 = vpack.c.bf16 %v1428, %v1428
        %v1431 = vsel %vm1367, %v1429, 0
        %v1434 = vsel %vm1383, %v1404, 0
        %1436 = vmatpush.bf16.msra.mxu0 0
        %1437 = vmatpush.bf16.msra.mxu0 0
        %1438 = vmatpush.bf16.msra.mxu0 0
        %1439 = vmatpush.bf16.msra.mxu0 0
        %1440 = vmatpush.bf16.msra.mxu0 0
        %1441 = vmatpush.bf16.msra.mxu0 0
        %1442 = vmatpush.bf16.msra.mxu0 0
        %1443 = vmatpush.bf16.msra.mxu0 %v1434
        %1444 = vmatmul.bf16.gmra.mxu0 %v1431
        %v1445 = vpop.f32.mrf.mxu0
        %v1446 = vadd.f32 0.0, %v1445
        %v1447 = vpop.f32.mrf.mxu0
        %1448 = vdwg.mxu0
        %v1449 = vpack.c.bf16 %v1446, %v1446
        %1450 = vst [vmem:[#allocation5 + $0x4] sm:$0xf] %v1449
        %v1451 = vld [vmem:[#allocation5] sm:$0xff]
        %v1452 = vld [vmem:[#allocation17] sm:$0xff]
        %v1453 = vld [vmem:[#allocation17 + $0x8] sm:$0xff]
        %v1454 = vld [vmem:[#allocation17 + $0x10] sm:$0xff]
        %v1455 = vld [vmem:[#allocation17 + $0x18] sm:$0xff]
        %v1456 = vld [vmem:[#allocation17 + $0x20] sm:$0xff]
        %v1457 = vld [vmem:[#allocation17 + $0x28] sm:$0xff]
        %v1458 = vld [vmem:[#allocation17 + $0x30] sm:$0xff]
        %v1459 = vld [vmem:[#allocation17 + $0x38] sm:$0xff]
        %v1460 = vld [vmem:[#allocation17 + $0x40] sm:$0xff]
        %v1461 = vld [vmem:[#allocation17 + $0x48] sm:$0xff]
        %v1462 = vld [vmem:[#allocation17 + $0x50] sm:$0xff]
        %v1463 = vld [vmem:[#allocation17 + $0x58] sm:$0xff]
        %v1464 = vld [vmem:[#allocation17 + $0x60] sm:$0xff]
        %v1465 = vld [vmem:[#allocation17 + $0x68] sm:$0xff]
        %v1466 = vld [vmem:[#allocation17 + $0x70] sm:$0xff]
        %v1467 = vld [vmem:[#allocation17 + $0x78] sm:$0xff]
        %v1468 = vld [vmem:[#allocation17 + $0x80] sm:$0xff]
        %v1469 = vld [vmem:[#allocation17 + $0x88] sm:$0xff]
        %v1470 = vld [vmem:[#allocation17 + $0x90] sm:$0xff]
        %v1471 = vld [vmem:[#allocation17 + $0x98] sm:$0xff]
        %v1472 = vld [vmem:[#allocation17 + $0xa0] sm:$0xff]
        %v1473 = vld [vmem:[#allocation17 + $0xa8] sm:$0xff]
        %v1474 = vld [vmem:[#allocation17 + $0xb0] sm:$0xff]
        %v1475 = vld [vmem:[#allocation17 + $0xb8] sm:$0xff]
        %v1476 = vld [vmem:[#allocation17 + $0xc0] sm:$0xff]
        %v1477 = vld [vmem:[#allocation17 + $0xc8] sm:$0xff]
        %v1478 = vld [vmem:[#allocation17 + $0xd0] sm:$0xff]
        %v1479 = vld [vmem:[#allocation17 + $0xd8] sm:$0xff]
        %v1480 = vld [vmem:[#allocation17 + $0xe0] sm:$0xff]
        %v1481 = vld [vmem:[#allocation17 + $0xe8] sm:$0xff]
        %v1482 = vld [vmem:[#allocation17 + $0xf0] sm:$0xff]
        %v1483 = vld [vmem:[#allocation17 + $0xf8] sm:$0xff]
        %v1484 = vld [vmem:[%s10] sm:$0x3]
        %v1486 = vperm.slane %v1484, 0
        %v1487 = vperm.slane %v1484, 1
        %v1491 = vunpack.c.l.b16 %v1451
        %v1492 = vunpack.c.h.b16 %v1451
        %v1493 = vpack.c.b16 %v1491, %v1491
        %v1494 = vpack.c.b16 %v1492, %v1492
        %v1529 = vunpack.c.l.b16 %v1452
        %v1530 = vunpack.c.h.b16 %v1452
        %v1531 = vunpack.c.l.b16 %v1453
        %v1532 = vunpack.c.h.b16 %v1453
        %v1533 = vunpack.c.l.b16 %v1454
        %v1534 = vunpack.c.h.b16 %v1454
        %v1535 = vunpack.c.l.b16 %v1455
        %v1536 = vunpack.c.h.b16 %v1455
        %v1537 = vunpack.c.l.b16 %v1456
        %v1538 = vunpack.c.h.b16 %v1456
        %v1539 = vunpack.c.l.b16 %v1457
        %v1540 = vunpack.c.h.b16 %v1457
        %v1541 = vunpack.c.l.b16 %v1458
        %v1542 = vunpack.c.h.b16 %v1458
        %v1543 = vunpack.c.l.b16 %v1459
        %v1544 = vunpack.c.h.b16 %v1459
        %v1545 = vunpack.c.l.b16 %v1460
        %v1546 = vunpack.c.h.b16 %v1460
        %v1547 = vunpack.c.l.b16 %v1461
        %v1548 = vunpack.c.h.b16 %v1461
        %v1549 = vunpack.c.l.b16 %v1462
        %v1550 = vunpack.c.h.b16 %v1462
        %v1551 = vunpack.c.l.b16 %v1463
        %v1552 = vunpack.c.h.b16 %v1463
        %v1553 = vunpack.c.l.b16 %v1464
        %v1554 = vunpack.c.h.b16 %v1464
        %v1555 = vunpack.c.l.b16 %v1465
        %v1556 = vunpack.c.h.b16 %v1465
        %v1557 = vunpack.c.l.b16 %v1466
        %v1558 = vunpack.c.h.b16 %v1466
        %v1559 = vunpack.c.l.b16 %v1467
        %v1560 = vunpack.c.h.b16 %v1467
        %v1561 = vunpack.c.l.b16 %v1468
        %v1562 = vunpack.c.h.b16 %v1468
        %v1563 = vunpack.c.l.b16 %v1469
        %v1564 = vunpack.c.h.b16 %v1469
        %v1565 = vunpack.c.l.b16 %v1470
        %v1566 = vunpack.c.h.b16 %v1470
        %v1567 = vunpack.c.l.b16 %v1471
        %v1568 = vunpack.c.h.b16 %v1471
        %v1569 = vunpack.c.l.b16 %v1472
        %v1570 = vunpack.c.h.b16 %v1472
        %v1571 = vunpack.c.l.b16 %v1473
        %v1572 = vunpack.c.h.b16 %v1473
        %v1573 = vunpack.c.l.b16 %v1474
        %v1574 = vunpack.c.h.b16 %v1474
        %v1575 = vunpack.c.l.b16 %v1475
        %v1576 = vunpack.c.h.b16 %v1475
        %v1577 = vunpack.c.l.b16 %v1476
        %v1578 = vunpack.c.h.b16 %v1476
        %v1579 = vunpack.c.l.b16 %v1477
        %v1580 = vunpack.c.h.b16 %v1477
        %v1581 = vunpack.c.l.b16 %v1478
        %v1582 = vunpack.c.h.b16 %v1478
        %v1583 = vunpack.c.l.b16 %v1479
        %v1584 = vunpack.c.h.b16 %v1479
        %v1585 = vunpack.c.l.b16 %v1480
        %v1586 = vunpack.c.h.b16 %v1480
        %v1587 = vunpack.c.l.b16 %v1481
        %v1588 = vunpack.c.h.b16 %v1481
        %v1589 = vunpack.c.l.b16 %v1482
        %v1590 = vunpack.c.h.b16 %v1482
        %v1591 = vunpack.c.l.b16 %v1483
        %v1592 = vunpack.c.h.b16 %v1483
        %v1593 = vpack.c.b16 %v1531, %v1529
        %v1594 = vpack.c.b16 %v1532, %v1530
        %v1595 = vpack.c.b16 %v1535, %v1533
        %v1596 = vpack.c.b16 %v1536, %v1534
        %v1597 = vpack.c.b16 %v1539, %v1537
        %v1598 = vpack.c.b16 %v1540, %v1538
        %v1599 = vpack.c.b16 %v1543, %v1541
        %v1600 = vpack.c.b16 %v1544, %v1542
        %v1601 = vpack.c.b16 %v1547, %v1545
        %v1602 = vpack.c.b16 %v1548, %v1546
        %v1603 = vpack.c.b16 %v1551, %v1549
        %v1604 = vpack.c.b16 %v1552, %v1550
        %v1605 = vpack.c.b16 %v1555, %v1553
        %v1606 = vpack.c.b16 %v1556, %v1554
        %v1607 = vpack.c.b16 %v1559, %v1557
        %v1608 = vpack.c.b16 %v1560, %v1558
        %v1609 = vpack.c.b16 %v1563, %v1561
        %v1610 = vpack.c.b16 %v1564, %v1562
        %v1611 = vpack.c.b16 %v1567, %v1565
        %v1612 = vpack.c.b16 %v1568, %v1566
        %v1613 = vpack.c.b16 %v1571, %v1569
        %v1614 = vpack.c.b16 %v1572, %v1570
        %v1615 = vpack.c.b16 %v1575, %v1573
        %v1616 = vpack.c.b16 %v1576, %v1574
        %v1617 = vpack.c.b16 %v1579, %v1577
        %v1618 = vpack.c.b16 %v1580, %v1578
        %v1619 = vpack.c.b16 %v1583, %v1581
        %v1620 = vpack.c.b16 %v1584, %v1582
        %v1621 = vpack.c.b16 %v1587, %v1585
        %v1622 = vpack.c.b16 %v1588, %v1586
        %v1623 = vpack.c.b16 %v1591, %v1589
        %v1624 = vpack.c.b16 %v1592, %v1590
        %1657 = vmatpush.bf16.msra.mxu0 %v1607
        %1658 = vmatpush.bf16.msra.mxu0 %v1605
        %1659 = vmatpush.bf16.msra.mxu0 %v1603
        %1660 = vmatpush.bf16.msra.mxu0 %v1601
        %1661 = vmatpush.bf16.msra.mxu0 %v1599
        %1662 = vmatpush.bf16.msra.mxu0 %v1597
        %1663 = vmatpush.bf16.msra.mxu0 %v1595
        %1664 = vmatpush.bf16.msra.mxu0 %v1593
        %1665 = vmatmul.bf16.gmra.mxu0 %v1493
        %v1666 = vpop.f32.mrf.mxu0
        %v1667 = vadd.f32 %v1486, %v1666
        %v1668 = vpop.f32.mrf.mxu0
        %1669 = vdwg.mxu0
        %1670 = vmatpush.bf16.msra.mxu0 %v1623
        %1671 = vmatpush.bf16.msra.mxu0 %v1621
        %1672 = vmatpush.bf16.msra.mxu0 %v1619
        %1673 = vmatpush.bf16.msra.mxu0 %v1617
        %1674 = vmatpush.bf16.msra.mxu0 %v1615
        %1675 = vmatpush.bf16.msra.mxu0 %v1613
        %1676 = vmatpush.bf16.msra.mxu0 %v1611
        %1677 = vmatpush.bf16.msra.mxu0 %v1609
        %1678 = vmatmul.bf16.gmra.mxu0 %v1494
        %v1679 = vpop.f32.mrf.mxu0
        %v1680 = vadd.f32 %v1667, %v1679
        %v1681 = vpop.f32.mrf.mxu0
        %1682 = vdwg.mxu0
        %1683 = vmatpush.bf16.msra.mxu0 %v1608
        %1684 = vmatpush.bf16.msra.mxu0 %v1606
        %1685 = vmatpush.bf16.msra.mxu0 %v1604
        %1686 = vmatpush.bf16.msra.mxu0 %v1602
        %1687 = vmatpush.bf16.msra.mxu0 %v1600
        %1688 = vmatpush.bf16.msra.mxu0 %v1598
        %1689 = vmatpush.bf16.msra.mxu0 %v1596
        %1690 = vmatpush.bf16.msra.mxu0 %v1594
        %1691 = vmatmul.bf16.gmra.mxu0 %v1493
        %v1692 = vpop.f32.mrf.mxu0
        %v1693 = vadd.f32 %v1487, %v1692
        %v1694 = vpop.f32.mrf.mxu0
        %1695 = vdwg.mxu0
        %1696 = vmatpush.bf16.msra.mxu0 %v1624
        %1697 = vmatpush.bf16.msra.mxu0 %v1622
        %1698 = vmatpush.bf16.msra.mxu0 %v1620
        %1699 = vmatpush.bf16.msra.mxu0 %v1618
        %1700 = vmatpush.bf16.msra.mxu0 %v1616
        %1701 = vmatpush.bf16.msra.mxu0 %v1614
        %1702 = vmatpush.bf16.msra.mxu0 %v1612
        %1703 = vmatpush.bf16.msra.mxu0 %v1610
        %1704 = vmatmul.bf16.gmra.mxu0 %v1494
        %v1705 = vpop.f32.mrf.mxu0
        %v1706 = vadd.f32 %v1693, %v1705
        %v1707 = vpop.f32.mrf.mxu0
        %1708 = vdwg.mxu0
        %1709 = vst [vmem:[%s565] sm:$0xff] %v1680
        %1710 = vst [vmem:[%s565 + $0x8] sm:$0xff] %v1706
        %s1711 = sand.u32 %s303, 1
        %s1712 = scalar_lea.sflag [#allocation8], %s1711
        %s1713 = sand.u32 %s303, 1
        %s1714 = smul.addr %s1713, 16
        %s1715 = scalar_lea.vmem [#allocation18], %s1714
        // Predicated region
        $region97: #{tpu_custom_call.1} parent=63 // pred_check
          %p1716 = pneg %p313
        $region98: #{tpu_custom_call.1} parent=63 // pred_check_branch
          %1718 = sbr.rel (%p1716) target = $region100
        $region99: #{tpu_custom_call.1} parent=63 // pred_region
          %1720 = vsyncadd %s1712, 0
          %s1721 = smul.addr %s38, 2
          %s1722 = smul.addr %s37, 2
          %s1723 = sadd.s32 %s1721, %s1722
          %s1724 = smul.addr %s1723, 8
          %s1725 = scalar_lea.hbm %s11, %s1724
          %s1727 = sshll.u32 %s1715, 4
          %s1728 = int_to_ptr.vmem [resolvable:$true] %s1727
          %s1729 = sshll.u32 %s1725, 4
          %s1730 = int_to_ptr.hbm [resolvable:$true] %s1729
          %1732 = dma.vmem_to_hbm [thread:$0]  %s1728, 256, %s1730, %s1712
        $region100: #{tpu_custom_call.1} parent=63 // pred_fallthru
          _
      $region64: #{tpu_custom_call.1} parent=5 // pred_fallthru
        _
      %p1733 = scmp.le.s32.totalorder 2, %s28
      // Predicated region
      $region101: #{tpu_custom_call.1} parent=5 // pred_check
        %p1734 = pneg %p1733
      $region102: #{tpu_custom_call.1} parent=5 // pred_check_branch
        %1736 = sbr.rel (%p1734) target = $region104
      $region103: #{tpu_custom_call.1} parent=5 // pred_region
        %s1737 = ssub.s32 %s28, 2
        // Predicated region
        $region105: #{tpu_custom_call.1} parent=103 // pred_check
          %p1738 = pneg %p319
        $region106: #{tpu_custom_call.1} parent=103 // pred_check_branch
          %1740 = sbr.rel (%p1738) target = $region108
        $region107: #{tpu_custom_call.1} parent=103 // pred_region
          %s1741 = sand.u32 %s304, 1
          %s1742 = scalar_lea.sflag [#allocation8], %s1741
          %s1743 = sand.u32 %s304, 1
          %s1744 = smul.addr %s1743, 16
          %s1745 = scalar_lea.vmem [#allocation18], %s1744
          %1747 = dma.done %s1742, 256
        $region108: #{tpu_custom_call.1} parent=103 // pred_fallthru
          _
      $region104: #{tpu_custom_call.1} parent=5 // pred_fallthru
        _
    $region6: #{tpu_custom_call.1} parent=1 // loop_footer
      %s32 = sadd.s32 1, %s28
    $region7: #{tpu_custom_call.1} parent=1 // loop_footer_branch
      %27 = sbr.rel target = $region3
    $region8: #{tpu_custom_call.1} parent=1 // loop_exit
      _
    %1748 = vsyncpa [#allocation7], 1
    %s1749 = scalar_lea.sflag [#allocation7], 1
    %1750 = vsyncpa %s1749, 1
    %1751 = vsyncpa [#allocation10], 1
    %s1752 = scalar_lea.sflag [#allocation10], 1
    %1753 = vsyncpa %s1752, 1
    %1754 = vsyncpa [#allocation13], 1
    %1755 = vsyncpa [#allocation16], 1
    %1756 = vsyncpa [#allocation8], 1
    %s1757 = scalar_lea.sflag [#allocation8], 1
    %1758 = vsyncpa %s1757, 1

// kernel: tpu_custom_call.1
$region0: #{tpu_custom_call.1}
  #allocation0 [shape = 'u32[]', space=smem, size = 0x4, offset = 0x4, fixed_abs, tag = 'smem constant byte address 0x4 - core index']
  #allocation1 [shape = 'u32[72,128]{1,0:T(1,128)}', space=vmem, size = 0x9000, scoped, tag = 'internal scratch']
  #allocation2 [shape = 'bf16[8,256]{1,0:T(8,128)(2,1)}', space=vmem, size = 0x1000, scoped, tag = 'scratch operand']
  #allocation3 [shape = 'bf16[8,256]{1,0:T(8,128)(2,1)}', space=vmem, size = 0x1000, scoped, tag = 'scratch operand']
  #allocation4 [shape = 'bf16[8,256]{1,0:T(8,128)(2,1)}', space=vmem, size = 0x1000, scoped, tag = 'scratch operand']
  #allocation5 [shape = 'bf16[8,256]{1,0:T(8,128)(2,1)}', space=vmem, size = 0x1000, scoped, tag = 'scratch operand']
  %s0 = inlined_call_operand.hbm [shape: bf16[2,8,256], index: 0, kind: input, shape index: {}]
  %s1 = inlined_call_operand.hbm [shape: bf16[2,8,256], index: 1, kind: input, shape index: {}]
  %s2 = inlined_call_operand.hbm [shape: bf16[2,8,256], index: 2, kind: input, shape index: {}]
  %s3 = inlined_call_operand.hbm [shape: bf16[256,256], index: 3, kind: input, shape index: {}]
  %s4 = inlined_call_operand.hbm [shape: bf16[256,256], index: 4, kind: input, shape index: {}]
  %s5 = inlined_call_operand.hbm [shape: bf16[256,256], index: 5, kind: input, shape index: {}]
  %s6 = inlined_call_operand.vmem [shape: f32[1,256], index: 6, kind: input, shape index: {}]
  %s7 = inlined_call_operand.vmem [shape: f32[1,256], index: 7, kind: input, shape index: {}]
  %s8 = inlined_call_operand.vmem [shape: f32[1,256], index: 8, kind: input, shape index: {}]
  %s9 = inlined_call_operand.hbm [shape: bf16[256,256], index: 9, kind: input, shape index: {}]
  %s10 = inlined_call_operand.vmem [shape: f32[1,256], index: 10, kind: input, shape index: {}]
  %s11 = inlined_call_operand.hbm [shape: f32[2,8,256], index: 11, kind: output, shape index: {}]
  %s12 = sld [smem:[#allocation0]]
  $region109: #{tpu_custom_call.1} parent=0
    _
  %s14 = ssub.s32 1, %s12
  %s15 = scalar_select 0, %s14, %s12
  $region1: #{tpu_custom_call.1} parent=0
    #allocation6 [shape = 'u8[8192]{0}', space=vmem, size = 0x2000, scoped, tag = 'input window, operand 0']
    #allocation7 [shape = 's32[2]{0}', space=sflag, size = 0x8, scoped, tag = 'scoped memory for tpu_custom_call.1']
    #allocation8 [shape = 's32[2]{0}', space=sflag, size = 0x8, scoped, tag = 'scoped memory for tpu_custom_call.1']
    #allocation9 [shape = 'u8[8192]{0}', space=vmem, size = 0x2000, scoped, tag = 'input window, operand 1']
    #allocation10 [shape = 's32[2]{0}', space=sflag, size = 0x8, scoped, tag = 'scoped memory for tpu_custom_call.1']
    #allocation11 [shape = 'u8[8192]{0}', space=vmem, size = 0x2000, scoped, tag = 'input window, operand 2']
    #allocation12 [shape = 'u8[131072]{0}', space=vmem, size = 0x20000, scoped, tag = 'input window, operand 3, single buffered']
    #allocation13 [shape = 's32[1]{0}', space=sflag, size = 0x4, scoped, tag = 'scoped memory for tpu_custom_call.1']
    #allocation14 [shape = 'u8[131072]{0}', space=vmem, size = 0x20000, scoped, tag = 'input window, operand 4, single buffered']
    #allocation15 [shape = 'u8[131072]{0}', space=vmem, size = 0x20000, scoped, tag = 'input window, operand 5, single buffered']
    #allocation16 [shape = 's32[1]{0}', space=sflag, size = 0x4, scoped, tag = 'scoped memory for tpu_custom_call.1']
    #allocation17 [shape = 'u8[131072]{0}', space=vmem, size = 0x20000, scoped, tag = 'input window, operand 9, single buffered']
    #allocation18 [shape = 'u8[16384]{0}', space=vmem, size = 0x4000, scoped, tag = 'output window, operand 0']
    %16 = vsyncpa [#allocation7], 0
    %s17 = scalar_lea.sflag [#allocation7], 1
    %18 = vsyncpa %s17, 0
    %19 = vsyncpa [#allocation10], 0
    %s20 = scalar_lea.sflag [#allocation10], 1
    %21 = vsyncpa %s20, 0
    %22 = vsyncpa [#allocation13], 0
    %23 = vsyncpa [#allocation16], 0
    %24 = vsyncpa [#allocation8], 0
    %s25 = scalar_lea.sflag [#allocation8], 1
    %26 = vsyncpa %s25, 0
    loop: start=0, step=1, limit=4
    $region2: #{tpu_custom_call.1} parent=1 // loop_pre_header
      _
    $region3: #{tpu_custom_call.1} parent=1 // loop_header
      %s28 = sphi 0, %s32
      %p29 = scmp.ge.s32.totalorder %s28, 4
      %s35 = sphi 0, %s47
      %s36 = sphi 0, %s43
      %s37 = sphi 0, %s35
      %s38 = sphi 0, %s36
      %s39 = sphi 0, %s37
      %s40 = sphi 0, %s38
      %s52 = sphi 0, %s54
      %s55 = sphi 0, %s52
      %s56 = sphi 0, %s55
      %s72 = sphi 0, %s56
      %s78 = sphi 0, %s80
      %s81 = sphi 0, %s78
      %s82 = sphi 0, %s81
      %s98 = sphi 0, %s82
      %s104 = sphi 0, %s106
      %s107 = sphi 0, %s104
      %s108 = sphi 0, %s107
      %s124 = sphi 0, %s108
      %s128 = sphi 0, %s128
      %s130 = sphi 0, %s128
      %s131 = sphi 0, %s130
      %s145 = sphi 0, %s131
      %s149 = sphi 0, %s149
      %s151 = sphi 0, %s149
      %s152 = sphi 0, %s151
      %s166 = sphi 0, %s152
      %s170 = sphi 0, %s170
      %s172 = sphi 0, %s170
      %s173 = sphi 0, %s172
      %s187 = sphi 0, %s173
      %s191 = sphi 0, %s191
      %s193 = sphi 0, %s191
      %s194 = sphi 0, %s193
      %s208 = sphi 0, %s194
      %s212 = sphi 0, %s212
      %s214 = sphi 0, %s212
      %s215 = sphi 0, %s214
      %s229 = sphi 0, %s215
      %s233 = sphi 0, %s233
      %s235 = sphi 0, %s233
      %s236 = sphi 0, %s235
      %s250 = sphi 0, %s236
      %s254 = sphi 0, %s254
      %s256 = sphi 0, %s254
      %s257 = sphi 0, %s256
      %s271 = sphi 0, %s257
      %s275 = sphi 0, %s275
      %s277 = sphi 0, %s275
      %s278 = sphi 0, %s277
      %s292 = sphi 0, %s278
      %s300 = sphi 0, %s302
      %s303 = sphi 0, %s300
      %s304 = sphi 0, %s303
      %s320 = sphi 0, %s304
    $region4: #{tpu_custom_call.1} parent=1 // loop_header_branch
      %31 = sbr.rel (%p29) target = $region8
    $region5: #{tpu_custom_call.1} parent=1 // loop_body
      %s33 = ssub.s32 %s28, 1
      %s34 = ssub.s32 %s28, 2
      %s41 = sadd.s32 1, %s36
      %p42 = scmp.ge.s32.totalorder %s41, 1
      %s43 = scalar_select %p42, 0, %s41
      %s44 = sadd.s32 1, %s35
      %s45 = scalar_select %p42, %s44, %s35
      %p46 = scmp.ge.s32.totalorder %s45, 2
      %s47 = scalar_select %p46, 0, %s45
      %s48 = ssub.s32 %s35, %s47
      %s49 = ssub.s32 %s36, %s43
      %s50 = sor.u32 %s48, %s49
      %p51 = scmp.eq.s32.totalorder %s50, 0
      %s53 = sadd.s32 %s52, 1
      %s54 = scalar_select %p51, %s52, %s53
      %p57 = pneg %p51
      %p58 = scmp.eq.s32.totalorder %s28, 1
      %p59 = por %p57, %p58
      %p60 = scmp.ne.s32.totalorder %s52, %s55
      %p61 = scmp.eq.s32.totalorder %s28, 0
      %p62 = por %p60, %p61
      %p63 = scmp.ne.s32.totalorder %s52, %s55
      %p64 = scmp.eq.s32.totalorder %s33, 1
      %p65 = por %p63, %p64
      %p66 = scmp.ne.s32.totalorder %s55, %s56
      %p67 = scmp.eq.s32.totalorder %s33, 0
      %p68 = por %p66, %p67
      %p69 = scmp.ne.s32.totalorder %s55, %s56
      %p70 = scmp.eq.s32.totalorder %s34, 1
      %p71 = por %p69, %p70
      %p73 = scmp.ne.s32.totalorder %s56, %s72
      %p74 = scmp.eq.s32.totalorder %s34, 0
      %p75 = por %p73, %p74
      %s76 = ssub.s32 %s35, %s47
      %p77 = scmp.eq.s32.totalorder %s76, 0
      %s79 = sadd.s32 %s78, 1
      %s80 = scalar_select %p77, %s78, %s79
      %p83 = pneg %p77
      %p84 = scmp.eq.s32.totalorder %s28, 1
      %p85 = por %p83, %p84
      %p86 = scmp.ne.s32.totalorder %s78, %s81
      %p87 = scmp.eq.s32.totalorder %s28, 0
      %p88 = por %p86, %p87
      %p89 = scmp.ne.s32.totalorder %s78, %s81
      %p90 = scmp.eq.s32.totalorder %s33, 1
      %p91 = por %p89, %p90
      %p92 = scmp.ne.s32.totalorder %s81, %s82
      %p93 = scmp.eq.s32.totalorder %s33, 0
      %p94 = por %p92, %p93
      %p95 = scmp.ne.s32.totalorder %s81, %s82
      %p96 = scmp.eq.s32.totalorder %s34, 1
      %p97 = por %p95, %p96
      %p99 = scmp.ne.s32.totalorder %s82, %s98
      %p100 = scmp.eq.s32.totalorder %s34, 0
      %p101 = por %p99, %p100
      %s102 = ssub.s32 %s35, %s47
      %p103 = scmp.eq.s32.totalorder %s102, 0
      %s105 = sadd.s32 %s104, 1
      %s106 = scalar_select %p103, %s104, %s105
      %p109 = pneg %p103
      %p110 = scmp.eq.s32.totalorder %s28, 1
      %p111 = por %p109, %p110
      %p112 = scmp.ne.s32.totalorder %s104, %s107
      %p113 = scmp.eq.s32.totalorder %s28, 0
      %p114 = por %p112, %p113
      %p115 = scmp.ne.s32.totalorder %s104, %s107
      %p116 = scmp.eq.s32.totalorder %s33, 1
      %p117 = por %p115, %p116
      %p118 = scmp.ne.s32.totalorder %s107, %s108
      %p119 = scmp.eq.s32.totalorder %s33, 0
      %p120 = por %p118, %p119
      %p121 = scmp.ne.s32.totalorder %s107, %s108
      %p122 = scmp.eq.s32.totalorder %s34, 1
      %p123 = por %p121, %p122
      %p125 = scmp.ne.s32.totalorder %s108, %s124
      %p126 = scmp.eq.s32.totalorder %s34, 0
      %p127 = por %p125, %p126
      %s129 = sadd.s32 %s128, 1
      %p132 = scmp.eq.s32.totalorder %s28, 1
      %p133 = scmp.ne.s32.totalorder %s128, %s130
      %p134 = scmp.eq.s32.totalorder %s28, 0
      %p135 = por %p133, %p134
      %p136 = scmp.ne.s32.totalorder %s128, %s130
      %p137 = scmp.eq.s32.totalorder %s33, 1
      %p138 = por %p136, %p137
      %p139 = scmp.ne.s32.totalorder %s130, %s131
      %p140 = scmp.eq.s32.totalorder %s33, 0
      %p141 = por %p139, %p140
      %p142 = scmp.ne.s32.totalorder %s130, %s131
      %p143 = scmp.eq.s32.totalorder %s34, 1
      %p144 = por %p142, %p143
      %p146 = scmp.ne.s32.totalorder %s131, %s145
      %p147 = scmp.eq.s32.totalorder %s34, 0
      %p148 = por %p146, %p147
      %s150 = sadd.s32 %s149, 1
      %p153 = scmp.eq.s32.totalorder %s28, 1
      %p154 = scmp.ne.s32.totalorder %s149, %s151
      %p155 = scmp.eq.s32.totalorder %s28, 0
      %p156 = por %p154, %p155
      %p157 = scmp.ne.s32.totalorder %s149, %s151
      %p158 = scmp.eq.s32.totalorder %s33, 1
      %p159 = por %p157, %p158
      %p160 = scmp.ne.s32.totalorder %s151, %s152
      %p161 = scmp.eq.s32.totalorder %s33, 0
      %p162 = por %p160, %p161
      %p163 = scmp.ne.s32.totalorder %s151, %s152
      %p164 = scmp.eq.s32.totalorder %s34, 1
      %p165 = por %p163, %p164
      %p167 = scmp.ne.s32.totalorder %s152, %s166
      %p168 = scmp.eq.s32.totalorder %s34, 0
      %p169 = por %p167, %p168
      %s171 = sadd.s32 %s170, 1
      %p174 = scmp.eq.s32.totalorder %s28, 1
      %p175 = scmp.ne.s32.totalorder %s170, %s172
      %p176 = scmp.eq.s32.totalorder %s28, 0
      %p177 = por %p175, %p176
      %p178 = scmp.ne.s32.totalorder %s170, %s172
      %p179 = scmp.eq.s32.totalorder %s33, 1
      %p180 = por %p178, %p179
      %p181 = scmp.ne.s32.totalorder %s172, %s173
      %p182 = scmp.eq.s32.totalorder %s33, 0
      %p183 = por %p181, %p182
      %p184 = scmp.ne.s32.totalorder %s172, %s173
      %p185 = scmp.eq.s32.totalorder %s34, 1
      %p186 = por %p184, %p185
      %p188 = scmp.ne.s32.totalorder %s173, %s187
      %p189 = scmp.eq.s32.totalorder %s34, 0
      %p190 = por %p188, %p189
      %s192 = sadd.s32 %s191, 1
      %p195 = scmp.eq.s32.totalorder %s28, 1
      %p196 = scmp.ne.s32.totalorder %s191, %s193
      %p197 = scmp.eq.s32.totalorder %s28, 0
      %p198 = por %p196, %p197
      %p199 = scmp.ne.s32.totalorder %s191, %s193
      %p200 = scmp.eq.s32.totalorder %s33, 1
      %p201 = por %p199, %p200
      %p202 = scmp.ne.s32.totalorder %s193, %s194
      %p203 = scmp.eq.s32.totalorder %s33, 0
      %p204 = por %p202, %p203
      %p205 = scmp.ne.s32.totalorder %s193, %s194
      %p206 = scmp.eq.s32.totalorder %s34, 1
      %p207 = por %p205, %p206
      %p209 = scmp.ne.s32.totalorder %s194, %s208
      %p210 = scmp.eq.s32.totalorder %s34, 0
      %p211 = por %p209, %p210
      %s213 = sadd.s32 %s212, 1
      %p216 = scmp.eq.s32.totalorder %s28, 1
      %p217 = scmp.ne.s32.totalorder %s212, %s214
      %p218 = scmp.eq.s32.totalorder %s28, 0
      %p219 = por %p217, %p218
      %p220 = scmp.ne.s32.totalorder %s212, %s214
      %p221 = scmp.eq.s32.totalorder %s33, 1
      %p222 = por %p220, %p221
      %p223 = scmp.ne.s32.totalorder %s214, %s215
      %p224 = scmp.eq.s32.totalorder %s33, 0
      %p225 = por %p223, %p224
      %p226 = scmp.ne.s32.totalorder %s214, %s215
      %p227 = scmp.eq.s32.totalorder %s34, 1
      %p228 = por %p226, %p227
      %p230 = scmp.ne.s32.totalorder %s215, %s229
      %p231 = scmp.eq.s32.totalorder %s34, 0
      %p232 = por %p230, %p231
      %s234 = sadd.s32 %s233, 1
      %p237 = scmp.eq.s32.totalorder %s28, 1
      %p238 = scmp.ne.s32.totalorder %s233, %s235
      %p239 = scmp.eq.s32.totalorder %s28, 0
      %p240 = por %p238, %p239
      %p241 = scmp.ne.s32.totalorder %s233, %s235
      %p242 = scmp.eq.s32.totalorder %s33, 1
      %p243 = por %p241, %p242
      %p244 = scmp.ne.s32.totalorder %s235, %s236
      %p245 = scmp.eq.s32.totalorder %s33, 0
      %p246 = por %p244, %p245
      %p247 = scmp.ne.s32.totalorder %s235, %s236
      %p248 = scmp.eq.s32.totalorder %s34, 1
      %p249 = por %p247, %p248
      %p251 = scmp.ne.s32.totalorder %s236, %s250
      %p252 = scmp.eq.s32.totalorder %s34, 0
      %p253 = por %p251, %p252
      %s255 = sadd.s32 %s254, 1
      %p258 = scmp.eq.s32.totalorder %s28, 1
      %p259 = scmp.ne.s32.totalorder %s254, %s256
      %p260 = scmp.eq.s32.totalorder %s28, 0
      %p261 = por %p259, %p260
      %p262 = scmp.ne.s32.totalorder %s254, %s256
      %p263 = scmp.eq.s32.totalorder %s33, 1
      %p264 = por %p262, %p263
      %p265 = scmp.ne.s32.totalorder %s256, %s257
      %p266 = scmp.eq.s32.totalorder %s33, 0
      %p267 = por %p265, %p266
      %p268 = scmp.ne.s32.totalorder %s256, %s257
      %p269 = scmp.eq.s32.totalorder %s34, 1
      %p270 = por %p268, %p269
      %p272 = scmp.ne.s32.totalorder %s257, %s271
      %p273 = scmp.eq.s32.totalorder %s34, 0
      %p274 = por %p272, %p273
      %s276 = sadd.s32 %s275, 1
      %p279 = scmp.eq.s32.totalorder %s28, 1
      %p280 = scmp.ne.s32.totalorder %s275, %s277
      %p281 = scmp.eq.s32.totalorder %s28, 0
      %p282 = por %p280, %p281
      %p283 = scmp.ne.s32.totalorder %s275, %s277
      %p284 = scmp.eq.s32.totalorder %s33, 1
      %p285 = por %p283, %p284
      %p286 = scmp.ne.s32.totalorder %s277, %s278
      %p287 = scmp.eq.s32.totalorder %s33, 0
      %p288 = por %p286, %p287
      %p289 = scmp.ne.s32.totalorder %s277, %s278
      %p290 = scmp.eq.s32.totalorder %s34, 1
      %p291 = por %p289, %p290
      %p293 = scmp.ne.s32.totalorder %s278, %s292
      %p294 = scmp.eq.s32.totalorder %s34, 0
      %p295 = por %p293, %p294
      %s296 = ssub.s32 %s35, %s47
      %s297 = ssub.s32 %s36, %s43
      %s298 = sor.u32 %s296, %s297
      %p299 = scmp.eq.s32.totalorder %s298, 0
      %s301 = sadd.s32 %s300, 1
      %s302 = scalar_select %p299, %s300, %s301
      %p305 = pneg %p299
      %p306 = scmp.eq.s32.totalorder %s28, 1
      %p307 = por %p305, %p306
      %p308 = scmp.ne.s32.totalorder %s300, %s303
      %p309 = scmp.eq.s32.totalorder %s28, 0
      %p310 = por %p308, %p309
      %p311 = scmp.ne.s32.totalorder %s300, %s303
      %p312 = scmp.eq.s32.totalorder %s33, 1
      %p313 = por %p311, %p312
      %p314 = scmp.ne.s32.totalorder %s303, %s304
      %p315 = scmp.eq.s32.totalorder %s33, 0
      %p316 = por %p314, %p315
      %p317 = scmp.ne.s32.totalorder %s303, %s304
      %p318 = scmp.eq.s32.totalorder %s34, 1
      %p319 = por %p317, %p318
      %p321 = scmp.ne.s32.totalorder %s304, %s320
      %p322 = scmp.eq.s32.totalorder %s34, 0
      %p323 = por %p321, %p322
      %p324 = scmp.le.s32.totalorder 1, %s28
      %p325 = scmp.lt.s32.totalorder %s28, 3
      %p326 = pnand %p324, %p325
      %p327 = pneg %p326
      // Predicated region
      $region9: #{tpu_custom_call.1} parent=5 // pred_check
        _
      $region10: #{tpu_custom_call.1} parent=5 // pred_check_branch
        %329 = sbr.rel (%p326) target = $region12
      $region11: #{tpu_custom_call.1} parent=5 // pred_region
        %s330 = ssub.s32 %s28, 1
        // Predicated region
        $region13: #{tpu_custom_call.1} parent=11 // pred_check
          %p331 = pneg %p141
        $region14: #{tpu_custom_call.1} parent=11 // pred_check_branch
          %333 = sbr.rel (%p331) target = $region16
        $region15: #{tpu_custom_call.1} parent=11 // pred_region
          %335 = vsyncadd [#allocation13], 0
          %s336 = sshll.u32 %s3, 4
          %s337 = int_to_ptr.hbm [resolvable:$true] %s336
          %s338 = sshll.u32 [#allocation12], 4
          %s339 = int_to_ptr.vmem [resolvable:$true] %s338
          %344 = dma.hbm_to_vmem [thread:$0]  %s337, 4096, %s339, [#allocation13], 128, 128, 8
        $region16: #{tpu_custom_call.1} parent=11 // pred_fallthru
          _
        // Predicated region
        $region17: #{tpu_custom_call.1} parent=11 // pred_check
          %p345 = pneg %p162
        $region18: #{tpu_custom_call.1} parent=11 // pred_check_branch
          %347 = sbr.rel (%p345) target = $region20
        $region19: #{tpu_custom_call.1} parent=11 // pred_region
          %349 = vsyncadd [#allocation13], 0
          %s350 = sshll.u32 %s4, 4
          %s351 = int_to_ptr.hbm [resolvable:$true] %s350
          %s352 = sshll.u32 [#allocation14], 4
          %s353 = int_to_ptr.vmem [resolvable:$true] %s352
          %358 = dma.hbm_to_vmem [thread:$0]  %s351, 4096, %s353, [#allocation13], 128, 128, 8
        $region20: #{tpu_custom_call.1} parent=11 // pred_fallthru
          _
        // Predicated region
        $region21: #{tpu_custom_call.1} parent=11 // pred_check
          %p359 = pneg %p183
        $region22: #{tpu_custom_call.1} parent=11 // pred_check_branch
          %361 = sbr.rel (%p359) target = $region24
        $region23: #{tpu_custom_call.1} parent=11 // pred_region
          %363 = vsyncadd [#allocation16], 0
          %s364 = sshll.u32 %s5, 4
          %s365 = int_to_ptr.hbm [resolvable:$true] %s364
          %s366 = sshll.u32 [#allocation15], 4
          %s367 = int_to_ptr.vmem [resolvable:$true] %s366
          %372 = dma.hbm_to_vmem [thread:$0]  %s365, 4096, %s367, [#allocation16], 128, 128, 8
        $region24: #{tpu_custom_call.1} parent=11 // pred_fallthru
          _
        // Predicated region
        $region25: #{tpu_custom_call.1} parent=11 // pred_check
          %p373 = pneg %p204
        $region26: #{tpu_custom_call.1} parent=11 // pred_check_branch
          %375 = sbr.rel (%p373) target = $region28
        $region27: #{tpu_custom_call.1} parent=11 // pred_region
          _
        $region28: #{tpu_custom_call.1} parent=11 // pred_fallthru
          _
        // Predicated region
        $region29: #{tpu_custom_call.1} parent=11 // pred_check
          %p376 = pneg %p225
        $region30: #{tpu_custom_call.1} parent=11 // pred_check_branch
          %378 = sbr.rel (%p376) target = $region32
        $region31: #{tpu_custom_call.1} parent=11 // pred_region
          _
        $region32: #{tpu_custom_call.1} parent=11 // pred_fallthru
          _
        // Predicated region
        $region33: #{tpu_custom_call.1} parent=11 // pred_check
          %p379 = pneg %p246
        $region34: #{tpu_custom_call.1} parent=11 // pred_check_branch
          %381 = sbr.rel (%p379) target = $region36
        $region35: #{tpu_custom_call.1} parent=11 // pred_region
          _
        $region36: #{tpu_custom_call.1} parent=11 // pred_fallthru
          _
        // Predicated region
        $region37: #{tpu_custom_call.1} parent=11 // pred_check
          %p382 = pneg %p267
        $region38: #{tpu_custom_call.1} parent=11 // pred_check_branch
          %384 = sbr.rel (%p382) target = $region40
        $region39: #{tpu_custom_call.1} parent=11 // pred_region
          %386 = vsyncadd [#allocation16], 0
          %s387 = sshll.u32 %s9, 4
          %s388 = int_to_ptr.hbm [resolvable:$true] %s387
          %s389 = sshll.u32 [#allocation17], 4
          %s390 = int_to_ptr.vmem [resolvable:$true] %s389
          %395 = dma.hbm_to_vmem [thread:$0]  %s388, 4096, %s390, [#allocation16], 128, 128, 8
        $region40: #{tpu_custom_call.1} parent=11 // pred_fallthru
          _
        // Predicated region
        $region41: #{tpu_custom_call.1} parent=11 // pred_check
          %p396 = pneg %p288
        $region42: #{tpu_custom_call.1} parent=11 // pred_check_branch
          %398 = sbr.rel (%p396) target = $region44
        $region43: #{tpu_custom_call.1} parent=11 // pred_region
          _
        $region44: #{tpu_custom_call.1} parent=11 // pred_fallthru
          _
      $region12: #{tpu_custom_call.1} parent=5 // pred_fallthru
        _
      %p399 = scmp.lt.s32.totalorder %s28, 2
      // Predicated region
      $region45: #{tpu_custom_call.1} parent=5 // pred_check
        %p400 = pneg %p399
      $region46: #{tpu_custom_call.1} parent=5 // pred_check_branch
        %402 = sbr.rel (%p400) target = $region48
      $region47: #{tpu_custom_call.1} parent=5 // pred_region
        // Predicated region
        $region49: #{tpu_custom_call.1} parent=47 // pred_check
          %p403 = pneg %p62
        $region50: #{tpu_custom_call.1} parent=47 // pred_check_branch
          %405 = sbr.rel (%p403) target = $region52
        $region51: #{tpu_custom_call.1} parent=47 // pred_region
          %s406 = sand.u32 %s52, 1
          %s407 = scalar_lea.sflag [#allocation7], %s406
          %s408 = sand.u32 %s52, 1
          %s409 = smul.addr %s408, 8
          %s410 = scalar_lea.vmem [#allocation6], %s409
          %412 = vsyncadd %s407, 0
          %s413 = smul.addr %s36, 2
          %s414 = smul.addr %s35, 2
          %s415 = sadd.s32 %s413, %s414
          %s416 = smul.addr %s415, 4
          %s417 = scalar_lea.hbm %s0, %s416
          %s419 = sshll.u32 %s417, 4
          %s420 = int_to_ptr.hbm [resolvable:$true] %s419
          %s421 = sshll.u32 %s410, 4
          %s422 = int_to_ptr.vmem [resolvable:$true] %s421
          %424 = dma.hbm_to_vmem [thread:$0]  %s420, 128, %s422, %s407
        $region52: #{tpu_custom_call.1} parent=47 // pred_fallthru
          _
        // Predicated region
        $region53: #{tpu_custom_call.1} parent=47 // pred_check
          %p425 = pneg %p88
        $region54: #{tpu_custom_call.1} parent=47 // pred_check_branch
          %427 = sbr.rel (%p425) target = $region56
        $region55: #{tpu_custom_call.1} parent=47 // pred_region
          %s428 = sand.u32 %s28, 1
          %s429 = scalar_lea.sflag [#allocation10], %s428
          %s430 = sand.u32 %s78, 1
          %s431 = smul.addr %s430, 8
          %s432 = scalar_lea.vmem [#allocation9], %s431
          %434 = vsyncadd %s429, 0
          %s435 = smul.addr %s35, 2
          %s436 = smul.addr %s435, 4
          %s437 = scalar_lea.hbm %s1, %s436
          %s439 = sshll.u32 %s437, 4
          %s440 = int_to_ptr.hbm [resolvable:$true] %s439
          %s441 = sshll.u32 %s432, 4
          %s442 = int_to_ptr.vmem [resolvable:$true] %s441
          %444 = dma.hbm_to_vmem [thread:$0]  %s440, 128, %s442, %s429
        $region56: #{tpu_custom_call.1} parent=47 // pred_fallthru
          _
        // Predicated region
        $region57: #{tpu_custom_call.1} parent=47 // pred_check
          %p445 = pneg %p114
        $region58: #{tpu_custom_call.1} parent=47 // pred_check_branch
          %447 = sbr.rel (%p445) target = $region60
        $region59: #{tpu_custom_call.1} parent=47 // pred_region
          %s448 = sand.u32 %s28, 1
          %s449 = scalar_lea.sflag [#allocation10], %s448
          %s450 = sand.u32 %s104, 1
          %s451 = smul.addr %s450, 8
          %s452 = scalar_lea.vmem [#allocation11], %s451
          %454 = vsyncadd %s449, 0
          %s455 = smul.addr %s35, 2
          %s456 = smul.addr %s455, 4
          %s457 = scalar_lea.hbm %s2, %s456
          %s459 = sshll.u32 %s457, 4
          %s460 = int_to_ptr.hbm [resolvable:$true] %s459
          %s461 = sshll.u32 %s452, 4
          %s462 = int_to_ptr.vmem [resolvable:$true] %s461
          %464 = dma.hbm_to_vmem [thread:$0]  %s460, 128, %s462, %s449
        $region60: #{tpu_custom_call.1} parent=47 // pred_fallthru
          _
      $region48: #{tpu_custom_call.1} parent=5 // pred_fallthru
        _
      %p465 = scmp.le.s32.totalorder 1, %s28
      %p466 = scmp.lt.s32.totalorder %s28, 3
      %p467 = pnand %p465, %p466
      %p468 = pneg %p467
      // Predicated region
      $region61: #{tpu_custom_call.1} parent=5 // pred_check
        _
      $region62: #{tpu_custom_call.1} parent=5 // pred_check_branch
        %470 = sbr.rel (%p467) target = $region64
      $region63: #{tpu_custom_call.1} parent=5 // pred_region
        %s471 = ssub.s32 %s28, 1
        %s472 = sand.u32 %s55, 1
        %s473 = scalar_lea.sflag [#allocation7], %s472
        %s474 = sand.u32 %s55, 1
        %s475 = smul.addr %s474, 8
        %s476 = scalar_lea.vmem [#allocation6], %s475
        // Predicated region
        $region65: #{tpu_custom_call.1} parent=63 // pred_check
          %p477 = pneg %p68
        $region66: #{tpu_custom_call.1} parent=63 // pred_check_branch
          %479 = sbr.rel (%p477) target = $region68
        $region67: #{tpu_custom_call.1} parent=63 // pred_region
          %481 = dma.done %s473, 128
        $region68: #{tpu_custom_call.1} parent=63 // pred_fallthru
          _
        %s482 = sand.u32 %s33, 1
        %s483 = scalar_lea.sflag [#allocation10], %s482
        %s484 = sand.u32 %s81, 1
        %s485 = smul.addr %s484, 8
        %s486 = scalar_lea.vmem [#allocation9], %s485
        // Predicated region
        $region69: #{tpu_custom_call.1} parent=63 // pred_check
          %p487 = pneg %p94
        $region70: #{tpu_custom_call.1} parent=63 // pred_check_branch
          %489 = sbr.rel (%p487) target = $region72
        $region71: #{tpu_custom_call.1} parent=63 // pred_region
          %491 = dma.done %s483, 128
        $region72: #{tpu_custom_call.1} parent=63 // pred_fallthru
          _
        %s492 = sand.u32 %s33, 1
        %s493 = scalar_lea.sflag [#allocation10], %s492
        %s494 = sand.u32 %s107, 1
        %s495 = smul.addr %s494, 8
        %s496 = scalar_lea.vmem [#allocation11], %s495
        // Predicated region
        $region73: #{tpu_custom_call.1} parent=63 // pred_check
          %p497 = pneg %p120
        $region74: #{tpu_custom_call.1} parent=63 // pred_check_branch
          %499 = sbr.rel (%p497) target = $region76
        $region75: #{tpu_custom_call.1} parent=63 // pred_region
          %501 = dma.done %s493, 128
        $region76: #{tpu_custom_call.1} parent=63 // pred_fallthru
          _
        // Predicated region
        $region77: #{tpu_custom_call.1} parent=63 // pred_check
          %p502 = pneg %p141
        $region78: #{tpu_custom_call.1} parent=63 // pred_check_branch
          %504 = sbr.rel (%p502) target = $region80
        $region79: #{tpu_custom_call.1} parent=63 // pred_region
          %506 = dma.done [#allocation13], 4096
        $region80: #{tpu_custom_call.1} parent=63 // pred_fallthru
          _
        // Predicated region
        $region81: #{tpu_custom_call.1} parent=63 // pred_check
          %p507 = pneg %p162
        $region82: #{tpu_custom_call.1} parent=63 // pred_check_branch
          %509 = sbr.rel (%p507) target = $region84
        $region83: #{tpu_custom_call.1} parent=63 // pred_region
          %511 = dma.done [#allocation13], 4096
        $region84: #{tpu_custom_call.1} parent=63 // pred_fallthru
          _
        // Predicated region
        $region85: #{tpu_custom_call.1} parent=63 // pred_check
          %p512 = pneg %p183
        $region86: #{tpu_custom_call.1} parent=63 // pred_check_branch
          %514 = sbr.rel (%p512) target = $region88
        $region87: #{tpu_custom_call.1} parent=63 // pred_region
          %516 = dma.done [#allocation16], 4096
        $region88: #{tpu_custom_call.1} parent=63 // pred_fallthru
          _
        // Predicated region
        $region89: #{tpu_custom_call.1} parent=63 // pred_check
          %p517 = pneg %p267
        $region90: #{tpu_custom_call.1} parent=63 // pred_check_branch
          %519 = sbr.rel (%p517) target = $region92
        $region91: #{tpu_custom_call.1} parent=63 // pred_region
          %521 = dma.done [#allocation16], 4096
        $region92: #{tpu_custom_call.1} parent=63 // pred_fallthru
          _
        %s522 = sand.u32 %s55, 1
        %s523 = scalar_lea.sflag [#allocation7], %s522
        %s524 = sand.u32 %s55, 1
        %s525 = smul.addr %s524, 8
        %s526 = scalar_lea.vmem [#allocation6], %s525
        %p527 = pneg %p68
        %p528 = pneg %p65
        %s529 = sand.u32 %s33, 1
        %s530 = scalar_lea.sflag [#allocation10], %s529
        %s531 = sand.u32 %s81, 1
        %s532 = smul.addr %s531, 8
        %s533 = scalar_lea.vmem [#allocation9], %s532
        %p534 = pneg %p94
        %p535 = pneg %p91
        %s536 = sand.u32 %s33, 1
        %s537 = scalar_lea.sflag [#allocation10], %s536
        %s538 = sand.u32 %s107, 1
        %s539 = smul.addr %s538, 8
        %s540 = scalar_lea.vmem [#allocation11], %s539
        %p541 = pneg %p120
        %p542 = pneg %p117
        %p543 = pneg %p141
        %p544 = pneg %p138
        %p545 = pneg %p162
        %p546 = pneg %p159
        %p547 = pneg %p183
        %p548 = pneg %p180
        %p549 = pneg %p204
        %p550 = pneg %p201
        %p551 = pneg %p225
        %p552 = pneg %p222
        %p553 = pneg %p246
        %p554 = pneg %p243
        %p555 = pneg %p267
        %p556 = pneg %p264
        %p557 = pneg %p288
        %p558 = pneg %p285
        %p559 = pneg %p316
        %p560 = pneg %p313
        %s561 = sand.u32 %s303, 1
        %s562 = scalar_lea.sflag [#allocation8], %s561
        %s563 = sand.u32 %s303, 1
        %s564 = smul.addr %s563, 16
        %s565 = scalar_lea.vmem [#allocation18], %s564
        %p567 = scmp.eq.s32.totalorder %s38, 0
        // Predicated region
        $region93: #{tpu_custom_call.1} parent=63 // pred_check
          %p568 = pneg %p567
        $region94: #{tpu_custom_call.1} parent=63 // pred_check_branch
          %570 = sbr.rel (%p568) target = $region96
        $region95: #{tpu_custom_call.1} parent=63 // pred_region
          %v571 = vld [vmem:[%s486] sm:$0xff]
          %v572 = vld [vmem:[#allocation14] sm:$0xff]
          %v573 = vld [vmem:[#allocation14 + $0x8] sm:$0xff]
          %v574 = vld [vmem:[#allocation14 + $0x10] sm:$0xff]
          %v575 = vld [vmem:[#allocation14 + $0x18] sm:$0xff]
          %v576 = vld [vmem:[#allocation14 + $0x20] sm:$0xff]
          %v577 = vld [vmem:[#allocation14 + $0x28] sm:$0xff]
          %v578 = vld [vmem:[#allocation14 + $0x30] sm:$0xff]
          %v579 = vld [vmem:[#allocation14 + $0x38] sm:$0xff]
          %v580 = vld [vmem:[#allocation14 + $0x40] sm:$0xff]
          %v581 = vld [vmem:[#allocation14 + $0x48] sm:$0xff]
          %v582 = vld [vmem:[#allocation14 + $0x50] sm:$0xff]
          %v583 = vld [vmem:[#allocation14 + $0x58] sm:$0xff]
          %v584 = vld [vmem:[#allocation14 + $0x60] sm:$0xff]
          %v585 = vld [vmem:[#allocation14 + $0x68] sm:$0xff]
          %v586 = vld [vmem:[#allocation14 + $0x70] sm:$0xff]
          %v587 = vld [vmem:[#allocation14 + $0x78] sm:$0xff]
          %v588 = vld [vmem:[#allocation14 + $0x80] sm:$0xff]
          %v589 = vld [vmem:[#allocation14 + $0x88] sm:$0xff]
          %v590 = vld [vmem:[#allocation14 + $0x90] sm:$0xff]
          %v591 = vld [vmem:[#allocation14 + $0x98] sm:$0xff]
          %v592 = vld [vmem:[#allocation14 + $0xa0] sm:$0xff]
          %v593 = vld [vmem:[#allocation14 + $0xa8] sm:$0xff]
          %v594 = vld [vmem:[#allocation14 + $0xb0] sm:$0xff]
          %v595 = vld [vmem:[#allocation14 + $0xb8] sm:$0xff]
          %v596 = vld [vmem:[#allocation14 + $0xc0] sm:$0xff]
          %v597 = vld [vmem:[#allocation14 + $0xc8] sm:$0xff]
          %v598 = vld [vmem:[#allocation14 + $0xd0] sm:$0xff]
          %v599 = vld [vmem:[#allocation14 + $0xd8] sm:$0xff]
          %v600 = vld [vmem:[#allocation14 + $0xe0] sm:$0xff]
          %v601 = vld [vmem:[#allocation14 + $0xe8] sm:$0xff]
          %v602 = vld [vmem:[#allocation14 + $0xf0] sm:$0xff]
          %v603 = vld [vmem:[#allocation14 + $0xf8] sm:$0xff]
          %v604 = vld [vmem:[%s7] sm:$0x3]
          %v606 = vperm.slane %v604, 0
          %v607 = vperm.slane %v604, 1
          %v611 = vunpack.c.l.b16 %v571
          %v612 = vunpack.c.h.b16 %v571
          %v613 = vpack.c.b16 %v611, %v611
          %v614 = vpack.c.b16 %v612, %v612
          %v649 = vunpack.c.l.b16 %v572
          %v650 = vunpack.c.h.b16 %v572
          %v651 = vunpack.c.l.b16 %v573
          %v652 = vunpack.c.h.b16 %v573
          %v653 = vunpack.c.l.b16 %v574
          %v654 = vunpack.c.h.b16 %v574
          %v655 = vunpack.c.l.b16 %v575
          %v656 = vunpack.c.h.b16 %v575
          %v657 = vunpack.c.l.b16 %v576
          %v658 = vunpack.c.h.b16 %v576
          %v659 = vunpack.c.l.b16 %v577
          %v660 = vunpack.c.h.b16 %v577
          %v661 = vunpack.c.l.b16 %v578
          %v662 = vunpack.c.h.b16 %v578
          %v663 = vunpack.c.l.b16 %v579
          %v664 = vunpack.c.h.b16 %v579
          %v665 = vunpack.c.l.b16 %v580
          %v666 = vunpack.c.h.b16 %v580
          %v667 = vunpack.c.l.b16 %v581
          %v668 = vunpack.c.h.b16 %v581
          %v669 = vunpack.c.l.b16 %v582
          %v670 = vunpack.c.h.b16 %v582
          %v671 = vunpack.c.l.b16 %v583
          %v672 = vunpack.c.h.b16 %v583
          %v673 = vunpack.c.l.b16 %v584
          %v674 = vunpack.c.h.b16 %v584
          %v675 = vunpack.c.l.b16 %v585
          %v676 = vunpack.c.h.b16 %v585
          %v677 = vunpack.c.l.b16 %v586
          %v678 = vunpack.c.h.b16 %v586
          %v679 = vunpack.c.l.b16 %v587
          %v680 = vunpack.c.h.b16 %v587
          %v681 = vunpack.c.l.b16 %v588
          %v682 = vunpack.c.h.b16 %v588
          %v683 = vunpack.c.l.b16 %v589
          %v684 = vunpack.c.h.b16 %v589
          %v685 = vunpack.c.l.b16 %v590
          %v686 = vunpack.c.h.b16 %v590
          %v687 = vunpack.c.l.b16 %v591
          %v688 = vunpack.c.h.b16 %v591
          %v689 = vunpack.c.l.b16 %v592
          %v690 = vunpack.c.h.b16 %v592
          %v691 = vunpack.c.l.b16 %v593
          %v692 = vunpack.c.h.b16 %v593
          %v693 = vunpack.c.l.b16 %v594
          %v694 = vunpack.c.h.b16 %v594
          %v695 = vunpack.c.l.b16 %v595
          %v696 = vunpack.c.h.b16 %v595
          %v697 = vunpack.c.l.b16 %v596
          %v698 = vunpack.c.h.b16 %v596
          %v699 = vunpack.c.l.b16 %v597
          %v700 = vunpack.c.h.b16 %v597
          %v701 = vunpack.c.l.b16 %v598
          %v702 = vunpack.c.h.b16 %v598
          %v703 = vunpack.c.l.b16 %v599
          %v704 = vunpack.c.h.b16 %v599
          %v705 = vunpack.c.l.b16 %v600
          %v706 = vunpack.c.h.b16 %v600
          %v707 = vunpack.c.l.b16 %v601
          %v708 = vunpack.c.h.b16 %v601
          %v709 = vunpack.c.l.b16 %v602
          %v710 = vunpack.c.h.b16 %v602
          %v711 = vunpack.c.l.b16 %v603
          %v712 = vunpack.c.h.b16 %v603
          %v713 = vpack.c.b16 %v651, %v649
          %v714 = vpack.c.b16 %v652, %v650
          %v715 = vpack.c.b16 %v655, %v653
          %v716 = vpack.c.b16 %v656, %v654
          %v717 = vpack.c.b16 %v659, %v657
          %v718 = vpack.c.b16 %v660, %v658
          %v719 = vpack.c.b16 %v663, %v661
          %v720 = vpack.c.b16 %v664, %v662
          %v721 = vpack.c.b16 %v667, %v665
          %v722 = vpack.c.b16 %v668, %v666
          %v723 = vpack.c.b16 %v671, %v669
          %v724 = vpack.c.b16 %v672, %v670
          %v725 = vpack.c.b16 %v675, %v673
          %v726 = vpack.c.b16 %v676, %v674
          %v727 = vpack.c.b16 %v679, %v677
          %v728 = vpack.c.b16 %v680, %v678
          %v729 = vpack.c.b16 %v683, %v681
          %v730 = vpack.c.b16 %v684, %v682
          %v731 = vpack.c.b16 %v687, %v685
          %v732 = vpack.c.b16 %v688, %v686
          %v733 = vpack.c.b16 %v691, %v689
          %v734 = vpack.c.b16 %v692, %v690
          %v735 = vpack.c.b16 %v695, %v693
          %v736 = vpack.c.b16 %v696, %v694
          %v737 = vpack.c.b16 %v699, %v697
          %v738 = vpack.c.b16 %v700, %v698
          %v739 = vpack.c.b16 %v703, %v701
          %v740 = vpack.c.b16 %v704, %v702
          %v741 = vpack.c.b16 %v707, %v705
          %v742 = vpack.c.b16 %v708, %v706
          %v743 = vpack.c.b16 %v711, %v709
          %v744 = vpack.c.b16 %v712, %v710
          %777 = vmatpush.bf16.msra.mxu0 %v727
          %778 = vmatpush.bf16.msra.mxu0 %v725
          %779 = vmatpush.bf16.msra.mxu0 %v723
          %780 = vmatpush.bf16.msra.mxu0 %v721
          %781 = vmatpush.bf16.msra.mxu0 %v719
          %782 = vmatpush.bf16.msra.mxu0 %v717
          %783 = vmatpush.bf16.msra.mxu0 %v715
          %784 = vmatpush.bf16.msra.mxu0 %v713
          %785 = vmatmul.bf16.gmra.mxu0 %v613
          %v786 = vpop.f32.mrf.mxu0
          %v787 = vadd.f32 %v606, %v786
          %v788 = vpop.f32.mrf.mxu0
          %789 = vdwg.mxu0
          %790 = vmatpush.bf16.msra.mxu0 %v743
          %791 = vmatpush.bf16.msra.mxu0 %v741
          %792 = vmatpush.bf16.msra.mxu0 %v739
          %793 = vmatpush.bf16.msra.mxu0 %v737
          %794 = vmatpush.bf16.msra.mxu0 %v735
          %795 = vmatpush.bf16.msra.mxu0 %v733
          %796 = vmatpush.bf16.msra.mxu0 %v731
          %797 = vmatpush.bf16.msra.mxu0 %v729
          %798 = vmatmul.bf16.gmra.mxu0 %v614
          %v799 = vpop.f32.mrf.mxu0
          %v800 = vadd.f32 %v787, %v799
          %v801 = vpop.f32.mrf.mxu0
          %802 = vdwg.mxu0
          %803 = vmatpush.bf16.msra.mxu0 %v728
          %804 = vmatpush.bf16.msra.mxu0 %v726
          %805 = vmatpush.bf16.msra.mxu0 %v724
          %806 = vmatpush.bf16.msra.mxu0 %v722
          %807 = vmatpush.bf16.msra.mxu0 %v720
          %808 = vmatpush.bf16.msra.mxu0 %v718
          %809 = vmatpush.bf16.msra.mxu0 %v716
          %810 = vmatpush.bf16.msra.mxu0 %v714
          %811 = vmatmul.bf16.gmra.mxu0 %v613
          %v812 = vpop.f32.mrf.mxu0
          %v813 = vadd.f32 %v607, %v812
          %v814 = vpop.f32.mrf.mxu0
          %815 = vdwg.mxu0
          %816 = vmatpush.bf16.msra.mxu0 %v744
          %817 = vmatpush.bf16.msra.mxu0 %v742
          %818 = vmatpush.bf16.msra.mxu0 %v740
          %819 = vmatpush.bf16.msra.mxu0 %v738
          %820 = vmatpush.bf16.msra.mxu0 %v736
          %821 = vmatpush.bf16.msra.mxu0 %v734
          %822 = vmatpush.bf16.msra.mxu0 %v732
          %823 = vmatpush.bf16.msra.mxu0 %v730
          %824 = vmatmul.bf16.gmra.mxu0 %v614
          %v825 = vpop.f32.mrf.mxu0
          %v826 = vadd.f32 %v813, %v825
          %v827 = vpop.f32.mrf.mxu0
          %828 = vdwg.mxu0
          %v829 = vpack.c.bf16 %v826, %v800
          %830 = vst [vmem:[#allocation3] sm:$0xff] %v829
          %v831 = vld [vmem:[%s496] sm:$0xff]
          %v832 = vld [vmem:[#allocation15] sm:$0xff]
          %v833 = vld [vmem:[#allocation15 + $0x8] sm:$0xff]
          %v834 = vld [vmem:[#allocation15 + $0x10] sm:$0xff]
          %v835 = vld [vmem:[#allocation15 + $0x18] sm:$0xff]
          %v836 = vld [vmem:[#allocation15 + $0x20] sm:$0xff]
          %v837 = vld [vmem:[#allocation15 + $0x28] sm:$0xff]
          %v838 = vld [vmem:[#allocation15 + $0x30] sm:$0xff]
          %v839 = vld [vmem:[#allocation15 + $0x38] sm:$0xff]
          %v840 = vld [vmem:[#allocation15 + $0x40] sm:$0xff]
          %v841 = vld [vmem:[#allocation15 + $0x48] sm:$0xff]
          %v842 = vld [vmem:[#allocation15 + $0x50] sm:$0xff]
          %v843 = vld [vmem:[#allocation15 + $0x58] sm:$0xff]
          %v844 = vld [vmem:[#allocation15 + $0x60] sm:$0xff]
          %v845 = vld [vmem:[#allocation15 + $0x68] sm:$0xff]
          %v846 = vld [vmem:[#allocation15 + $0x70] sm:$0xff]
          %v847 = vld [vmem:[#allocation15 + $0x78] sm:$0xff]
          %v848 = vld [vmem:[#allocation15 + $0x80] sm:$0xff]
          %v849 = vld [vmem:[#allocation15 + $0x88] sm:$0xff]
          %v850 = vld [vmem:[#allocation15 + $0x90] sm:$0xff]
          %v851 = vld [vmem:[#allocation15 + $0x98] sm:$0xff]
          %v852 = vld [vmem:[#allocation15 + $0xa0] sm:$0xff]
          %v853 = vld [vmem:[#allocation15 + $0xa8] sm:$0xff]
          %v854 = vld [vmem:[#allocation15 + $0xb0] sm:$0xff]
          %v855 = vld [vmem:[#allocation15 + $0xb8] sm:$0xff]
          %v856 = vld [vmem:[#allocation15 + $0xc0] sm:$0xff]
          %v857 = vld [vmem:[#allocation15 + $0xc8] sm:$0xff]
          %v858 = vld [vmem:[#allocation15 + $0xd0] sm:$0xff]
          %v859 = vld [vmem:[#allocation15 + $0xd8] sm:$0xff]
          %v860 = vld [vmem:[#allocation15 + $0xe0] sm:$0xff]
          %v861 = vld [vmem:[#allocation15 + $0xe8] sm:$0xff]
          %v862 = vld [vmem:[#allocation15 + $0xf0] sm:$0xff]
          %v863 = vld [vmem:[#allocation15 + $0xf8] sm:$0xff]
          %v864 = vld [vmem:[%s8] sm:$0x3]
          %v866 = vperm.slane %v864, 0
          %v867 = vperm.slane %v864, 1
          %v871 = vunpack.c.l.b16 %v831
          %v872 = vunpack.c.h.b16 %v831
          %v873 = vpack.c.b16 %v871, %v871
          %v874 = vpack.c.b16 %v872, %v872
          %v909 = vunpack.c.l.b16 %v832
          %v910 = vunpack.c.h.b16 %v832
          %v911 = vunpack.c.l.b16 %v833
          %v912 = vunpack.c.h.b16 %v833
          %v913 = vunpack.c.l.b16 %v834
          %v914 = vunpack.c.h.b16 %v834
          %v915 = vunpack.c.l.b16 %v835
          %v916 = vunpack.c.h.b16 %v835
          %v917 = vunpack.c.l.b16 %v836
          %v918 = vunpack.c.h.b16 %v836
          %v919 = vunpack.c.l.b16 %v837
          %v920 = vunpack.c.h.b16 %v837
          %v921 = vunpack.c.l.b16 %v838
          %v922 = vunpack.c.h.b16 %v838
          %v923 = vunpack.c.l.b16 %v839
          %v924 = vunpack.c.h.b16 %v839
          %v925 = vunpack.c.l.b16 %v840
          %v926 = vunpack.c.h.b16 %v840
          %v927 = vunpack.c.l.b16 %v841
          %v928 = vunpack.c.h.b16 %v841
          %v929 = vunpack.c.l.b16 %v842
          %v930 = vunpack.c.h.b16 %v842
          %v931 = vunpack.c.l.b16 %v843
          %v932 = vunpack.c.h.b16 %v843
          %v933 = vunpack.c.l.b16 %v844
          %v934 = vunpack.c.h.b16 %v844
          %v935 = vunpack.c.l.b16 %v845
          %v936 = vunpack.c.h.b16 %v845
          %v937 = vunpack.c.l.b16 %v846
          %v938 = vunpack.c.h.b16 %v846
          %v939 = vunpack.c.l.b16 %v847
          %v940 = vunpack.c.h.b16 %v847
          %v941 = vunpack.c.l.b16 %v848
          %v942 = vunpack.c.h.b16 %v848
          %v943 = vunpack.c.l.b16 %v849
          %v944 = vunpack.c.h.b16 %v849
          %v945 = vunpack.c.l.b16 %v850
          %v946 = vunpack.c.h.b16 %v850
          %v947 = vunpack.c.l.b16 %v851
          %v948 = vunpack.c.h.b16 %v851
          %v949 = vunpack.c.l.b16 %v852
          %v950 = vunpack.c.h.b16 %v852
          %v951 = vunpack.c.l.b16 %v853
          %v952 = vunpack.c.h.b16 %v853
          %v953 = vunpack.c.l.b16 %v854
          %v954 = vunpack.c.h.b16 %v854
          %v955 = vunpack.c.l.b16 %v855
          %v956 = vunpack.c.h.b16 %v855
          %v957 = vunpack.c.l.b16 %v856
          %v958 = vunpack.c.h.b16 %v856
          %v959 = vunpack.c.l.b16 %v857
          %v960 = vunpack.c.h.b16 %v857
          %v961 = vunpack.c.l.b16 %v858
          %v962 = vunpack.c.h.b16 %v858
          %v963 = vunpack.c.l.b16 %v859
          %v964 = vunpack.c.h.b16 %v859
          %v965 = vunpack.c.l.b16 %v860
          %v966 = vunpack.c.h.b16 %v860
          %v967 = vunpack.c.l.b16 %v861
          %v968 = vunpack.c.h.b16 %v861
          %v969 = vunpack.c.l.b16 %v862
          %v970 = vunpack.c.h.b16 %v862
          %v971 = vunpack.c.l.b16 %v863
          %v972 = vunpack.c.h.b16 %v863
          %v973 = vpack.c.b16 %v911, %v909
          %v974 = vpack.c.b16 %v912, %v910
          %v975 = vpack.c.b16 %v915, %v913
          %v976 = vpack.c.b16 %v916, %v914
          %v977 = vpack.c.b16 %v919, %v917
          %v978 = vpack.c.b16 %v920, %v918
          %v979 = vpack.c.b16 %v923, %v921
          %v980 = vpack.c.b16 %v924, %v922
          %v981 = vpack.c.b16 %v927, %v925
          %v982 = vpack.c.b16 %v928, %v926
          %v983 = vpack.c.b16 %v931, %v929
          %v984 = vpack.c.b16 %v932, %v930
          %v985 = vpack.c.b16 %v935, %v933
          %v986 = vpack.c.b16 %v936, %v934
          %v987 = vpack.c.b16 %v939, %v937
          %v988 = vpack.c.b16 %v940, %v938
          %v989 = vpack.c.b16 %v943, %v941
          %v990 = vpack.c.b16 %v944, %v942
          %v991 = vpack.c.b16 %v947, %v945
          %v992 = vpack.c.b16 %v948, %v946
          %v993 = vpack.c.b16 %v951, %v949
          %v994 = vpack.c.b16 %v952, %v950
          %v995 = vpack.c.b16 %v955, %v953
          %v996 = vpack.c.b16 %v956, %v954
          %v997 = vpack.c.b16 %v959, %v957
          %v998 = vpack.c.b16 %v960, %v958
          %v999 = vpack.c.b16 %v963, %v961
          %v1000 = vpack.c.b16 %v964, %v962
          %v1001 = vpack.c.b16 %v967, %v965
          %v1002 = vpack.c.b16 %v968, %v966
          %v1003 = vpack.c.b16 %v971, %v969
          %v1004 = vpack.c.b16 %v972, %v970
          %1037 = vmatpush.bf16.msra.mxu0 %v987
          %1038 = vmatpush.bf16.msra.mxu0 %v985
          %1039 = vmatpush.bf16.msra.mxu0 %v983
          %1040 = vmatpush.bf16.msra.mxu0 %v981
          %1041 = vmatpush.bf16.msra.mxu0 %v979
          %1042 = vmatpush.bf16.msra.mxu0 %v977
          %1043 = vmatpush.bf16.msra.mxu0 %v975
          %1044 = vmatpush.bf16.msra.mxu0 %v973
          %1045 = vmatmul.bf16.gmra.mxu0 %v873
          %v1046 = vpop.f32.mrf.mxu0
          %v1047 = vadd.f32 %v866, %v1046
          %v1048 = vpop.f32.mrf.mxu0
          %1049 = vdwg.mxu0
          %1050 = vmatpush.bf16.msra.mxu0 %v1003
          %1051 = vmatpush.bf16.msra.mxu0 %v1001
          %1052 = vmatpush.bf16.msra.mxu0 %v999
          %1053 = vmatpush.bf16.msra.mxu0 %v997
          %1054 = vmatpush.bf16.msra.mxu0 %v995
          %1055 = vmatpush.bf16.msra.mxu0 %v993
          %1056 = vmatpush.bf16.msra.mxu0 %v991
          %1057 = vmatpush.bf16.msra.mxu0 %v989
          %1058 = vmatmul.bf16.gmra.mxu0 %v874
          %v1059 = vpop.f32.mrf.mxu0
          %v1060 = vadd.f32 %v1047, %v1059
          %v1061 = vpop.f32.mrf.mxu0
          %1062 = vdwg.mxu0
          %1063 = vmatpush.bf16.msra.mxu0 %v988
          %1064 = vmatpush.bf16.msra.mxu0 %v986
          %1065 = vmatpush.bf16.msra.mxu0 %v984
          %1066 = vmatpush.bf16.msra.mxu0 %v982
          %1067 = vmatpush.bf16.msra.mxu0 %v980
          %1068 = vmatpush.bf16.msra.mxu0 %v978
          %1069 = vmatpush.bf16.msra.mxu0 %v976
          %1070 = vmatpush.bf16.msra.mxu0 %v974
          %1071 = vmatmul.bf16.gmra.mxu0 %v873
          %v1072 = vpop.f32.mrf.mxu0
          %v1073 = vadd.f32 %v867, %v1072
          %v1074 = vpop.f32.mrf.mxu0
          %1075 = vdwg.mxu0
          %1076 = vmatpush.bf16.msra.mxu0 %v1004
          %1077 = vmatpush.bf16.msra.mxu0 %v1002
          %1078 = vmatpush.bf16.msra.mxu0 %v1000
          %1079 = vmatpush.bf16.msra.mxu0 %v998
          %1080 = vmatpush.bf16.msra.mxu0 %v996
          %1081 = vmatpush.bf16.msra.mxu0 %v994
          %1082 = vmatpush.bf16.msra.mxu0 %v992
          %1083 = vmatpush.bf16.msra.mxu0 %v990
          %1084 = vmatmul.bf16.gmra.mxu0 %v874
          %v1085 = vpop.f32.mrf.mxu0
          %v1086 = vadd.f32 %v1073, %v1085
          %v1087 = vpop.f32.mrf.mxu0
          %1088 = vdwg.mxu0
          %v1089 = vpack.c.bf16 %v1086, %v1060
          %1090 = vst [vmem:[#allocation4] sm:$0xff] %v1089
        $region96: #{tpu_custom_call.1} parent=63 // pred_fallthru
          _
        %v1091 = vld [vmem:[%s476] sm:$0xff]
        %v1092 = vld [vmem:[#allocation12] sm:$0xff]
        %v1093 = vld [vmem:[#allocation12 + $0x8] sm:$0xff]
        %v1094 = vld [vmem:[#allocation12 + $0x10] sm:$0xff]
        %v1095 = vld [vmem:[#allocation12 + $0x18] sm:$0xff]
        %v1096 = vld [vmem:[#allocation12 + $0x20] sm:$0xff]
        %v1097 = vld [vmem:[#allocation12 + $0x28] sm:$0xff]
        %v1098 = vld [vmem:[#allocation12 + $0x30] sm:$0xff]
        %v1099 = vld [vmem:[#allocation12 + $0x38] sm:$0xff]
        %v1100 = vld [vmem:[#allocation12 + $0x40] sm:$0xff]
        %v1101 = vld [vmem:[#allocation12 + $0x48] sm:$0xff]
        %v1102 = vld [vmem:[#allocation12 + $0x50] sm:$0xff]
        %v1103 = vld [vmem:[#allocation12 + $0x58] sm:$0xff]
        %v1104 = vld [vmem:[#allocation12 + $0x60] sm:$0xff]
        %v1105 = vld [vmem:[#allocation12 + $0x68] sm:$0xff]
        %v1106 = vld [vmem:[#allocation12 + $0x70] sm:$0xff]
        %v1107 = vld [vmem:[#allocation12 + $0x78] sm:$0xff]
        %v1108 = vld [vmem:[#allocation12 + $0x80] sm:$0xff]
        %v1109 = vld [vmem:[#allocation12 + $0x88] sm:$0xff]
        %v1110 = vld [vmem:[#allocation12 + $0x90] sm:$0xff]
        %v1111 = vld [vmem:[#allocation12 + $0x98] sm:$0xff]
        %v1112 = vld [vmem:[#allocation12 + $0xa0] sm:$0xff]
        %v1113 = vld [vmem:[#allocation12 + $0xa8] sm:$0xff]
        %v1114 = vld [vmem:[#allocation12 + $0xb0] sm:$0xff]
        %v1115 = vld [vmem:[#allocation12 + $0xb8] sm:$0xff]
        %v1116 = vld [vmem:[#allocation12 + $0xc0] sm:$0xff]
        %v1117 = vld [vmem:[#allocation12 + $0xc8] sm:$0xff]
        %v1118 = vld [vmem:[#allocation12 + $0xd0] sm:$0xff]
        %v1119 = vld [vmem:[#allocation12 + $0xd8] sm:$0xff]
        %v1120 = vld [vmem:[#allocation12 + $0xe0] sm:$0xff]
        %v1121 = vld [vmem:[#allocation12 + $0xe8] sm:$0xff]
        %v1122 = vld [vmem:[#allocation12 + $0xf0] sm:$0xff]
        %v1123 = vld [vmem:[#allocation12 + $0xf8] sm:$0xff]
        %v1124 = vld [vmem:[%s6] sm:$0x3]
        %v1126 = vperm.slane %v1124, 0
        %v1127 = vperm.slane %v1124, 1
        %v1131 = vunpack.c.l.b16 %v1091
        %v1132 = vunpack.c.h.b16 %v1091
        %v1133 = vpack.c.b16 %v1131, %v1131
        %v1134 = vpack.c.b16 %v1132, %v1132
        %v1169 = vunpack.c.l.b16 %v1092
        %v1170 = vunpack.c.h.b16 %v1092
        %v1171 = vunpack.c.l.b16 %v1093
        %v1172 = vunpack.c.h.b16 %v1093
        %v1173 = vunpack.c.l.b16 %v1094
        %v1174 = vunpack.c.h.b16 %v1094
        %v1175 = vunpack.c.l.b16 %v1095
        %v1176 = vunpack.c.h.b16 %v1095
        %v1177 = vunpack.c.l.b16 %v1096
        %v1178 = vunpack.c.h.b16 %v1096
        %v1179 = vunpack.c.l.b16 %v1097
        %v1180 = vunpack.c.h.b16 %v1097
        %v1181 = vunpack.c.l.b16 %v1098
        %v1182 = vunpack.c.h.b16 %v1098
        %v1183 = vunpack.c.l.b16 %v1099
        %v1184 = vunpack.c.h.b16 %v1099
        %v1185 = vunpack.c.l.b16 %v1100
        %v1186 = vunpack.c.h.b16 %v1100
        %v1187 = vunpack.c.l.b16 %v1101
        %v1188 = vunpack.c.h.b16 %v1101
        %v1189 = vunpack.c.l.b16 %v1102
        %v1190 = vunpack.c.h.b16 %v1102
        %v1191 = vunpack.c.l.b16 %v1103
        %v1192 = vunpack.c.h.b16 %v1103
        %v1193 = vunpack.c.l.b16 %v1104
        %v1194 = vunpack.c.h.b16 %v1104
        %v1195 = vunpack.c.l.b16 %v1105
        %v1196 = vunpack.c.h.b16 %v1105
        %v1197 = vunpack.c.l.b16 %v1106
        %v1198 = vunpack.c.h.b16 %v1106
        %v1199 = vunpack.c.l.b16 %v1107
        %v1200 = vunpack.c.h.b16 %v1107
        %v1201 = vunpack.c.l.b16 %v1108
        %v1202 = vunpack.c.h.b16 %v1108
        %v1203 = vunpack.c.l.b16 %v1109
        %v1204 = vunpack.c.h.b16 %v1109
        %v1205 = vunpack.c.l.b16 %v1110
        %v1206 = vunpack.c.h.b16 %v1110
        %v1207 = vunpack.c.l.b16 %v1111
        %v1208 = vunpack.c.h.b16 %v1111
        %v1209 = vunpack.c.l.b16 %v1112
        %v1210 = vunpack.c.h.b16 %v1112
        %v1211 = vunpack.c.l.b16 %v1113
        %v1212 = vunpack.c.h.b16 %v1113
        %v1213 = vunpack.c.l.b16 %v1114
        %v1214 = vunpack.c.h.b16 %v1114
        %v1215 = vunpack.c.l.b16 %v1115
        %v1216 = vunpack.c.h.b16 %v1115
        %v1217 = vunpack.c.l.b16 %v1116
        %v1218 = vunpack.c.h.b16 %v1116
        %v1219 = vunpack.c.l.b16 %v1117
        %v1220 = vunpack.c.h.b16 %v1117
        %v1221 = vunpack.c.l.b16 %v1118
        %v1222 = vunpack.c.h.b16 %v1118
        %v1223 = vunpack.c.l.b16 %v1119
        %v1224 = vunpack.c.h.b16 %v1119
        %v1225 = vunpack.c.l.b16 %v1120
        %v1226 = vunpack.c.h.b16 %v1120
        %v1227 = vunpack.c.l.b16 %v1121
        %v1228 = vunpack.c.h.b16 %v1121
        %v1229 = vunpack.c.l.b16 %v1122
        %v1230 = vunpack.c.h.b16 %v1122
        %v1231 = vunpack.c.l.b16 %v1123
        %v1232 = vunpack.c.h.b16 %v1123
        %v1233 = vpack.c.b16 %v1171, %v1169
        %v1234 = vpack.c.b16 %v1172, %v1170
        %v1235 = vpack.c.b16 %v1175, %v1173
        %v1236 = vpack.c.b16 %v1176, %v1174
        %v1237 = vpack.c.b16 %v1179, %v1177
        %v1238 = vpack.c.b16 %v1180, %v1178
        %v1239 = vpack.c.b16 %v1183, %v1181
        %v1240 = vpack.c.b16 %v1184, %v1182
        %v1241 = vpack.c.b16 %v1187, %v1185
        %v1242 = vpack.c.b16 %v1188, %v1186
        %v1243 = vpack.c.b16 %v1191, %v1189
        %v1244 = vpack.c.b16 %v1192, %v1190
        %v1245 = vpack.c.b16 %v1195, %v1193
        %v1246 = vpack.c.b16 %v1196, %v1194
        %v1247 = vpack.c.b16 %v1199, %v1197
        %v1248 = vpack.c.b16 %v1200, %v1198
        %v1249 = vpack.c.b16 %v1203, %v1201
        %v1250 = vpack.c.b16 %v1204, %v1202
        %v1251 = vpack.c.b16 %v1207, %v1205
        %v1252 = vpack.c.b16 %v1208, %v1206
        %v1253 = vpack.c.b16 %v1211, %v1209
        %v1254 = vpack.c.b16 %v1212, %v1210
        %v1255 = vpack.c.b16 %v1215, %v1213
        %v1256 = vpack.c.b16 %v1216, %v1214
        %v1257 = vpack.c.b16 %v1219, %v1217
        %v1258 = vpack.c.b16 %v1220, %v1218
        %v1259 = vpack.c.b16 %v1223, %v1221
        %v1260 = vpack.c.b16 %v1224, %v1222
        %v1261 = vpack.c.b16 %v1227, %v1225
        %v1262 = vpack.c.b16 %v1228, %v1226
        %v1263 = vpack.c.b16 %v1231, %v1229
        %v1264 = vpack.c.b16 %v1232, %v1230
        %1297 = vmatpush.bf16.msra.mxu0 %v1247
        %1298 = vmatpush.bf16.msra.mxu0 %v1245
        %1299 = vmatpush.bf16.msra.mxu0 %v1243
        %1300 = vmatpush.bf16.msra.mxu0 %v1241
        %1301 = vmatpush.bf16.msra.mxu0 %v1239
        %1302 = vmatpush.bf16.msra.mxu0 %v1237
        %1303 = vmatpush.bf16.msra.mxu0 %v1235
        %1304 = vmatpush.bf16.msra.mxu0 %v1233
        %1305 = vmatmul.bf16.gmra.mxu0 %v1133
        %v1306 = vpop.f32.mrf.mxu0
        %v1307 = vadd.f32 %v1126, %v1306
        %v1308 = vpop.f32.mrf.mxu0
        %1309 = vdwg.mxu0
        %1310 = vmatpush.bf16.msra.mxu0 %v1263
        %1311 = vmatpush.bf16.msra.mxu0 %v1261
        %1312 = vmatpush.bf16.msra.mxu0 %v1259
        %1313 = vmatpush.bf16.msra.mxu0 %v1257
        %1314 = vmatpush.bf16.msra.mxu0 %v1255
        %1315 = vmatpush.bf16.msra.mxu0 %v1253
        %1316 = vmatpush.bf16.msra.mxu0 %v1251
        %1317 = vmatpush.bf16.msra.mxu0 %v1249
        %1318 = vmatmul.bf16.gmra.mxu0 %v1134
        %v1319 = vpop.f32.mrf.mxu0
        %v1320 = vadd.f32 %v1307, %v1319
        %v1321 = vpop.f32.mrf.mxu0
        %1322 = vdwg.mxu0
        %1323 = vmatpush.bf16.msra.mxu0 %v1248
        %1324 = vmatpush.bf16.msra.mxu0 %v1246
        %1325 = vmatpush.bf16.msra.mxu0 %v1244
        %1326 = vmatpush.bf16.msra.mxu0 %v1242
        %1327 = vmatpush.bf16.msra.mxu0 %v1240
        %1328 = vmatpush.bf16.msra.mxu0 %v1238
        %1329 = vmatpush.bf16.msra.mxu0 %v1236
        %1330 = vmatpush.bf16.msra.mxu0 %v1234
        %1331 = vmatmul.bf16.gmra.mxu0 %v1133
        %v1332 = vpop.f32.mrf.mxu0
        %v1333 = vadd.f32 %v1127, %v1332
        %v1334 = vpop.f32.mrf.mxu0
        %1335 = vdwg.mxu0
        %1336 = vmatpush.bf16.msra.mxu0 %v1264
        %1337 = vmatpush.bf16.msra.mxu0 %v1262
        %1338 = vmatpush.bf16.msra.mxu0 %v1260
        %1339 = vmatpush.bf16.msra.mxu0 %v1258
        %1340 = vmatpush.bf16.msra.mxu0 %v1256
        %1341 = vmatpush.bf16.msra.mxu0 %v1254
        %1342 = vmatpush.bf16.msra.mxu0 %v1252
        %1343 = vmatpush.bf16.msra.mxu0 %v1250
        %1344 = vmatmul.bf16.gmra.mxu0 %v1134
        %v1345 = vpop.f32.mrf.mxu0
        %v1346 = vadd.f32 %v1333, %v1345
        %v1347 = vpop.f32.mrf.mxu0
        %1348 = vdwg.mxu0
        %v1349 = vpack.c.bf16 %v1346, %v1320
        %1350 = vst [vmem:[#allocation2] sm:$0xff] %v1349
        %v1351 = vld [vmem:[#allocation2] sm:$0xf]
        %v1352 = vld [vmem:[#allocation3] sm:$0xf]
        %v1353 = vld [vmem:[#allocation4] sm:$0xf]
        %1354 = vmatpush.bf16.xpose.msra.mxu0 0
        %1355 = vmatpush.bf16.xpose.msra.mxu0 0
        %1356 = vmatpush.bf16.xpose.msra.mxu0 0
        %1357 = vmatpush.bf16.xpose.msra.mxu0 0
        %1358 = vmatpush.bf16.xpose.msra.mxu0 0
        %1359 = vmatpush.bf16.xpose.msra.mxu0 0
        %1360 = vmatpush.bf16.xpose.msra.mxu0 0
        %1361 = vmatpush.bf16.xpose.msra.mxu0 %v1352
        %1362 = vmatmul.bf16.gmra.mxu0 %v1351
        %v1363 = vpop.f32.mrf.mxu0
        %v1364 = vadd.f32 0.0, %v1363
        %v1365 = vpop.f32.mrf.mxu0
        %1366 = vdwg.mxu0
        %vm1367 = vcmask 64512
        %v1368 = vsel %vm1367, %v1364, -inf
        %1369 = vmax.xlane.f32.xlu0 %v1368
        %v1370 = vpop.xlane.xlu0 %1369
        %v1371 = vsub.f32 %v1364, %v1370
        %v1372 = vmul.f32 %v1371, 1.442695
        %v1373 = vpow.pop %v1372
        %v1374 = vsel %vm1367, %v1373, 0.0
        %1375 = vadd.xlane.f32.xlu0 %v1374
        %v1376 = vpop.xlane.xlu0 %1375
        %v1377 = vrcp.pop %v1376
        %v1378 = vmul.f32 %v1373, %v1377
        %v1379 = vpack.c.bf16 %v1378, %v1378
        %v1381 = vsel %vm1367, %v1379, 0
        %vm1383 = vcmask 1043456
        %v1385 = vsel %vm1383, %v1353, 0
        %1387 = vmatpush.bf16.msra.mxu0 0
        %1388 = vmatpush.bf16.msra.mxu0 0
        %1389 = vmatpush.bf16.msra.mxu0 0
        %1390 = vmatpush.bf16.msra.mxu0 0
        %1391 = vmatpush.bf16.msra.mxu0 0
        %1392 = vmatpush.bf16.msra.mxu0 0
        %1393 = vmatpush.bf16.msra.mxu0 0
        %1394 = vmatpush.bf16.msra.mxu0 %v1385
        %1395 = vmatmul.bf16.gmra.mxu0 %v1381
        %v1396 = vpop.f32.mrf.mxu0
        %v1397 = vadd.f32 0.0, %v1396
        %v1398 = vpop.f32.mrf.mxu0
        %1399 = vdwg.mxu0
        %v1400 = vpack.c.bf16 %v1397, %v1397
        %1401 = vst [vmem:[#allocation5] sm:$0xf] %v1400
        %v1402 = vld [vmem:[#allocation2 + $0x4] sm:$0xf]
        %v1403 = vld [vmem:[#allocation3 + $0x4] sm:$0xf]
        %v1404 = vld [vmem:[#allocation4 + $0x4] sm:$0xf]
        %1405 = vmatpush.bf16.xpose.msra.mxu0 0
        %1406 = vmatpush.bf16.xpose.msra.mxu0 0
        %1407 = vmatpush.bf16.xpose.msra.mxu0 0
        %1408 = vmatpush.bf16.xpose.msra.mxu0 0
        %1409 = vmatpush.bf16.xpose.msra.mxu0 0
        %1410 = vmatpush.bf16.xpose.msra.mxu0 0
        %1411 = vmatpush.bf16.xpose.msra.mxu0 0
        %1412 = vmatpush.bf16.xpose.msra.mxu0 %v1403
        %1413 = vmatmul.bf16.gmra.mxu0 %v1402
        %v1414 = vpop.f32.mrf.mxu0
        %v1415 = vadd.f32 0.0, %v1414
        %v1416 = vpop.f32.mrf.mxu0
        %1417 = vdwg.mxu0
        %v1418 = vsel %vm1367, %v1415, -inf
        %1419 = vmax.xlane.f32.xlu0 %v1418
        %v1420 = vpop.xlane.xlu0 %1419
        %v1421 = vsub.f32 %v1415, %v1420
        %v1422 = vmul.f32 %v1421, 1.442695
        %v1423 = vpow.pop %v1422
        %v1424 = vsel %vm1367, %v1423, 0.0
        %1425 = vadd.xlane.f32.xlu0 %v1424
        %v1426 = vpop.xlane.xlu0 %1425
        %v1427 = vrcp.pop %v1426
        %v1428 = vmul.f32 %v1423, %v1427
        %v1429 = vpack.c.bf16 %v1428, %v1428
        %v1431 = vsel %vm1367, %v1429, 0
        %v1434 = vsel %vm1383, %v1404, 0
        %1436 = vmatpush.bf16.msra.mxu0 0
        %1437 = vmatpush.bf16.msra.mxu0 0
        %1438 = vmatpush.bf16.msra.mxu0 0
        %1439 = vmatpush.bf16.msra.mxu0 0
        %1440 = vmatpush.bf16.msra.mxu0 0
        %1441 = vmatpush.bf16.msra.mxu0 0
        %1442 = vmatpush.bf16.msra.mxu0 0
        %1443 = vmatpush.bf16.msra.mxu0 %v1434
        %1444 = vmatmul.bf16.gmra.mxu0 %v1431
        %v1445 = vpop.f32.mrf.mxu0
        %v1446 = vadd.f32 0.0, %v1445
        %v1447 = vpop.f32.mrf.mxu0
        %1448 = vdwg.mxu0
        %v1449 = vpack.c.bf16 %v1446, %v1446
        %1450 = vst [vmem:[#allocation5 + $0x4] sm:$0xf] %v1449
        %v1451 = vld [vmem:[#allocation5] sm:$0xff]
        %v1452 = vld [vmem:[#allocation17] sm:$0xff]
        %v1453 = vld [vmem:[#allocation17 + $0x8] sm:$0xff]
        %v1454 = vld [vmem:[#allocation17 + $0x10] sm:$0xff]
        %v1455 = vld [vmem:[#allocation17 + $0x18] sm:$0xff]
        %v1456 = vld [vmem:[#allocation17 + $0x20] sm:$0xff]
        %v1457 = vld [vmem:[#allocation17 + $0x28] sm:$0xff]
        %v1458 = vld [vmem:[#allocation17 + $0x30] sm:$0xff]
        %v1459 = vld [vmem:[#allocation17 + $0x38] sm:$0xff]
        %v1460 = vld [vmem:[#allocation17 + $0x40] sm:$0xff]
        %v1461 = vld [vmem:[#allocation17 + $0x48] sm:$0xff]
        %v1462 = vld [vmem:[#allocation17 + $0x50] sm:$0xff]
        %v1463 = vld [vmem:[#allocation17 + $0x58] sm:$0xff]
        %v1464 = vld [vmem:[#allocation17 + $0x60] sm:$0xff]
        %v1465 = vld [vmem:[#allocation17 + $0x68] sm:$0xff]
        %v1466 = vld [vmem:[#allocation17 + $0x70] sm:$0xff]
        %v1467 = vld [vmem:[#allocation17 + $0x78] sm:$0xff]
        %v1468 = vld [vmem:[#allocation17 + $0x80] sm:$0xff]
        %v1469 = vld [vmem:[#allocation17 + $0x88] sm:$0xff]
        %v1470 = vld [vmem:[#allocation17 + $0x90] sm:$0xff]
        %v1471 = vld [vmem:[#allocation17 + $0x98] sm:$0xff]
        %v1472 = vld [vmem:[#allocation17 + $0xa0] sm:$0xff]
        %v1473 = vld [vmem:[#allocation17 + $0xa8] sm:$0xff]
        %v1474 = vld [vmem:[#allocation17 + $0xb0] sm:$0xff]
        %v1475 = vld [vmem:[#allocation17 + $0xb8] sm:$0xff]
        %v1476 = vld [vmem:[#allocation17 + $0xc0] sm:$0xff]
        %v1477 = vld [vmem:[#allocation17 + $0xc8] sm:$0xff]
        %v1478 = vld [vmem:[#allocation17 + $0xd0] sm:$0xff]
        %v1479 = vld [vmem:[#allocation17 + $0xd8] sm:$0xff]
        %v1480 = vld [vmem:[#allocation17 + $0xe0] sm:$0xff]
        %v1481 = vld [vmem:[#allocation17 + $0xe8] sm:$0xff]
        %v1482 = vld [vmem:[#allocation17 + $0xf0] sm:$0xff]
        %v1483 = vld [vmem:[#allocation17 + $0xf8] sm:$0xff]
        %v1484 = vld [vmem:[%s10] sm:$0x3]
        %v1486 = vperm.slane %v1484, 0
        %v1487 = vperm.slane %v1484, 1
        %v1491 = vunpack.c.l.b16 %v1451
        %v1492 = vunpack.c.h.b16 %v1451
        %v1493 = vpack.c.b16 %v1491, %v1491
        %v1494 = vpack.c.b16 %v1492, %v1492
        %v1529 = vunpack.c.l.b16 %v1452
        %v1530 = vunpack.c.h.b16 %v1452
        %v1531 = vunpack.c.l.b16 %v1453
        %v1532 = vunpack.c.h.b16 %v1453
        %v1533 = vunpack.c.l.b16 %v1454
        %v1534 = vunpack.c.h.b16 %v1454
        %v1535 = vunpack.c.l.b16 %v1455
        %v1536 = vunpack.c.h.b16 %v1455
        %v1537 = vunpack.c.l.b16 %v1456
        %v1538 = vunpack.c.h.b16 %v1456
        %v1539 = vunpack.c.l.b16 %v1457
        %v1540 = vunpack.c.h.b16 %v1457
        %v1541 = vunpack.c.l.b16 %v1458
        %v1542 = vunpack.c.h.b16 %v1458
        %v1543 = vunpack.c.l.b16 %v1459
        %v1544 = vunpack.c.h.b16 %v1459
        %v1545 = vunpack.c.l.b16 %v1460
        %v1546 = vunpack.c.h.b16 %v1460
        %v1547 = vunpack.c.l.b16 %v1461
        %v1548 = vunpack.c.h.b16 %v1461
        %v1549 = vunpack.c.l.b16 %v1462
        %v1550 = vunpack.c.h.b16 %v1462
        %v1551 = vunpack.c.l.b16 %v1463
        %v1552 = vunpack.c.h.b16 %v1463
        %v1553 = vunpack.c.l.b16 %v1464
        %v1554 = vunpack.c.h.b16 %v1464
        %v1555 = vunpack.c.l.b16 %v1465
        %v1556 = vunpack.c.h.b16 %v1465
        %v1557 = vunpack.c.l.b16 %v1466
        %v1558 = vunpack.c.h.b16 %v1466
        %v1559 = vunpack.c.l.b16 %v1467
        %v1560 = vunpack.c.h.b16 %v1467
        %v1561 = vunpack.c.l.b16 %v1468
        %v1562 = vunpack.c.h.b16 %v1468
        %v1563 = vunpack.c.l.b16 %v1469
        %v1564 = vunpack.c.h.b16 %v1469
        %v1565 = vunpack.c.l.b16 %v1470
        %v1566 = vunpack.c.h.b16 %v1470
        %v1567 = vunpack.c.l.b16 %v1471
        %v1568 = vunpack.c.h.b16 %v1471
        %v1569 = vunpack.c.l.b16 %v1472
        %v1570 = vunpack.c.h.b16 %v1472
        %v1571 = vunpack.c.l.b16 %v1473
        %v1572 = vunpack.c.h.b16 %v1473
        %v1573 = vunpack.c.l.b16 %v1474
        %v1574 = vunpack.c.h.b16 %v1474
        %v1575 = vunpack.c.l.b16 %v1475
        %v1576 = vunpack.c.h.b16 %v1475
        %v1577 = vunpack.c.l.b16 %v1476
        %v1578 = vunpack.c.h.b16 %v1476
        %v1579 = vunpack.c.l.b16 %v1477
        %v1580 = vunpack.c.h.b16 %v1477
        %v1581 = vunpack.c.l.b16 %v1478
        %v1582 = vunpack.c.h.b16 %v1478
        %v1583 = vunpack.c.l.b16 %v1479
        %v1584 = vunpack.c.h.b16 %v1479
        %v1585 = vunpack.c.l.b16 %v1480
        %v1586 = vunpack.c.h.b16 %v1480
        %v1587 = vunpack.c.l.b16 %v1481
        %v1588 = vunpack.c.h.b16 %v1481
        %v1589 = vunpack.c.l.b16 %v1482
        %v1590 = vunpack.c.h.b16 %v1482
        %v1591 = vunpack.c.l.b16 %v1483
        %v1592 = vunpack.c.h.b16 %v1483
        %v1593 = vpack.c.b16 %v1531, %v1529
        %v1594 = vpack.c.b16 %v1532, %v1530
        %v1595 = vpack.c.b16 %v1535, %v1533
        %v1596 = vpack.c.b16 %v1536, %v1534
        %v1597 = vpack.c.b16 %v1539, %v1537
        %v1598 = vpack.c.b16 %v1540, %v1538
        %v1599 = vpack.c.b16 %v1543, %v1541
        %v1600 = vpack.c.b16 %v1544, %v1542
        %v1601 = vpack.c.b16 %v1547, %v1545
        %v1602 = vpack.c.b16 %v1548, %v1546
        %v1603 = vpack.c.b16 %v1551, %v1549
        %v1604 = vpack.c.b16 %v1552, %v1550
        %v1605 = vpack.c.b16 %v1555, %v1553
        %v1606 = vpack.c.b16 %v1556, %v1554
        %v1607 = vpack.c.b16 %v1559, %v1557
        %v1608 = vpack.c.b16 %v1560, %v1558
        %v1609 = vpack.c.b16 %v1563, %v1561
        %v1610 = vpack.c.b16 %v1564, %v1562
        %v1611 = vpack.c.b16 %v1567, %v1565
        %v1612 = vpack.c.b16 %v1568, %v1566
        %v1613 = vpack.c.b16 %v1571, %v1569
        %v1614 = vpack.c.b16 %v1572, %v1570
        %v1615 = vpack.c.b16 %v1575, %v1573
        %v1616 = vpack.c.b16 %v1576, %v1574
        %v1617 = vpack.c.b16 %v1579, %v1577
        %v1618 = vpack.c.b16 %v1580, %v1578
        %v1619 = vpack.c.b16 %v1583, %v1581
        %v1620 = vpack.c.b16 %v1584, %v1582
        %v1621 = vpack.c.b16 %v1587, %v1585
        %v1622 = vpack.c.b16 %v1588, %v1586
        %v1623 = vpack.c.b16 %v1591, %v1589
        %v1624 = vpack.c.b16 %v1592, %v1590
        %1657 = vmatpush.bf16.msra.mxu0 %v1607
        %1658 = vmatpush.bf16.msra.mxu0 %v1605
        %1659 = vmatpush.bf16.msra.mxu0 %v1603
        %1660 = vmatpush.bf16.msra.mxu0 %v1601
        %1661 = vmatpush.bf16.msra.mxu0 %v1599
        %1662 = vmatpush.bf16.msra.mxu0 %v1597
        %1663 = vmatpush.bf16.msra.mxu0 %v1595
        %1664 = vmatpush.bf16.msra.mxu0 %v1593
        %1665 = vmatmul.bf16.gmra.mxu0 %v1493
        %v1666 = vpop.f32.mrf.mxu0
        %v1667 = vadd.f32 %v1486, %v1666
        %v1668 = vpop.f32.mrf.mxu0
        %1669 = vdwg.mxu0
        %1670 = vmatpush.bf16.msra.mxu0 %v1623
        %1671 = vmatpush.bf16.msra.mxu0 %v1621
        %1672 = vmatpush.bf16.msra.mxu0 %v1619
        %1673 = vmatpush.bf16.msra.mxu0 %v1617
        %1674 = vmatpush.bf16.msra.mxu0 %v1615
        %1675 = vmatpush.bf16.msra.mxu0 %v1613
        %1676 = vmatpush.bf16.msra.mxu0 %v1611
        %1677 = vmatpush.bf16.msra.mxu0 %v1609
        %1678 = vmatmul.bf16.gmra.mxu0 %v1494
        %v1679 = vpop.f32.mrf.mxu0
        %v1680 = vadd.f32 %v1667, %v1679
        %v1681 = vpop.f32.mrf.mxu0
        %1682 = vdwg.mxu0
        %1683 = vmatpush.bf16.msra.mxu0 %v1608
        %1684 = vmatpush.bf16.msra.mxu0 %v1606
        %1685 = vmatpush.bf16.msra.mxu0 %v1604
        %1686 = vmatpush.bf16.msra.mxu0 %v1602
        %1687 = vmatpush.bf16.msra.mxu0 %v1600
        %1688 = vmatpush.bf16.msra.mxu0 %v1598
        %1689 = vmatpush.bf16.msra.mxu0 %v1596
        %1690 = vmatpush.bf16.msra.mxu0 %v1594
        %1691 = vmatmul.bf16.gmra.mxu0 %v1493
        %v1692 = vpop.f32.mrf.mxu0
        %v1693 = vadd.f32 %v1487, %v1692
        %v1694 = vpop.f32.mrf.mxu0
        %1695 = vdwg.mxu0
        %1696 = vmatpush.bf16.msra.mxu0 %v1624
        %1697 = vmatpush.bf16.msra.mxu0 %v1622
        %1698 = vmatpush.bf16.msra.mxu0 %v1620
        %1699 = vmatpush.bf16.msra.mxu0 %v1618
        %1700 = vmatpush.bf16.msra.mxu0 %v1616
        %1701 = vmatpush.bf16.msra.mxu0 %v1614
        %1702 = vmatpush.bf16.msra.mxu0 %v1612
        %1703 = vmatpush.bf16.msra.mxu0 %v1610
        %1704 = vmatmul.bf16.gmra.mxu0 %v1494
        %v1705 = vpop.f32.mrf.mxu0
        %v1706 = vadd.f32 %v1693, %v1705
        %v1707 = vpop.f32.mrf.mxu0
        %1708 = vdwg.mxu0
        %1709 = vst [vmem:[%s565] sm:$0xff] %v1680
        %1710 = vst [vmem:[%s565 + $0x8] sm:$0xff] %v1706
        %s1711 = sand.u32 %s303, 1
        %s1712 = scalar_lea.sflag [#allocation8], %s1711
        %s1713 = sand.u32 %s303, 1
        %s1714 = smul.addr %s1713, 16
        %s1715 = scalar_lea.vmem [#allocation18], %s1714
        // Predicated region
        $region97: #{tpu_custom_call.1} parent=63 // pred_check
          %p1716 = pneg %p313
        $region98: #{tpu_custom_call.1} parent=63 // pred_check_branch
          %1718 = sbr.rel (%p1716) target = $region100
        $region99: #{tpu_custom_call.1} parent=63 // pred_region
          %1720 = vsyncadd %s1712, 0
          %s1721 = smul.addr %s38, 2
          %s1722 = smul.addr %s37, 2
          %s1723 = sadd.s32 %s1721, %s1722
          %s1724 = smul.addr %s1723, 8
          %s1725 = scalar_lea.hbm %s11, %s1724
          %s1727 = sshll.u32 %s1715, 4
          %s1728 = int_to_ptr.vmem [resolvable:$true] %s1727
          %s1729 = sshll.u32 %s1725, 4
          %s1730 = int_to_ptr.hbm [resolvable:$true] %s1729
          %1732 = dma.vmem_to_hbm [thread:$0]  %s1728, 256, %s1730, %s1712
        $region100: #{tpu_custom_call.1} parent=63 // pred_fallthru
          _
      $region64: #{tpu_custom_call.1} parent=5 // pred_fallthru
        _
      %p1733 = scmp.le.s32.totalorder 2, %s28
      // Predicated region
      $region101: #{tpu_custom_call.1} parent=5 // pred_check
        %p1734 = pneg %p1733
      $region102: #{tpu_custom_call.1} parent=5 // pred_check_branch
        %1736 = sbr.rel (%p1734) target = $region104
      $region103: #{tpu_custom_call.1} parent=5 // pred_region
        %s1737 = ssub.s32 %s28, 2
        // Predicated region
        $region105: #{tpu_custom_call.1} parent=103 // pred_check
          %p1738 = pneg %p319
        $region106: #{tpu_custom_call.1} parent=103 // pred_check_branch
          %1740 = sbr.rel (%p1738) target = $region108
        $region107: #{tpu_custom_call.1} parent=103 // pred_region
          %s1741 = sand.u32 %s304, 1
          %s1742 = scalar_lea.sflag [#allocation8], %s1741
          %s1743 = sand.u32 %s304, 1
          %s1744 = smul.addr %s1743, 16
          %s1745 = scalar_lea.vmem [#allocation18], %s1744
          %1747 = dma.done %s1742, 256
        $region108: #{tpu_custom_call.1} parent=103 // pred_fallthru
          _
      $region104: #{tpu_custom_call.1} parent=5 // pred_fallthru
        _
    $region6: #{tpu_custom_call.1} parent=1 // loop_footer
      %s32 = sadd.s32 1, %s28
    $region7: #{tpu_custom_call.1} parent=1 // loop_footer_branch
      %27 = sbr.rel target = $region3
    $region8: #{tpu_custom_call.1} parent=1 // loop_exit
      _
    %1748 = vsyncpa [#allocation7], 1
    %s1749 = scalar_lea.sflag [#allocation7], 1
    %1750 = vsyncpa %s1749, 1
    %1751 = vsyncpa [#allocation10], 1
    %s1752 = scalar_lea.sflag [#allocation10], 1
    %1753 = vsyncpa %s1752, 1
    %1754 = vsyncpa [#allocation13], 1
    %1755 = vsyncpa [#allocation16], 1
    %1756 = vsyncpa [#allocation8], 1
    %s1757 = scalar_lea.sflag [#allocation8], 1
    %1758 = vsyncpa %s1757, 1

</llo_original>
